<compile_context>
chip_gen: v5e
topology: v5e:2x2
jax: 0.10.0
libtpu: 0.0.40
codegen_flags: <defaults>
</compile_context>

<pallas_src>
import functools

import jax
import jax.numpy as jnp
from jax.experimental import pallas as pl
from jax.experimental.pallas import tpu as pltpu

VMEM_SPEC = pl.BlockSpec(memory_space=pltpu.MemorySpace.VMEM)


# ------------------------------ Pallas kernels ------------------------------

def _conv_pool_act_kernel(p_ref, w_ref, b_ref, o_ref, *, phases, act):
    """Fused conv-as-GEMM (+ optional 2x2 maxpool) + bias + activation.

    Transposed ("lane-dense") layout:
      p_ref : (phases, K, M)  bf16 im2col patches, one slab per maxpool phase
              (K = kh*kw*C_in, M = N*out_h*out_w on the 128-lane axis)
      w_ref : (C_out, K)      bf16
      b_ref : (C_out, 1)      f32
      o_ref : (C_out, M)      f32
    maxpool(relu(conv + b)) == relu(max_phases(conv_phase) + b) because relu is
    monotone and the bias is per-channel, so the 4-way max is taken on raw GEMM
    results and bias/activation are applied once in the epilogue.
    """
    w = w_ref[...]
    acc = jnp.dot(w, p_ref[0], preferred_element_type=jnp.float32)
    for k in range(1, phases):
        acc = jnp.maximum(acc, jnp.dot(w, p_ref[k],
                                       preferred_element_type=jnp.float32))
    acc = acc + b_ref[...]
    if act == "relu":
        acc = jnp.maximum(acc, 0.0)
    elif act == "sigmoid":
        acc = jax.nn.sigmoid(acc)
    o_ref[...] = acc.astype(o_ref.dtype)


def _lstm_head_kernel(*refs, seq_len, hidden, num_layers):
    """fc_cnn(+relu) -> stacked LSTM over time -> fc_emb(tanh) -> dec_fc(relu),
    all in one kernel invocation.

    refs = [x, fc_w, fc_b, (w_ih, w_hh, b) * num_layers,
            emb_w, emb_b, dec_w, dec_b, out, seq_scratch]
      x: (S, in) bf16; weights bf16 in (in, out) layout; biases f32 (1, out);
      out: (1, dec_out) f32; seq_scratch: VMEM (S, hidden) f32.

    The input->hidden projection of every layer is hoisted out of the time loop
    (single (S,in)@(in,4H) matmul); only h @ W_hh is on the sequential path.
    The short time loop is unrolled at trace time, h/c stay in registers, and
    the layer output sequence is staged through VMEM scratch.
    Gate order (i, f, g, o) matches torch.nn.LSTM; bias == b_ih + b_hh.
    All elementwise/gate math is f32 (v5e-safe); only MXU operands are bf16.
    """
    x_ref, fcw_ref, fcb_ref = refs[0], refs[1], refs[2]
    tail = 3 + 3 * num_layers
    embw_ref, embb_ref, decw_ref, decb_ref = refs[tail:tail + 4]
    o_ref = refs[tail + 4]
    seq_ref = refs[tail + 5]

    def mm(a, w_ref_):
        return jnp.dot(a.astype(jnp.bfloat16), w_ref_[...],
                       preferred_element_type=jnp.float32)

    feats = jnp.maximum(mm(x_ref[...], fcw_ref) + fcb_ref[...], 0.0)   # (S, feat)

    layer_in = feats
    h = jnp.zeros((1, hidden), jnp.float32)
    for layer in range(num_layers):
        wih_ref, whh_ref, b_ref = refs[3 + 3 * layer:3 + 3 * layer + 3]
        gates_x = mm(layer_in, wih_ref) + b_ref[...]          # (S, 4H), hoisted
        h = jnp.zeros((1, hidden), jnp.float32)
        c = jnp.zeros((1, hidden), jnp.float32)
        last = layer == num_layers - 1
        for t in range(seq_len):                              # unrolled time loop
            g = gates_x[t:t + 1, :] + mm(h, whh_ref)
            i_g = jax.nn.sigmoid(g[:, 0 * hidden:1 * hidden])
            f_g = jax.nn.sigmoid(g[:, 1 * hidden:2 * hidden])
            g_g = jnp.tanh(g[:, 2 * hidden:3 * hidden])
            o_g = jax.nn.sigmoid(g[:, 3 * hidden:4 * hidden])
            c = f_g * c + i_g * g_g
            h = o_g * jnp.tanh(c)
            if not last:
                seq_ref[t:t + 1, :] = h
        if not last:
            layer_in = seq_ref[...]

    emb = jnp.tanh(mm(h, embw_ref) + embb_ref[...])           # (1, EMB)
    dec = jnp.maximum(mm(emb, decw_ref) + decb_ref[...], 0.0)  # (1, dec_out)
    o_ref[...] = dec


# ------------------------------- wrappers / glue ------------------------------

def conv_stage(patches, w_ok, bias, *, phases, act):
    c_out = w_ok.shape[0]
    m = patches.shape[-1]
    return pl.pallas_call(
        functools.partial(_conv_pool_act_kernel, phases=phases, act=act),
        out_shape=jax.ShapeDtypeStruct((c_out, m), jnp.float32),
        in_specs=[VMEM_SPEC] * 3,
        out_specs=VMEM_SPEC,
    )(patches, w_ok, bias.reshape(c_out, 1).astype(jnp.float32))


def phase_patches(xp, out_h, out_w, stride, kh=3, kw=3):
    """Transposed im2col on a spatially padded NCHW tensor (XLA glue, tiny).

    Returns (stride*stride, kh*kw*C, N*out_h*out_w). stride=2 gives the 4
    phases of "conv stride-1 followed by 2x2/2 maxpool"; stride=1 is a plain
    conv. K ordering (ki, kj, c_in); M ordering (n, oh, ow).
    """
    n, c, _, _ = xp.shape
    phases = []
    for p in range(stride):
        for q in range(stride):
            rows = []
            for i in range(kh):
                for j in range(kw):
                    slab = xp[:, :, p + i:p + i + stride * (out_h - 1) + 1:stride,
                                    q + j:q + j + stride * (out_w - 1) + 1:stride]
                    rows.append(jnp.transpose(slab, (1, 0, 2, 3))
                                .reshape(c, n * out_h * out_w))
            phases.append(jnp.concatenate(rows, axis=0))
    return jnp.stack(phases, axis=0)


def _conv_w(w):
    """(C_out, C_in, kh, kw) torch layout -> (C_out, kh*kw*C_in) bf16, K=(ki,kj,c)."""
    c_out = w.shape[0]
    return jnp.transpose(w, (0, 2, 3, 1)).reshape(c_out, -1).astype(jnp.bfloat16)


def _upsample2x_nchw(x):
    return jnp.repeat(jnp.repeat(x, 2, axis=2), 2, axis=3)


def _pad_hw(x):
    return jnp.pad(x, ((0, 0), (0, 0), (1, 1), (1, 1)))


# --------------------------------- forward ----------------------------------

def encoder_decoder_forward(params, x):
    """x: (S, C, H, W) f32 video -> (1, C, H, W) f32 reconstructed frame."""
    bf16 = jnp.bfloat16
    s, _, h, w = x.shape
    hid = params["lstm"][0][1].shape[1]            # w_hh: (4H, H)
    num_layers = len(params["lstm"])

    # ---- encoder stage 1: conv3x3 + bias + relu + 2x2 maxpool (one kernel) ----
    p1 = phase_patches(_pad_hw(x), h // 2, w // 2, stride=2).astype(bf16)
    pooled1 = conv_stage(p1, _conv_w(params["conv1_w"]), params["conv1_b"],
                         phases=4, act="relu")                       # (C1, S*8*8)

    # ---- encoder stage 2: conv3x3 + bias + relu + 2x2 maxpool (one kernel) ----
    c1 = pooled1.shape[0]
    h1 = jnp.transpose(pooled1.reshape(c1, s, h // 2, w // 2), (1, 0, 2, 3))
    p2 = phase_patches(_pad_hw(h1), h // 4, w // 4, stride=2).astype(bf16)
    pooled2 = conv_stage(p2, _conv_w(params["conv2_w"]), params["conv2_b"],
                         phases=4, act="relu")                       # (C2, S*4*4)
    c2 = pooled2.shape[0]
    feats_in = jnp.transpose(pooled2.reshape(c2, s, h // 4, w // 4),
                             (1, 0, 2, 3)).reshape(s, -1)            # (S, C2*4*4)

    # ---- fc_cnn + full stacked LSTM + fc_emb + dec_fc: ONE fused kernel ----
    head_in = [feats_in.astype(bf16),
               jnp.transpose(params["fc_cnn_w"]).astype(bf16),
               params["fc_cnn_b"].reshape(1, -1)]
    for (w_ih, w_hh, b_ih, b_hh) in params["lstm"]:
        head_in += [jnp.transpose(w_ih).astype(bf16),
                    jnp.transpose(w_hh).astype(bf16),
                    (b_ih + b_hh).reshape(1, -1)]
    head_in += [jnp.transpose(params["fc_emb_w"]).astype(bf16),
                params["fc_emb_b"].reshape(1, -1),
                jnp.transpose(params["dec_fc_w"]).astype(bf16),
                params["dec_fc_b"].reshape(1, -1)]
    dec_dim = params["dec_fc_w"].shape[0]
    dec = pl.pallas_call(
        functools.partial(_lstm_head_kernel, seq_len=s, hidden=hid,
                          num_layers=num_layers),
        out_shape=jax.ShapeDtypeStruct((1, dec_dim), jnp.float32),
        in_specs=[VMEM_SPEC] * len(head_in),
        out_specs=VMEM_SPEC,
        scratch_shapes=[pltpu.VMEM((s, hid), jnp.float32)],
    )(*head_in)                                                       # (1, 256)

    # ---- DecoderSingle: fc -> upsample+conv(relu) -> upsample+conv(sigmoid) ----
    dc1_in = params["dec_conv1_w"].shape[1]
    d = dec.reshape(1, dc1_in, h // 4, w // 4)                        # (1,16,4,4)
    pd1 = phase_patches(_pad_hw(_upsample2x_nchw(d)), h // 2, w // 2,
                        stride=1).astype(bf16)
    d1 = conv_stage(pd1, _conv_w(params["dec_conv1_w"]), params["dec_conv1_b"],
                    phases=1, act="relu")                             # (8, 64)
    d1 = d1.reshape(1, d1.shape[0], h // 2, w // 2)
    pd2 = phase_patches(_pad_hw(_upsample2x_nchw(d1)), h, w,
                        stride=1).astype(bf16)
    out = conv_stage(pd2, _conv_w(params["dec_conv2_w"]), params["dec_conv2_b"],
                     phases=1, act="sigmoid")                         # (3, H*W)
    return out.reshape(1, out.shape[0], h, w)                        # NCHW


# ------------------------------ parameter init ------------------------------

def _init(key, shape, scale=0.05):
    return scale * jax.random.normal(key, shape, jnp.float32)


def init_params(key):
    # PyTorch-style layouts: Conv2d (C_out, C_in, kh, kw); Linear/LSTM (out, in);
    # LSTM has both b_ih and b_hh (summed at kernel-prep time).
    C_IN, C1, C2 = 3, 8, 16
    H = W = 16
    CNN_FEAT, HID, LSTM_LAYERS, EMB = 64, 32, 2, 32
    DEC_CH1, DEC_CH2 = 16, 8
    ks = jax.random.split(key, 20)
    p = {}
    p["conv1_w"] = _init(ks[0], (C1, C_IN, 3, 3)); p["conv1_b"] = _init(ks[1], (C1,))
    p["conv2_w"] = _init(ks[2], (C2, C1, 3, 3));   p["conv2_b"] = _init(ks[3], (C2,))
    p["fc_cnn_w"] = _init(ks[4], (CNN_FEAT, C2 * (H // 4) * (W // 4)))
    p["fc_cnn_b"] = _init(ks[5], (CNN_FEAT,))
    lstm = []
    for layer in range(LSTM_LAYERS):
        in_dim = CNN_FEAT if layer == 0 else HID
        k1, k2, k3, k4 = jax.random.split(ks[6 + layer], 4)
        lstm.append((_init(k1, (4 * HID, in_dim)), _init(k2, (4 * HID, HID)),
                     _init(k3, (4 * HID,)), _init(k4, (4 * HID,))))
    p["lstm"] = lstm
    p["fc_emb_w"] = _init(ks[10], (EMB, HID)); p["fc_emb_b"] = _init(ks[11], (EMB,))
    p["dec_fc_w"] = _init(ks[12], (DEC_CH1 * (H // 4) * (W // 4), EMB))
    p["dec_fc_b"] = _init(ks[13], (DEC_CH1 * (H // 4) * (W // 4),))
    p["dec_conv1_w"] = _init(ks[14], (DEC_CH2, DEC_CH1, 3, 3))
    p["dec_conv1_b"] = _init(ks[15], (DEC_CH2,))
    p["dec_conv2_w"] = _init(ks[16], (C_IN, DEC_CH2, 3, 3))
    p["dec_conv2_b"] = _init(ks[17], (C_IN,))
    return p


# ----------------------------------- main -----------------------------------

if __name__ == "__main__":
    SEQ_LENGTH = 7
    key = jax.random.PRNGKey(0)
    pkey, xkey = jax.random.split(key)
    params = init_params(pkey)
    # video tensor: (S, C, H, W), matching the PyTorch module's expected input.
    x = jax.random.normal(xkey, (SEQ_LENGTH, 3, 16, 16), jnp.float32)

    fwd = jax.jit(encoder_decoder_forward)
    out = fwd(params, x)
    jax.block_until_ready(out)

    assert out.shape == (1, 3, 16, 16), out.shape
    assert out.dtype == jnp.float32
    assert bool(jnp.all(jnp.isfinite(out)))
    print("KERNEL_OK")
</pallas_src>

<mosaic_0001>
module attributes {stable_mosaic.version = 11 : i64} {
  func.func @_conv_pool_act_kernel(%arg0: memref<4x27x448xbf16, #tpu.memory_space<vmem>>, %arg1: memref<8x27xbf16, #tpu.memory_space<vmem>>, %arg2: memref<8x1xf32, #tpu.memory_space<vmem>>, %arg3: memref<8x448xf32, #tpu.memory_space<vmem>>) attributes {dimension_semantics = [], scalar_prefetch = 0 : i64, scratch_operands = 0 : i64, tpu.core_type = #tpu.core_type<tc>} {
    %c0 = arith.constant 0 : index
    %c0_0 = arith.constant 0 : index
    %0 = vector.load %arg1[%c0, %c0_0] : memref<8x27xbf16, #tpu.memory_space<vmem>>, vector<8x27xbf16>
    %c0_1 = arith.constant 0 : index
    %c0_2 = arith.constant 0 : index
    %c0_3 = arith.constant 0 : index
    %1 = vector.load %arg0[%c0_1, %c0_2, %c0_3] : memref<4x27x448xbf16, #tpu.memory_space<vmem>>, vector<1x27x448xbf16>
    %2 = vector.shape_cast %1 : vector<1x27x448xbf16> to vector<27x448xbf16>
    %cst = arith.constant dense<0.000000e+00> : vector<8x448xf32>
    %3 = tpu.matmul %0, %2, %cst {dimension_numbers = #tpu.dot_dimension_numbers<[1], [0], [0], [1], [0, 0, 1, 1], [], []>} : vector<8x27xbf16>, vector<27x448xbf16>, vector<8x448xf32> -> vector<8x448xf32>
    %c1 = arith.constant 1 : index
    %c0_4 = arith.constant 0 : index
    %c0_5 = arith.constant 0 : index
    %4 = vector.load %arg0[%c1, %c0_4, %c0_5] : memref<4x27x448xbf16, #tpu.memory_space<vmem>>, vector<1x27x448xbf16>
    %5 = vector.shape_cast %4 : vector<1x27x448xbf16> to vector<27x448xbf16>
    %cst_6 = arith.constant dense<0.000000e+00> : vector<8x448xf32>
    %6 = tpu.matmul %0, %5, %cst_6 {dimension_numbers = #tpu.dot_dimension_numbers<[1], [0], [0], [1], [0, 0, 1, 1], [], []>} : vector<8x27xbf16>, vector<27x448xbf16>, vector<8x448xf32> -> vector<8x448xf32>
    %7 = arith.maximumf %3, %6 : vector<8x448xf32>
    %c2 = arith.constant 2 : index
    %c0_7 = arith.constant 0 : index
    %c0_8 = arith.constant 0 : index
    %8 = vector.load %arg0[%c2, %c0_7, %c0_8] : memref<4x27x448xbf16, #tpu.memory_space<vmem>>, vector<1x27x448xbf16>
    %9 = vector.shape_cast %8 : vector<1x27x448xbf16> to vector<27x448xbf16>
    %cst_9 = arith.constant dense<0.000000e+00> : vector<8x448xf32>
    %10 = tpu.matmul %0, %9, %cst_9 {dimension_numbers = #tpu.dot_dimension_numbers<[1], [0], [0], [1], [0, 0, 1, 1], [], []>} : vector<8x27xbf16>, vector<27x448xbf16>, vector<8x448xf32> -> vector<8x448xf32>
    %11 = arith.maximumf %7, %10 : vector<8x448xf32>
    %c3 = arith.constant 3 : index
    %c0_10 = arith.constant 0 : index
    %c0_11 = arith.constant 0 : index
    %12 = vector.load %arg0[%c3, %c0_10, %c0_11] : memref<4x27x448xbf16, #tpu.memory_space<vmem>>, vector<1x27x448xbf16>
    %13 = vector.shape_cast %12 : vector<1x27x448xbf16> to vector<27x448xbf16>
    %cst_12 = arith.constant dense<0.000000e+00> : vector<8x448xf32>
    %14 = tpu.matmul %0, %13, %cst_12 {dimension_numbers = #tpu.dot_dimension_numbers<[1], [0], [0], [1], [0, 0, 1, 1], [], []>} : vector<8x27xbf16>, vector<27x448xbf16>, vector<8x448xf32> -> vector<8x448xf32>
    %15 = arith.maximumf %11, %14 : vector<8x448xf32>
    %c0_13 = arith.constant 0 : index
    %c0_14 = arith.constant 0 : index
    %16 = vector.load %arg2[%c0_13, %c0_14] : memref<8x1xf32, #tpu.memory_space<vmem>>, vector<8x1xf32>
    %17 = vector.broadcast %16 : vector<8x1xf32> to vector<8x448xf32>
    %18 = arith.addf %15, %17 : vector<8x448xf32>
    %cst_15 = arith.constant 0.000000e+00 : f32
    %19 = vector.broadcast %cst_15 : f32 to vector<8x448xf32>
    %20 = arith.maximumf %18, %19 : vector<8x448xf32>
    %c0_16 = arith.constant 0 : index
    %c0_17 = arith.constant 0 : index
    %21 = vector.load %arg3[%c0_16, %c0_17] : memref<8x448xf32, #tpu.memory_space<vmem>>, vector<8x448xf32>
    tpu.vector_store %arg3[%c0_16, %c0_17], %20 {strides = array<i32>} : memref<8x448xf32, #tpu.memory_space<vmem>>, vector<8x448xf32>,
    return
  }
}

module attributes {stable_mosaic.version = 11 : i64} {
  func.func @_conv_pool_act_kernel(%arg0: memref<4x72x112xbf16, #tpu.memory_space<vmem>>, %arg1: memref<16x72xbf16, #tpu.memory_space<vmem>>, %arg2: memref<16x1xf32, #tpu.memory_space<vmem>>, %arg3: memref<16x112xf32, #tpu.memory_space<vmem>>) attributes {dimension_semantics = [], scalar_prefetch = 0 : i64, scratch_operands = 0 : i64, tpu.core_type = #tpu.core_type<tc>} {
    %c0 = arith.constant 0 : index
    %c0_0 = arith.constant 0 : index
    %0 = vector.load %arg1[%c0, %c0_0] : memref<16x72xbf16, #tpu.memory_space<vmem>>, vector<16x72xbf16>
    %c0_1 = arith.constant 0 : index
    %c0_2 = arith.constant 0 : index
    %c0_3 = arith.constant 0 : index
    %1 = vector.load %arg0[%c0_1, %c0_2, %c0_3] : memref<4x72x112xbf16, #tpu.memory_space<vmem>>, vector<1x72x112xbf16>
    %2 = vector.shape_cast %1 : vector<1x72x112xbf16> to vector<72x112xbf16>
    %cst = arith.constant dense<0.000000e+00> : vector<16x112xf32>
    %3 = tpu.matmul %0, %2, %cst {dimension_numbers = #tpu.dot_dimension_numbers<[1], [0], [0], [1], [0, 0, 1, 1], [], []>} : vector<16x72xbf16>, vector<72x112xbf16>, vector<16x112xf32> -> vector<16x112xf32>
    %c1 = arith.constant 1 : index
    %c0_4 = arith.constant 0 : index
    %c0_5 = arith.constant 0 : index
    %4 = vector.load %arg0[%c1, %c0_4, %c0_5] : memref<4x72x112xbf16, #tpu.memory_space<vmem>>, vector<1x72x112xbf16>
    %5 = vector.shape_cast %4 : vector<1x72x112xbf16> to vector<72x112xbf16>
    %cst_6 = arith.constant dense<0.000000e+00> : vector<16x112xf32>
    %6 = tpu.matmul %0, %5, %cst_6 {dimension_numbers = #tpu.dot_dimension_numbers<[1], [0], [0], [1], [0, 0, 1, 1], [], []>} : vector<16x72xbf16>, vector<72x112xbf16>, vector<16x112xf32> -> vector<16x112xf32>
    %7 = arith.maximumf %3, %6 : vector<16x112xf32>
    %c2 = arith.constant 2 : index
    %c0_7 = arith.constant 0 : index
    %c0_8 = arith.constant 0 : index
    %8 = vector.load %arg0[%c2, %c0_7, %c0_8] : memref<4x72x112xbf16, #tpu.memory_space<vmem>>, vector<1x72x112xbf16>
    %9 = vector.shape_cast %8 : vector<1x72x112xbf16> to vector<72x112xbf16>
    %cst_9 = arith.constant dense<0.000000e+00> : vector<16x112xf32>
    %10 = tpu.matmul %0, %9, %cst_9 {dimension_numbers = #tpu.dot_dimension_numbers<[1], [0], [0], [1], [0, 0, 1, 1], [], []>} : vector<16x72xbf16>, vector<72x112xbf16>, vector<16x112xf32> -> vector<16x112xf32>
    %11 = arith.maximumf %7, %10 : vector<16x112xf32>
    %c3 = arith.constant 3 : index
    %c0_10 = arith.constant 0 : index
    %c0_11 = arith.constant 0 : index
    %12 = vector.load %arg0[%c3, %c0_10, %c0_11] : memref<4x72x112xbf16, #tpu.memory_space<vmem>>, vector<1x72x112xbf16>
    %13 = vector.shape_cast %12 : vector<1x72x112xbf16> to vector<72x112xbf16>
    %cst_12 = arith.constant dense<0.000000e+00> : vector<16x112xf32>
    %14 = tpu.matmul %0, %13, %cst_12 {dimension_numbers = #tpu.dot_dimension_numbers<[1], [0], [0], [1], [0, 0, 1, 1], [], []>} : vector<16x72xbf16>, vector<72x112xbf16>, vector<16x112xf32> -> vector<16x112xf32>
    %15 = arith.maximumf %11, %14 : vector<16x112xf32>
    %c0_13 = arith.constant 0 : index
    %c0_14 = arith.constant 0 : index
    %16 = vector.load %arg2[%c0_13, %c0_14] : memref<16x1xf32, #tpu.memory_space<vmem>>, vector<16x1xf32>
    %17 = vector.broadcast %16 : vector<16x1xf32> to vector<16x112xf32>
    %18 = arith.addf %15, %17 : vector<16x112xf32>
    %cst_15 = arith.constant 0.000000e+00 : f32
    %19 = vector.broadcast %cst_15 : f32 to vector<16x112xf32>
    %20 = arith.maximumf %18, %19 : vector<16x112xf32>
    %c0_16 = arith.constant 0 : index
    %c0_17 = arith.constant 0 : index
    %21 = vector.load %arg3[%c0_16, %c0_17] : memref<16x112xf32, #tpu.memory_space<vmem>>, vector<16x112xf32>
    tpu.vector_store %arg3[%c0_16, %c0_17], %20 {strides = array<i32>} : memref<16x112xf32, #tpu.memory_space<vmem>>, vector<16x112xf32>,
    return
  }
}

module attributes {stable_mosaic.version = 11 : i64} {
  func.func @_lstm_head_kernel(%arg0: memref<7x256xbf16, #tpu.memory_space<vmem>>, %arg1: memref<256x64xbf16, #tpu.memory_space<vmem>>, %arg2: memref<1x64xf32, #tpu.memory_space<vmem>>, %arg3: memref<64x128xbf16, #tpu.memory_space<vmem>>, %arg4: memref<32x128xbf16, #tpu.memory_space<vmem>>, %arg5: memref<1x128xf32, #tpu.memory_space<vmem>>, %arg6: memref<32x128xbf16, #tpu.memory_space<vmem>>, %arg7: memref<32x128xbf16, #tpu.memory_space<vmem>>, %arg8: memref<1x128xf32, #tpu.memory_space<vmem>>, %arg9: memref<32x32xbf16, #tpu.memory_space<vmem>>, %arg10: memref<1x32xf32, #tpu.memory_space<vmem>>, %arg11: memref<32x256xbf16, #tpu.memory_space<vmem>>, %arg12: memref<1x256xf32, #tpu.memory_space<vmem>>, %arg13: memref<1x256xf32, #tpu.memory_space<vmem>>, %arg14: memref<7x32xf32, #tpu.memory_space<vmem>>) attributes {dimension_semantics = [], scalar_prefetch = 0 : i64, scratch_operands = 1 : i64, tpu.core_type = #tpu.core_type<tc>} {
    %c0 = arith.constant 0 : index
    %c0_0 = arith.constant 0 : index
    %0 = vector.load %arg0[%c0, %c0_0] : memref<7x256xbf16, #tpu.memory_space<vmem>>, vector<7x256xbf16>
    %c0_1 = arith.constant 0 : index
    %c0_2 = arith.constant 0 : index
    %1 = vector.load %arg1[%c0_1, %c0_2] : memref<256x64xbf16, #tpu.memory_space<vmem>>, vector<256x64xbf16>
    %cst = arith.constant dense<0.000000e+00> : vector<7x64xf32>
    %2 = tpu.matmul %0, %1, %cst {dimension_numbers = #tpu.dot_dimension_numbers<[1], [0], [0], [1], [0, 0, 1, 1], [], []>} : vector<7x256xbf16>, vector<256x64xbf16>, vector<7x64xf32> -> vector<7x64xf32>
    %c0_3 = arith.constant 0 : index
    %c0_4 = arith.constant 0 : index
    %3 = vector.load %arg2[%c0_3, %c0_4] : memref<1x64xf32, #tpu.memory_space<vmem>>, vector<1x64xf32>
    %4 = vector.broadcast %3 : vector<1x64xf32> to vector<7x64xf32>
    %5 = arith.addf %2, %4 : vector<7x64xf32>
    %cst_5 = arith.constant 0.000000e+00 : f32
    %6 = vector.broadcast %cst_5 : f32 to vector<7x64xf32>
    %7 = arith.maximumf %5, %6 : vector<7x64xf32>
    %8 = arith.truncf %7 : vector<7x64xf32> to vector<7x64xbf16>
    %c0_6 = arith.constant 0 : index
    %c0_7 = arith.constant 0 : index
    %9 = vector.load %arg3[%c0_6, %c0_7] : memref<64x128xbf16, #tpu.memory_space<vmem>>, vector<64x128xbf16>
    %cst_8 = arith.constant dense<0.000000e+00> : vector<7x128xf32>
    %10 = tpu.matmul %8, %9, %cst_8 {dimension_numbers = #tpu.dot_dimension_numbers<[1], [0], [0], [1], [0, 0, 1, 1], [], []>} : vector<7x64xbf16>, vector<64x128xbf16>, vector<7x128xf32> -> vector<7x128xf32>
    %c0_9 = arith.constant 0 : index
    %c0_10 = arith.constant 0 : index
    %11 = vector.load %arg5[%c0_9, %c0_10] : memref<1x128xf32, #tpu.memory_space<vmem>>, vector<1x128xf32>
    %12 = vector.broadcast %11 : vector<1x128xf32> to vector<7x128xf32>
    %13 = arith.addf %10, %12 : vector<7x128xf32>
    %cst_11 = arith.constant 0.000000e+00 : f32
    %14 = vector.broadcast %cst_11 : f32 to vector<1x32xf32>
    %cst_12 = arith.constant 0.000000e+00 : f32
    %15 = vector.broadcast %cst_12 : f32 to vector<1x32xf32>
    %16 = vector.extract_strided_slice %13 {offsets = [0, 0], sizes = [1, 128], strides = [1, 1]} : vector<7x128xf32> to vector<1x128xf32>
    %17 = arith.truncf %14 : vector<1x32xf32> to vector<1x32xbf16>
    %c0_13 = arith.constant 0 : index
    %c0_14 = arith.constant 0 : index
    %18 = vector.load %arg4[%c0_13, %c0_14] : memref<32x128xbf16, #tpu.memory_space<vmem>>, vector<32x128xbf16>
    %cst_15 = arith.constant dense<0.000000e+00> : vector<1x128xf32>
    %19 = tpu.matmul %17, %18, %cst_15 {dimension_numbers = #tpu.dot_dimension_numbers<[1], [0], [0], [1], [0, 0, 1, 1], [], []>} : vector<1x32xbf16>, vector<32x128xbf16>, vector<1x128xf32> -> vector<1x128xf32>
    %20 = arith.addf %16, %19 : vector<1x128xf32>
    %21 = vector.extract_strided_slice %20 {offsets = [0, 0], sizes = [1, 32], strides = [1, 1]} : vector<1x128xf32> to vector<1x32xf32>
    %22 = arith.negf %21 : vector<1x32xf32>
    %23 = math.exp %22 : vector<1x32xf32>
    %cst_16 = arith.constant 1.000000e+00 : f32
    %24 = vector.broadcast %cst_16 : f32 to vector<1x32xf32>
    %25 = arith.addf %24, %23 : vector<1x32xf32>
    %26 = arith.divf %24, %25 : vector<1x32xf32>
    %27 = vector.extract_strided_slice %20 {offsets = [0, 32], sizes = [1, 32], strides = [1, 1]} : vector<1x128xf32> to vector<1x32xf32>
    %28 = arith.negf %27 : vector<1x32xf32>
    %29 = math.exp %28 : vector<1x32xf32>
    %cst_17 = arith.constant 1.000000e+00 : f32
    %30 = vector.broadcast %cst_17 : f32 to vector<1x32xf32>
    %31 = arith.addf %30, %29 : vector<1x32xf32>
    %32 = arith.divf %30, %31 : vector<1x32xf32>
    %33 = vector.extract_strided_slice %20 {offsets = [0, 64], sizes = [1, 32], strides = [1, 1]} : vector<1x128xf32> to vector<1x32xf32>
    %34 = math.tanh %33 : vector<1x32xf32>
    %35 = vector.extract_strided_slice %20 {offsets = [0, 96], sizes = [1, 32], strides = [1, 1]} : vector<1x128xf32> to vector<1x32xf32>
    %36 = arith.negf %35 : vector<1x32xf32>
    %37 = math.exp %36 : vector<1x32xf32>
    %cst_18 = arith.constant 1.000000e+00 : f32
    %38 = vector.broadcast %cst_18 : f32 to vector<1x32xf32>
    %39 = arith.addf %38, %37 : vector<1x32xf32>
    %40 = arith.divf %38, %39 : vector<1x32xf32>
    %41 = arith.mulf %32, %15 : vector<1x32xf32>
    %42 = arith.mulf %26, %34 : vector<1x32xf32>
    %43 = arith.addf %41, %42 : vector<1x32xf32>
    %44 = math.tanh %43 : vector<1x32xf32>
    %45 = arith.mulf %40, %44 : vector<1x32xf32>
    %c0_19 = arith.constant 0 : index
    %c0_20 = arith.constant 0 : index
    %46 = vector.load %arg14[%c0_19, %c0_20] : memref<7x32xf32, #tpu.memory_space<vmem>>, vector<1x32xf32>
    tpu.vector_store %arg14[%c0_19, %c0_20], %45 {strides = array<i32>} : memref<7x32xf32, #tpu.memory_space<vmem>>, vector<1x32xf32>,
    %47 = vector.extract_strided_slice %13 {offsets = [1, 0], sizes = [1, 128], strides = [1, 1]} : vector<7x128xf32> to vector<1x128xf32>
    %48 = arith.truncf %45 : vector<1x32xf32> to vector<1x32xbf16>
    %c0_21 = arith.constant 0 : index
    %c0_22 = arith.constant 0 : index
    %49 = vector.load %arg4[%c0_21, %c0_22] : memref<32x128xbf16, #tpu.memory_space<vmem>>, vector<32x128xbf16>
    %cst_23 = arith.constant dense<0.000000e+00> : vector<1x128xf32>
    %50 = tpu.matmul %48, %49, %cst_23 {dimension_numbers = #tpu.dot_dimension_numbers<[1], [0], [0], [1], [0, 0, 1, 1], [], []>} : vector<1x32xbf16>, vector<32x128xbf16>, vector<1x128xf32> -> vector<1x128xf32>
    %51 = arith.addf %47, %50 : vector<1x128xf32>
    %52 = vector.extract_strided_slice %51 {offsets = [0, 0], sizes = [1, 32], strides = [1, 1]} : vector<1x128xf32> to vector<1x32xf32>
    %53 = arith.negf %52 : vector<1x32xf32>
    %54 = math.exp %53 : vector<1x32xf32>
    %cst_24 = arith.constant 1.000000e+00 : f32
    %55 = vector.broadcast %cst_24 : f32 to vector<1x32xf32>
    %56 = arith.addf %55, %54 : vector<1x32xf32>
    %57 = arith.divf %55, %56 : vector<1x32xf32>
    %58 = vector.extract_strided_slice %51 {offsets = [0, 32], sizes = [1, 32], strides = [1, 1]} : vector<1x128xf32> to vector<1x32xf32>
    %59 = arith.negf %58 : vector<1x32xf32>
    %60 = math.exp %59 : vector<1x32xf32>
    %cst_25 = arith.constant 1.000000e+00 : f32
    %61 = vector.broadcast %cst_25 : f32 to vector<1x32xf32>
    %62 = arith.addf %61, %60 : vector<1x32xf32>
    %63 = arith.divf %61, %62 : vector<1x32xf32>
    %64 = vector.extract_strided_slice %51 {offsets = [0, 64], sizes = [1, 32], strides = [1, 1]} : vector<1x128xf32> to vector<1x32xf32>
    %65 = math.tanh %64 : vector<1x32xf32>
    %66 = vector.extract_strided_slice %51 {offsets = [0, 96], sizes = [1, 32], strides = [1, 1]} : vector<1x128xf32> to vector<1x32xf32>
    %67 = arith.negf %66 : vector<1x32xf32>
    %68 = math.exp %67 : vector<1x32xf32>
    %cst_26 = arith.constant 1.000000e+00 : f32
    %69 = vector.broadcast %cst_26 : f32 to vector<1x32xf32>
    %70 = arith.addf %69, %68 : vector<1x32xf32>
    %71 = arith.divf %69, %70 : vector<1x32xf32>
    %72 = arith.mulf %63, %43 : vector<1x32xf32>
    %73 = arith.mulf %57, %65 : vector<1x32xf32>
    %74 = arith.addf %72, %73 : vector<1x32xf32>
    %75 = math.tanh %74 : vector<1x32xf32>
    %76 = arith.mulf %71, %75 : vector<1x32xf32>
    %c1 = arith.constant 1 : index
    %c0_27 = arith.constant 0 : index
    %77 = vector.load %arg14[%c1, %c0_27] : memref<7x32xf32, #tpu.memory_space<vmem>>, vector<1x32xf32>
    tpu.vector_store %arg14[%c1, %c0_27], %76 {strides = array<i32>} : memref<7x32xf32, #tpu.memory_space<vmem>>, vector<1x32xf32>,
    %78 = vector.extract_strided_slice %13 {offsets = [2, 0], sizes = [1, 128], strides = [1, 1]} : vector<7x128xf32> to vector<1x128xf32>
    %79 = arith.truncf %76 : vector<1x32xf32> to vector<1x32xbf16>
    %c0_28 = arith.constant 0 : index
    %c0_29 = arith.constant 0 : index
    %80 = vector.load %arg4[%c0_28, %c0_29] : memref<32x128xbf16, #tpu.memory_space<vmem>>, vector<32x128xbf16>
    %cst_30 = arith.constant dense<0.000000e+00> : vector<1x128xf32>
    %81 = tpu.matmul %79, %80, %cst_30 {dimension_numbers = #tpu.dot_dimension_numbers<[1], [0], [0], [1], [0, 0, 1, 1], [], []>} : vector<1x32xbf16>, vector<32x128xbf16>, vector<1x128xf32> -> vector<1x128xf32>
    %82 = arith.addf %78, %81 : vector<1x128xf32>
    %83 = vector.extract_strided_slice %82 {offsets = [0, 0], sizes = [1, 32], strides = [1, 1]} : vector<1x128xf32> to vector<1x32xf32>
    %84 = arith.negf %83 : vector<1x32xf32>
    %85 = math.exp %84 : vector<1x32xf32>
    %cst_31 = arith.constant 1.000000e+00 : f32
    %86 = vector.broadcast %cst_31 : f32 to vector<1x32xf32>
    %87 = arith.addf %86, %85 : vector<1x32xf32>
    %88 = arith.divf %86, %87 : vector<1x32xf32>
    %89 = vector.extract_strided_slice %82 {offsets = [0, 32], sizes = [1, 32], strides = [1, 1]} : vector<1x128xf32> to vector<1x32xf32>
    %90 = arith.negf %89 : vector<1x32xf32>
    %91 = math.exp %90 : vector<1x32xf32>
    %cst_32 = arith.constant 1.000000e+00 : f32
    %92 = vector.broadcast %cst_32 : f32 to vector<1x32xf32>
    %93 = arith.addf %92, %91 : vector<1x32xf32>
    %94 = arith.divf %92, %93 : vector<1x32xf32>
    %95 = vector.extract_strided_slice %82 {offsets = [0, 64], sizes = [1, 32], strides = [1, 1]} : vector<1x128xf32> to vector<1x32xf32>
    %96 = math.tanh %95 : vector<1x32xf32>
    %97 = vector.extract_strided_slice %82 {offsets = [0, 96], sizes = [1, 32], strides = [1, 1]} : vector<1x128xf32> to vector<1x32xf32>
    %98 = arith.negf %97 : vector<1x32xf32>
    %99 = math.exp %98 : vector<1x32xf32>
    %cst_33 = arith.constant 1.000000e+00 : f32
    %100 = vector.broadcast %cst_33 : f32 to vector<1x32xf32>
    %101 = arith.addf %100, %99 : vector<1x32xf32>
    %102 = arith.divf %100, %101 : vector<1x32xf32>
    %103 = arith.mulf %94, %74 : vector<1x32xf32>
    %104 = arith.mulf %88, %96 : vector<1x32xf32>
    %105 = arith.addf %103, %104 : vector<1x32xf32>
    %106 = math.tanh %105 : vector<1x32xf32>
    %107 = arith.mulf %102, %106 : vector<1x32xf32>
    %c2 = arith.constant 2 : index
    %c0_34 = arith.constant 0 : index
    %108 = vector.load %arg14[%c2, %c0_34] : memref<7x32xf32, #tpu.memory_space<vmem>>, vector<1x32xf32>
    tpu.vector_store %arg14[%c2, %c0_34], %107 {strides = array<i32>} : memref<7x32xf32, #tpu.memory_space<vmem>>, vector<1x32xf32>,
    %109 = vector.extract_strided_slice %13 {offsets = [3, 0], sizes = [1, 128], strides = [1, 1]} : vector<7x128xf32> to vector<1x128xf32>
    %110 = arith.truncf %107 : vector<1x32xf32> to vector<1x32xbf16>
    %c0_35 = arith.constant 0 : index
    %c0_36 = arith.constant 0 : index
    %111 = vector.load %arg4[%c0_35, %c0_36] : memref<32x128xbf16, #tpu.memory_space<vmem>>, vector<32x128xbf16>
    %cst_37 = arith.constant dense<0.000000e+00> : vector<1x128xf32>
    %112 = tpu.matmul %110, %111, %cst_37 {dimension_numbers = #tpu.dot_dimension_numbers<[1], [0], [0], [1], [0, 0, 1, 1], [], []>} : vector<1x32xbf16>, vector<32x128xbf16>, vector<1x128xf32> -> vector<1x128xf32>
    %113 = arith.addf %109, %112 : vector<1x128xf32>
    %114 = vector.extract_strided_slice %113 {offsets = [0, 0], sizes = [1, 32], strides = [1, 1]} : vector<1x128xf32> to vector<1x32xf32>
    %115 = arith.negf %114 : vector<1x32xf32>
    %116 = math.exp %115 : vector<1x32xf32>
    %cst_38 = arith.constant 1.000000e+00 : f32
    %117 = vector.broadcast %cst_38 : f32 to vector<1x32xf32>
    %118 = arith.addf %117, %116 : vector<1x32xf32>
    %119 = arith.divf %117, %118 : vector<1x32xf32>
    %120 = vector.extract_strided_slice %113 {offsets = [0, 32], sizes = [1, 32], strides = [1, 1]} : vector<1x128xf32> to vector<1x32xf32>
    %121 = arith.negf %120 : vector<1x32xf32>
    %122 = math.exp %121 : vector<1x32xf32>
    %cst_39 = arith.constant 1.000000e+00 : f32
    %123 = vector.broadcast %cst_39 : f32 to vector<1x32xf32>
    %124 = arith.addf %123, %122 : vector<1x32xf32>
    %125 = arith.divf %123, %124 : vector<1x32xf32>
    %126 = vector.extract_strided_slice %113 {offsets = [0, 64], sizes = [1, 32], strides = [1, 1]} : vector<1x128xf32> to vector<1x32xf32>
    %127 = math.tanh %126 : vector<1x32xf32>
    %128 = vector.extract_strided_slice %113 {offsets = [0, 96], sizes = [1, 32], strides = [1, 1]} : vector<1x128xf32> to vector<1x32xf32>
    %129 = arith.negf %128 : vector<1x32xf32>
    %130 = math.exp %129 : vector<1x32xf32>
    %cst_40 = arith.constant 1.000000e+00 : f32
    %131 = vector.broadcast %cst_40 : f32 to vector<1x32xf32>
    %132 = arith.addf %131, %130 : vector<1x32xf32>
    %133 = arith.divf %131, %132 : vector<1x32xf32>
    %134 = arith.mulf %125, %105 : vector<1x32xf32>
    %135 = arith.mulf %119, %127 : vector<1x32xf32>
    %136 = arith.addf %134, %135 : vector<1x32xf32>
    %137 = math.tanh %136 : vector<1x32xf32>
    %138 = arith.mulf %133, %137 : vector<1x32xf32>
    %c3 = arith.constant 3 : index
    %c0_41 = arith.constant 0 : index
    %139 = vector.load %arg14[%c3, %c0_41] : memref<7x32xf32, #tpu.memory_space<vmem>>, vector<1x32xf32>
    tpu.vector_store %arg14[%c3, %c0_41], %138 {strides = array<i32>} : memref<7x32xf32, #tpu.memory_space<vmem>>, vector<1x32xf32>,
    %140 = vector.extract_strided_slice %13 {offsets = [4, 0], sizes = [1, 128], strides = [1, 1]} : vector<7x128xf32> to vector<1x128xf32>
    %141 = arith.truncf %138 : vector<1x32xf32> to vector<1x32xbf16>
    %c0_42 = arith.constant 0 : index
    %c0_43 = arith.constant 0 : index
    %142 = vector.load %arg4[%c0_42, %c0_43] : memref<32x128xbf16, #tpu.memory_space<vmem>>, vector<32x128xbf16>
    %cst_44 = arith.constant dense<0.000000e+00> : vector<1x128xf32>
    %143 = tpu.matmul %141, %142, %cst_44 {dimension_numbers = #tpu.dot_dimension_numbers<[1], [0], [0], [1], [0, 0, 1, 1], [], []>} : vector<1x32xbf16>, vector<32x128xbf16>, vector<1x128xf32> -> vector<1x128xf32>
    %144 = arith.addf %140, %143 : vector<1x128xf32>
    %145 = vector.extract_strided_slice %144 {offsets = [0, 0], sizes = [1, 32], strides = [1, 1]} : vector<1x128xf32> to vector<1x32xf32>
    %146 = arith.negf %145 : vector<1x32xf32>
    %147 = math.exp %146 : vector<1x32xf32>
    %cst_45 = arith.constant 1.000000e+00 : f32
    %148 = vector.broadcast %cst_45 : f32 to vector<1x32xf32>
    %149 = arith.addf %148, %147 : vector<1x32xf32>
    %150 = arith.divf %148, %149 : vector<1x32xf32>
    %151 = vector.extract_strided_slice %144 {offsets = [0, 32], sizes = [1, 32], strides = [1, 1]} : vector<1x128xf32> to vector<1x32xf32>
    %152 = arith.negf %151 : vector<1x32xf32>
    %153 = math.exp %152 : vector<1x32xf32>
    %cst_46 = arith.constant 1.000000e+00 : f32
    %154 = vector.broadcast %cst_46 : f32 to vector<1x32xf32>
    %155 = arith.addf %154, %153 : vector<1x32xf32>
    %156 = arith.divf %154, %155 : vector<1x32xf32>
    %157 = vector.extract_strided_slice %144 {offsets = [0, 64], sizes = [1, 32], strides = [1, 1]} : vector<1x128xf32> to vector<1x32xf32>
    %158 = math.tanh %157 : vector<1x32xf32>
    %159 = vector.extract_strided_slice %144 {offsets = [0, 96], sizes = [1, 32], strides = [1, 1]} : vector<1x128xf32> to vector<1x32xf32>
    %160 = arith.negf %159 : vector<1x32xf32>
    %161 = math.exp %160 : vector<1x32xf32>
    %cst_47 = arith.constant 1.000000e+00 : f32
    %162 = vector.broadcast %cst_47 : f32 to vector<1x32xf32>
    %163 = arith.addf %162, %161 : vector<1x32xf32>
    %164 = arith.divf %162, %163 : vector<1x32xf32>
    %165 = arith.mulf %156, %136 : vector<1x32xf32>
    %166 = arith.mulf %150, %158 : vector<1x32xf32>
    %167 = arith.addf %165, %166 : vector<1x32xf32>
    %168 = math.tanh %167 : vector<1x32xf32>
    %169 = arith.mulf %164, %168 : vector<1x32xf32>
    %c4 = arith.constant 4 : index
    %c0_48 = arith.constant 0 : index
    %170 = vector.load %arg14[%c4, %c0_48] : memref<7x32xf32, #tpu.memory_space<vmem>>, vector<1x32xf32>
    tpu.vector_store %arg14[%c4, %c0_48], %169 {strides = array<i32>} : memref<7x32xf32, #tpu.memory_space<vmem>>, vector<1x32xf32>,
    %171 = vector.extract_strided_slice %13 {offsets = [5, 0], sizes = [1, 128], strides = [1, 1]} : vector<7x128xf32> to vector<1x128xf32>
    %172 = arith.truncf %169 : vector<1x32xf32> to vector<1x32xbf16>
    %c0_49 = arith.constant 0 : index
    %c0_50 = arith.constant 0 : index
    %173 = vector.load %arg4[%c0_49, %c0_50] : memref<32x128xbf16, #tpu.memory_space<vmem>>, vector<32x128xbf16>
    %cst_51 = arith.constant dense<0.000000e+00> : vector<1x128xf32>
    %174 = tpu.matmul %172, %173, %cst_51 {dimension_numbers = #tpu.dot_dimension_numbers<[1], [0], [0], [1], [0, 0, 1, 1], [], []>} : vector<1x32xbf16>, vector<32x128xbf16>, vector<1x128xf32> -> vector<1x128xf32>
    %175 = arith.addf %171, %174 : vector<1x128xf32>
    %176 = vector.extract_strided_slice %175 {offsets = [0, 0], sizes = [1, 32], strides = [1, 1]} : vector<1x128xf32> to vector<1x32xf32>
    %177 = arith.negf %176 : vector<1x32xf32>
    %178 = math.exp %177 : vector<1x32xf32>
    %cst_52 = arith.constant 1.000000e+00 : f32
    %179 = vector.broadcast %cst_52 : f32 to vector<1x32xf32>
    %180 = arith.addf %179, %178 : vector<1x32xf32>
    %181 = arith.divf %179, %180 : vector<1x32xf32>
    %182 = vector.extract_strided_slice %175 {offsets = [0, 32], sizes = [1, 32], strides = [1, 1]} : vector<1x128xf32> to vector<1x32xf32>
    %183 = arith.negf %182 : vector<1x32xf32>
    %184 = math.exp %183 : vector<1x32xf32>
    %cst_53 = arith.constant 1.000000e+00 : f32
    %185 = vector.broadcast %cst_53 : f32 to vector<1x32xf32>
    %186 = arith.addf %185, %184 : vector<1x32xf32>
    %187 = arith.divf %185, %186 : vector<1x32xf32>
    %188 = vector.extract_strided_slice %175 {offsets = [0, 64], sizes = [1, 32], strides = [1, 1]} : vector<1x128xf32> to vector<1x32xf32>
    %189 = math.tanh %188 : vector<1x32xf32>
    %190 = vector.extract_strided_slice %175 {offsets = [0, 96], sizes = [1, 32], strides = [1, 1]} : vector<1x128xf32> to vector<1x32xf32>
    %191 = arith.negf %190 : vector<1x32xf32>
    %192 = math.exp %191 : vector<1x32xf32>
    %cst_54 = arith.constant 1.000000e+00 : f32
    %193 = vector.broadcast %cst_54 : f32 to vector<1x32xf32>
    %194 = arith.addf %193, %192 : vector<1x32xf32>
    %195 = arith.divf %193, %194 : vector<1x32xf32>
    %196 = arith.mulf %187, %167 : vector<1x32xf32>
    %197 = arith.mulf %181, %189 : vector<1x32xf32>
    %198 = arith.addf %196, %197 : vector<1x32xf32>
    %199 = math.tanh %198 : vector<1x32xf32>
    %200 = arith.mulf %195, %199 : vector<1x32xf32>
    %c5 = arith.constant 5 : index
    %c0_55 = arith.constant 0 : index
    %201 = vector.load %arg14[%c5, %c0_55] : memref<7x32xf32, #tpu.memory_space<vmem>>, vector<1x32xf32>
    tpu.vector_store %arg14[%c5, %c0_55], %200 {strides = array<i32>} : memref<7x32xf32, #tpu.memory_space<vmem>>, vector<1x32xf32>,
    %202 = vector.extract_strided_slice %13 {offsets = [6, 0], sizes = [1, 128], strides = [1, 1]} : vector<7x128xf32> to vector<1x128xf32>
    %203 = arith.truncf %200 : vector<1x32xf32> to vector<1x32xbf16>
    %c0_56 = arith.constant 0 : index
    %c0_57 = arith.constant 0 : index
    %204 = vector.load %arg4[%c0_56, %c0_57] : memref<32x128xbf16, #tpu.memory_space<vmem>>, vector<32x128xbf16>
    %cst_58 = arith.constant dense<0.000000e+00> : vector<1x128xf32>
    %205 = tpu.matmul %203, %204, %cst_58 {dimension_numbers = #tpu.dot_dimension_numbers<[1], [0], [0], [1], [0, 0, 1, 1], [], []>} : vector<1x32xbf16>, vector<32x128xbf16>, vector<1x128xf32> -> vector<1x128xf32>
    %206 = arith.addf %202, %205 : vector<1x128xf32>
    %207 = vector.extract_strided_slice %206 {offsets = [0, 0], sizes = [1, 32], strides = [1, 1]} : vector<1x128xf32> to vector<1x32xf32>
    %208 = arith.negf %207 : vector<1x32xf32>
    %209 = math.exp %208 : vector<1x32xf32>
    %cst_59 = arith.constant 1.000000e+00 : f32
    %210 = vector.broadcast %cst_59 : f32 to vector<1x32xf32>
    %211 = arith.addf %210, %209 : vector<1x32xf32>
    %212 = arith.divf %210, %211 : vector<1x32xf32>
    %213 = vector.extract_strided_slice %206 {offsets = [0, 32], sizes = [1, 32], strides = [1, 1]} : vector<1x128xf32> to vector<1x32xf32>
    %214 = arith.negf %213 : vector<1x32xf32>
    %215 = math.exp %214 : vector<1x32xf32>
    %cst_60 = arith.constant 1.000000e+00 : f32
    %216 = vector.broadcast %cst_60 : f32 to vector<1x32xf32>
    %217 = arith.addf %216, %215 : vector<1x32xf32>
    %218 = arith.divf %216, %217 : vector<1x32xf32>
    %219 = vector.extract_strided_slice %206 {offsets = [0, 64], sizes = [1, 32], strides = [1, 1]} : vector<1x128xf32> to vector<1x32xf32>
    %220 = math.tanh %219 : vector<1x32xf32>
    %221 = vector.extract_strided_slice %206 {offsets = [0, 96], sizes = [1, 32], strides = [1, 1]} : vector<1x128xf32> to vector<1x32xf32>
    %222 = arith.negf %221 : vector<1x32xf32>
    %223 = math.exp %222 : vector<1x32xf32>
    %cst_61 = arith.constant 1.000000e+00 : f32
    %224 = vector.broadcast %cst_61 : f32 to vector<1x32xf32>
    %225 = arith.addf %224, %223 : vector<1x32xf32>
    %226 = arith.divf %224, %225 : vector<1x32xf32>
    %227 = arith.mulf %218, %198 : vector<1x32xf32>
    %228 = arith.mulf %212, %220 : vector<1x32xf32>
    %229 = arith.addf %227, %228 : vector<1x32xf32>
    %230 = math.tanh %229 : vector<1x32xf32>
    %231 = arith.mulf %226, %230 : vector<1x32xf32>
    %c6 = arith.constant 6 : index
    %c0_62 = arith.constant 0 : index
    %232 = vector.load %arg14[%c6, %c0_62] : memref<7x32xf32, #tpu.memory_space<vmem>>, vector<1x32xf32>
    tpu.vector_store %arg14[%c6, %c0_62], %231 {strides = array<i32>} : memref<7x32xf32, #tpu.memory_space<vmem>>, vector<1x32xf32>,
    %c0_63 = arith.constant 0 : index
    %c0_64 = arith.constant 0 : index
    %233 = vector.load %arg14[%c0_63, %c0_64] : memref<7x32xf32, #tpu.memory_space<vmem>>, vector<7x32xf32>
    %234 = arith.truncf %233 : vector<7x32xf32> to vector<7x32xbf16>
    %c0_65 = arith.constant 0 : index
    %c0_66 = arith.constant 0 : index
    %235 = vector.load %arg6[%c0_65, %c0_66] : memref<32x128xbf16, #tpu.memory_space<vmem>>, vector<32x128xbf16>
    %cst_67 = arith.constant dense<0.000000e+00> : vector<7x128xf32>
    %236 = tpu.matmul %234, %235, %cst_67 {dimension_numbers = #tpu.dot_dimension_numbers<[1], [0], [0], [1], [0, 0, 1, 1], [], []>} : vector<7x32xbf16>, vector<32x128xbf16>, vector<7x128xf32> -> vector<7x128xf32>
    %c0_68 = arith.constant 0 : index
    %c0_69 = arith.constant 0 : index
    %237 = vector.load %arg8[%c0_68, %c0_69] : memref<1x128xf32, #tpu.memory_space<vmem>>, vector<1x128xf32>
    %238 = vector.broadcast %237 : vector<1x128xf32> to vector<7x128xf32>
    %239 = arith.addf %236, %238 : vector<7x128xf32>
    %cst_70 = arith.constant 0.000000e+00 : f32
    %240 = vector.broadcast %cst_70 : f32 to vector<1x32xf32>
    %cst_71 = arith.constant 0.000000e+00 : f32
    %241 = vector.broadcast %cst_71 : f32 to vector<1x32xf32>
    %242 = vector.extract_strided_slice %239 {offsets = [0, 0], sizes = [1, 128], strides = [1, 1]} : vector<7x128xf32> to vector<1x128xf32>
    %243 = arith.truncf %240 : vector<1x32xf32> to vector<1x32xbf16>
    %c0_72 = arith.constant 0 : index
    %c0_73 = arith.constant 0 : index
    %244 = vector.load %arg7[%c0_72, %c0_73] : memref<32x128xbf16, #tpu.memory_space<vmem>>, vector<32x128xbf16>
    %cst_74 = arith.constant dense<0.000000e+00> : vector<1x128xf32>
    %245 = tpu.matmul %243, %244, %cst_74 {dimension_numbers = #tpu.dot_dimension_numbers<[1], [0], [0], [1], [0, 0, 1, 1], [], []>} : vector<1x32xbf16>, vector<32x128xbf16>, vector<1x128xf32> -> vector<1x128xf32>
    %246 = arith.addf %242, %245 : vector<1x128xf32>
    %247 = vector.extract_strided_slice %246 {offsets = [0, 0], sizes = [1, 32], strides = [1, 1]} : vector<1x128xf32> to vector<1x32xf32>
    %248 = arith.negf %247 : vector<1x32xf32>
    %249 = math.exp %248 : vector<1x32xf32>
    %cst_75 = arith.constant 1.000000e+00 : f32
    %250 = vector.broadcast %cst_75 : f32 to vector<1x32xf32>
    %251 = arith.addf %250, %249 : vector<1x32xf32>
    %252 = arith.divf %250, %251 : vector<1x32xf32>
    %253 = vector.extract_strided_slice %246 {offsets = [0, 32], sizes = [1, 32], strides = [1, 1]} : vector<1x128xf32> to vector<1x32xf32>
    %254 = arith.negf %253 : vector<1x32xf32>
    %255 = math.exp %254 : vector<1x32xf32>
    %cst_76 = arith.constant 1.000000e+00 : f32
    %256 = vector.broadcast %cst_76 : f32 to vector<1x32xf32>
    %257 = arith.addf %256, %255 : vector<1x32xf32>
    %258 = arith.divf %256, %257 : vector<1x32xf32>
    %259 = vector.extract_strided_slice %246 {offsets = [0, 64], sizes = [1, 32], strides = [1, 1]} : vector<1x128xf32> to vector<1x32xf32>
    %260 = math.tanh %259 : vector<1x32xf32>
    %261 = vector.extract_strided_slice %246 {offsets = [0, 96], sizes = [1, 32], strides = [1, 1]} : vector<1x128xf32> to vector<1x32xf32>
    %262 = arith.negf %261 : vector<1x32xf32>
    %263 = math.exp %262 : vector<1x32xf32>
    %cst_77 = arith.constant 1.000000e+00 : f32
    %264 = vector.broadcast %cst_77 : f32 to vector<1x32xf32>
    %265 = arith.addf %264, %263 : vector<1x32xf32>
    %266 = arith.divf %264, %265 : vector<1x32xf32>
    %267 = arith.mulf %258, %241 : vector<1x32xf32>
    %268 = arith.mulf %252, %260 : vector<1x32xf32>
    %269 = arith.addf %267, %268 : vector<1x32xf32>
    %270 = math.tanh %269 : vector<1x32xf32>
    %271 = arith.mulf %266, %270 : vector<1x32xf32>
    %272 = vector.extract_strided_slice %239 {offsets = [1, 0], sizes = [1, 128], strides = [1, 1]} : vector<7x128xf32> to vector<1x128xf32>
    %273 = arith.truncf %271 : vector<1x32xf32> to vector<1x32xbf16>
    %c0_78 = arith.constant 0 : index
    %c0_79 = arith.constant 0 : index
    %274 = vector.load %arg7[%c0_78, %c0_79] : memref<32x128xbf16, #tpu.memory_space<vmem>>, vector<32x128xbf16>
    %cst_80 = arith.constant dense<0.000000e+00> : vector<1x128xf32>
    %275 = tpu.matmul %273, %274, %cst_80 {dimension_numbers = #tpu.dot_dimension_numbers<[1], [0], [0], [1], [0, 0, 1, 1], [], []>} : vector<1x32xbf16>, vector<32x128xbf16>, vector<1x128xf32> -> vector<1x128xf32>
    %276 = arith.addf %272, %275 : vector<1x128xf32>
    %277 = vector.extract_strided_slice %276 {offsets = [0, 0], sizes = [1, 32], strides = [1, 1]} : vector<1x128xf32> to vector<1x32xf32>
    %278 = arith.negf %277 : vector<1x32xf32>
    %279 = math.exp %278 : vector<1x32xf32>
    %cst_81 = arith.constant 1.000000e+00 : f32
    %280 = vector.broadcast %cst_81 : f32 to vector<1x32xf32>
    %281 = arith.addf %280, %279 : vector<1x32xf32>
    %282 = arith.divf %280, %281 : vector<1x32xf32>
    %283 = vector.extract_strided_slice %276 {offsets = [0, 32], sizes = [1, 32], strides = [1, 1]} : vector<1x128xf32> to vector<1x32xf32>
    %284 = arith.negf %283 : vector<1x32xf32>
    %285 = math.exp %284 : vector<1x32xf32>
    %cst_82 = arith.constant 1.000000e+00 : f32
    %286 = vector.broadcast %cst_82 : f32 to vector<1x32xf32>
    %287 = arith.addf %286, %285 : vector<1x32xf32>
    %288 = arith.divf %286, %287 : vector<1x32xf32>
    %289 = vector.extract_strided_slice %276 {offsets = [0, 64], sizes = [1, 32], strides = [1, 1]} : vector<1x128xf32> to vector<1x32xf32>
    %290 = math.tanh %289 : vector<1x32xf32>
    %291 = vector.extract_strided_slice %276 {offsets = [0, 96], sizes = [1, 32], strides = [1, 1]} : vector<1x128xf32> to vector<1x32xf32>
    %292 = arith.negf %291 : vector<1x32xf32>
    %293 = math.exp %292 : vector<1x32xf32>
    %cst_83 = arith.constant 1.000000e+00 : f32
    %294 = vector.broadcast %cst_83 : f32 to vector<1x32xf32>
    %295 = arith.addf %294, %293 : vector<1x32xf32>
    %296 = arith.divf %294, %295 : vector<1x32xf32>
    %297 = arith.mulf %288, %269 : vector<1x32xf32>
    %298 = arith.mulf %282, %290 : vector<1x32xf32>
    %299 = arith.addf %297, %298 : vector<1x32xf32>
    %300 = math.tanh %299 : vector<1x32xf32>
    %301 = arith.mulf %296, %300 : vector<1x32xf32>
    %302 = vector.extract_strided_slice %239 {offsets = [2, 0], sizes = [1, 128], strides = [1, 1]} : vector<7x128xf32> to vector<1x128xf32>
    %303 = arith.truncf %301 : vector<1x32xf32> to vector<1x32xbf16>
    %c0_84 = arith.constant 0 : index
    %c0_85 = arith.constant 0 : index
    %304 = vector.load %arg7[%c0_84, %c0_85] : memref<32x128xbf16, #tpu.memory_space<vmem>>, vector<32x128xbf16>
    %cst_86 = arith.constant dense<0.000000e+00> : vector<1x128xf32>
    %305 = tpu.matmul %303, %304, %cst_86 {dimension_numbers = #tpu.dot_dimension_numbers<[1], [0], [0], [1], [0, 0, 1, 1], [], []>} : vector<1x32xbf16>, vector<32x128xbf16>, vector<1x128xf32> -> vector<1x128xf32>
    %306 = arith.addf %302, %305 : vector<1x128xf32>
    %307 = vector.extract_strided_slice %306 {offsets = [0, 0], sizes = [1, 32], strides = [1, 1]} : vector<1x128xf32> to vector<1x32xf32>
    %308 = arith.negf %307 : vector<1x32xf32>
    %309 = math.exp %308 : vector<1x32xf32>
    %cst_87 = arith.constant 1.000000e+00 : f32
    %310 = vector.broadcast %cst_87 : f32 to vector<1x32xf32>
    %311 = arith.addf %310, %309 : vector<1x32xf32>
    %312 = arith.divf %310, %311 : vector<1x32xf32>
    %313 = vector.extract_strided_slice %306 {offsets = [0, 32], sizes = [1, 32], strides = [1, 1]} : vector<1x128xf32> to vector<1x32xf32>
    %314 = arith.negf %313 : vector<1x32xf32>
    %315 = math.exp %314 : vector<1x32xf32>
    %cst_88 = arith.constant 1.000000e+00 : f32
    %316 = vector.broadcast %cst_88 : f32 to vector<1x32xf32>
    %317 = arith.addf %316, %315 : vector<1x32xf32>
    %318 = arith.divf %316, %317 : vector<1x32xf32>
    %319 = vector.extract_strided_slice %306 {offsets = [0, 64], sizes = [1, 32], strides = [1, 1]} : vector<1x128xf32> to vector<1x32xf32>
    %320 = math.tanh %319 : vector<1x32xf32>
    %321 = vector.extract_strided_slice %306 {offsets = [0, 96], sizes = [1, 32], strides = [1, 1]} : vector<1x128xf32> to vector<1x32xf32>
    %322 = arith.negf %321 : vector<1x32xf32>
    %323 = math.exp %322 : vector<1x32xf32>
    %cst_89 = arith.constant 1.000000e+00 : f32
    %324 = vector.broadcast %cst_89 : f32 to vector<1x32xf32>
    %325 = arith.addf %324, %323 : vector<1x32xf32>
    %326 = arith.divf %324, %325 : vector<1x32xf32>
    %327 = arith.mulf %318, %299 : vector<1x32xf32>
    %328 = arith.mulf %312, %320 : vector<1x32xf32>
    %329 = arith.addf %327, %328 : vector<1x32xf32>
    %330 = math.tanh %329 : vector<1x32xf32>
    %331 = arith.mulf %326, %330 : vector<1x32xf32>
    %332 = vector.extract_strided_slice %239 {offsets = [3, 0], sizes = [1, 128], strides = [1, 1]} : vector<7x128xf32> to vector<1x128xf32>
    %333 = arith.truncf %331 : vector<1x32xf32> to vector<1x32xbf16>
    %c0_90 = arith.constant 0 : index
    %c0_91 = arith.constant 0 : index
    %334 = vector.load %arg7[%c0_90, %c0_91] : memref<32x128xbf16, #tpu.memory_space<vmem>>, vector<32x128xbf16>
    %cst_92 = arith.constant dense<0.000000e+00> : vector<1x128xf32>
    %335 = tpu.matmul %333, %334, %cst_92 {dimension_numbers = #tpu.dot_dimension_numbers<[1], [0], [0], [1], [0, 0, 1, 1], [], []>} : vector<1x32xbf16>, vector<32x128xbf16>, vector<1x128xf32> -> vector<1x128xf32>
    %336 = arith.addf %332, %335 : vector<1x128xf32>
    %337 = vector.extract_strided_slice %336 {offsets = [0, 0], sizes = [1, 32], strides = [1, 1]} : vector<1x128xf32> to vector<1x32xf32>
    %338 = arith.negf %337 : vector<1x32xf32>
    %339 = math.exp %338 : vector<1x32xf32>
    %cst_93 = arith.constant 1.000000e+00 : f32
    %340 = vector.broadcast %cst_93 : f32 to vector<1x32xf32>
    %341 = arith.addf %340, %339 : vector<1x32xf32>
    %342 = arith.divf %340, %341 : vector<1x32xf32>
    %343 = vector.extract_strided_slice %336 {offsets = [0, 32], sizes = [1, 32], strides = [1, 1]} : vector<1x128xf32> to vector<1x32xf32>
    %344 = arith.negf %343 : vector<1x32xf32>
    %345 = math.exp %344 : vector<1x32xf32>
    %cst_94 = arith.constant 1.000000e+00 : f32
    %346 = vector.broadcast %cst_94 : f32 to vector<1x32xf32>
    %347 = arith.addf %346, %345 : vector<1x32xf32>
    %348 = arith.divf %346, %347 : vector<1x32xf32>
    %349 = vector.extract_strided_slice %336 {offsets = [0, 64], sizes = [1, 32], strides = [1, 1]} : vector<1x128xf32> to vector<1x32xf32>
    %350 = math.tanh %349 : vector<1x32xf32>
    %351 = vector.extract_strided_slice %336 {offsets = [0, 96], sizes = [1, 32], strides = [1, 1]} : vector<1x128xf32> to vector<1x32xf32>
    %352 = arith.negf %351 : vector<1x32xf32>
    %353 = math.exp %352 : vector<1x32xf32>
    %cst_95 = arith.constant 1.000000e+00 : f32
    %354 = vector.broadcast %cst_95 : f32 to vector<1x32xf32>
    %355 = arith.addf %354, %353 : vector<1x32xf32>
    %356 = arith.divf %354, %355 : vector<1x32xf32>
    %357 = arith.mulf %348, %329 : vector<1x32xf32>
    %358 = arith.mulf %342, %350 : vector<1x32xf32>
    %359 = arith.addf %357, %358 : vector<1x32xf32>
    %360 = math.tanh %359 : vector<1x32xf32>
    %361 = arith.mulf %356, %360 : vector<1x32xf32>
    %362 = vector.extract_strided_slice %239 {offsets = [4, 0], sizes = [1, 128], strides = [1, 1]} : vector<7x128xf32> to vector<1x128xf32>
    %363 = arith.truncf %361 : vector<1x32xf32> to vector<1x32xbf16>
    %c0_96 = arith.constant 0 : index
    %c0_97 = arith.constant 0 : index
    %364 = vector.load %arg7[%c0_96, %c0_97] : memref<32x128xbf16, #tpu.memory_space<vmem>>, vector<32x128xbf16>
    %cst_98 = arith.constant dense<0.000000e+00> : vector<1x128xf32>
    %365 = tpu.matmul %363, %364, %cst_98 {dimension_numbers = #tpu.dot_dimension_numbers<[1], [0], [0], [1], [0, 0, 1, 1], [], []>} : vector<1x32xbf16>, vector<32x128xbf16>, vector<1x128xf32> -> vector<1x128xf32>
    %366 = arith.addf %362, %365 : vector<1x128xf32>
    %367 = vector.extract_strided_slice %366 {offsets = [0, 0], sizes = [1, 32], strides = [1, 1]} : vector<1x128xf32> to vector<1x32xf32>
    %368 = arith.negf %367 : vector<1x32xf32>
    %369 = math.exp %368 : vector<1x32xf32>
    %cst_99 = arith.constant 1.000000e+00 : f32
    %370 = vector.broadcast %cst_99 : f32 to vector<1x32xf32>
    %371 = arith.addf %370, %369 : vector<1x32xf32>
    %372 = arith.divf %370, %371 : vector<1x32xf32>
    %373 = vector.extract_strided_slice %366 {offsets = [0, 32], sizes = [1, 32], strides = [1, 1]} : vector<1x128xf32> to vector<1x32xf32>
    %374 = arith.negf %373 : vector<1x32xf32>
    %375 = math.exp %374 : vector<1x32xf32>
    %cst_100 = arith.constant 1.000000e+00 : f32
    %376 = vector.broadcast %cst_100 : f32 to vector<1x32xf32>
    %377 = arith.addf %376, %375 : vector<1x32xf32>
    %378 = arith.divf %376, %377 : vector<1x32xf32>
    %379 = vector.extract_strided_slice %366 {offsets = [0, 64], sizes = [1, 32], strides = [1, 1]} : vector<1x128xf32> to vector<1x32xf32>
    %380 = math.tanh %379 : vector<1x32xf32>
    %381 = vector.extract_strided_slice %366 {offsets = [0, 96], sizes = [1, 32], strides = [1, 1]} : vector<1x128xf32> to vector<1x32xf32>
    %382 = arith.negf %381 : vector<1x32xf32>
    %383 = math.exp %382 : vector<1x32xf32>
    %cst_101 = arith.constant 1.000000e+00 : f32
    %384 = vector.broadcast %cst_101 : f32 to vector<1x32xf32>
    %385 = arith.addf %384, %383 : vector<1x32xf32>
    %386 = arith.divf %384, %385 : vector<1x32xf32>
    %387 = arith.mulf %378, %359 : vector<1x32xf32>
    %388 = arith.mulf %372, %380 : vector<1x32xf32>
    %389 = arith.addf %387, %388 : vector<1x32xf32>
    %390 = math.tanh %389 : vector<1x32xf32>
    %391 = arith.mulf %386, %390 : vector<1x32xf32>
    %392 = vector.extract_strided_slice %239 {offsets = [5, 0], sizes = [1, 128], strides = [1, 1]} : vector<7x128xf32> to vector<1x128xf32>
    %393 = arith.truncf %391 : vector<1x32xf32> to vector<1x32xbf16>
    %c0_102 = arith.constant 0 : index
    %c0_103 = arith.constant 0 : index
    %394 = vector.load %arg7[%c0_102, %c0_103] : memref<32x128xbf16, #tpu.memory_space<vmem>>, vector<32x128xbf16>
    %cst_104 = arith.constant dense<0.000000e+00> : vector<1x128xf32>
    %395 = tpu.matmul %393, %394, %cst_104 {dimension_numbers = #tpu.dot_dimension_numbers<[1], [0], [0], [1], [0, 0, 1, 1], [], []>} : vector<1x32xbf16>, vector<32x128xbf16>, vector<1x128xf32> -> vector<1x128xf32>
    %396 = arith.addf %392, %395 : vector<1x128xf32>
    %397 = vector.extract_strided_slice %396 {offsets = [0, 0], sizes = [1, 32], strides = [1, 1]} : vector<1x128xf32> to vector<1x32xf32>
    %398 = arith.negf %397 : vector<1x32xf32>
    %399 = math.exp %398 : vector<1x32xf32>
    %cst_105 = arith.constant 1.000000e+00 : f32
    %400 = vector.broadcast %cst_105 : f32 to vector<1x32xf32>
    %401 = arith.addf %400, %399 : vector<1x32xf32>
    %402 = arith.divf %400, %401 : vector<1x32xf32>
    %403 = vector.extract_strided_slice %396 {offsets = [0, 32], sizes = [1, 32], strides = [1, 1]} : vector<1x128xf32> to vector<1x32xf32>
    %404 = arith.negf %403 : vector<1x32xf32>
    %405 = math.exp %404 : vector<1x32xf32>
    %cst_106 = arith.constant 1.000000e+00 : f32
    %406 = vector.broadcast %cst_106 : f32 to vector<1x32xf32>
    %407 = arith.addf %406, %405 : vector<1x32xf32>
    %408 = arith.divf %406, %407 : vector<1x32xf32>
    %409 = vector.extract_strided_slice %396 {offsets = [0, 64], sizes = [1, 32], strides = [1, 1]} : vector<1x128xf32> to vector<1x32xf32>
    %410 = math.tanh %409 : vector<1x32xf32>
    %411 = vector.extract_strided_slice %396 {offsets = [0, 96], sizes = [1, 32], strides = [1, 1]} : vector<1x128xf32> to vector<1x32xf32>
    %412 = arith.negf %411 : vector<1x32xf32>
    %413 = math.exp %412 : vector<1x32xf32>
    %cst_107 = arith.constant 1.000000e+00 : f32
    %414 = vector.broadcast %cst_107 : f32 to vector<1x32xf32>
    %415 = arith.addf %414, %413 : vector<1x32xf32>
    %416 = arith.divf %414, %415 : vector<1x32xf32>
    %417 = arith.mulf %408, %389 : vector<1x32xf32>
    %418 = arith.mulf %402, %410 : vector<1x32xf32>
    %419 = arith.addf %417, %418 : vector<1x32xf32>
    %420 = math.tanh %419 : vector<1x32xf32>
    %421 = arith.mulf %416, %420 : vector<1x32xf32>
    %422 = vector.extract_strided_slice %239 {offsets = [6, 0], sizes = [1, 128], strides = [1, 1]} : vector<7x128xf32> to vector<1x128xf32>
    %423 = arith.truncf %421 : vector<1x32xf32> to vector<1x32xbf16>
    %c0_108 = arith.constant 0 : index
    %c0_109 = arith.constant 0 : index
    %424 = vector.load %arg7[%c0_108, %c0_109] : memref<32x128xbf16, #tpu.memory_space<vmem>>, vector<32x128xbf16>
    %cst_110 = arith.constant dense<0.000000e+00> : vector<1x128xf32>
    %425 = tpu.matmul %423, %424, %cst_110 {dimension_numbers = #tpu.dot_dimension_numbers<[1], [0], [0], [1], [0, 0, 1, 1], [], []>} : vector<1x32xbf16>, vector<32x128xbf16>, vector<1x128xf32> -> vector<1x128xf32>
    %426 = arith.addf %422, %425 : vector<1x128xf32>
    %427 = vector.extract_strided_slice %426 {offsets = [0, 0], sizes = [1, 32], strides = [1, 1]} : vector<1x128xf32> to vector<1x32xf32>
    %428 = arith.negf %427 : vector<1x32xf32>
    %429 = math.exp %428 : vector<1x32xf32>
    %cst_111 = arith.constant 1.000000e+00 : f32
    %430 = vector.broadcast %cst_111 : f32 to vector<1x32xf32>
    %431 = arith.addf %430, %429 : vector<1x32xf32>
    %432 = arith.divf %430, %431 : vector<1x32xf32>
    %433 = vector.extract_strided_slice %426 {offsets = [0, 32], sizes = [1, 32], strides = [1, 1]} : vector<1x128xf32> to vector<1x32xf32>
    %434 = arith.negf %433 : vector<1x32xf32>
    %435 = math.exp %434 : vector<1x32xf32>
    %cst_112 = arith.constant 1.000000e+00 : f32
    %436 = vector.broadcast %cst_112 : f32 to vector<1x32xf32>
    %437 = arith.addf %436, %435 : vector<1x32xf32>
    %438 = arith.divf %436, %437 : vector<1x32xf32>
    %439 = vector.extract_strided_slice %426 {offsets = [0, 64], sizes = [1, 32], strides = [1, 1]} : vector<1x128xf32> to vector<1x32xf32>
    %440 = math.tanh %439 : vector<1x32xf32>
    %441 = vector.extract_strided_slice %426 {offsets = [0, 96], sizes = [1, 32], strides = [1, 1]} : vector<1x128xf32> to vector<1x32xf32>
    %442 = arith.negf %441 : vector<1x32xf32>
    %443 = math.exp %442 : vector<1x32xf32>
    %cst_113 = arith.constant 1.000000e+00 : f32
    %444 = vector.broadcast %cst_113 : f32 to vector<1x32xf32>
    %445 = arith.addf %444, %443 : vector<1x32xf32>
    %446 = arith.divf %444, %445 : vector<1x32xf32>
    %447 = arith.mulf %438, %419 : vector<1x32xf32>
    %448 = arith.mulf %432, %440 : vector<1x32xf32>
    %449 = arith.addf %447, %448 : vector<1x32xf32>
    %450 = math.tanh %449 : vector<1x32xf32>
    %451 = arith.mulf %446, %450 : vector<1x32xf32>
    %452 = arith.truncf %451 : vector<1x32xf32> to vector<1x32xbf16>
    %c0_114 = arith.constant 0 : index
    %c0_115 = arith.constant 0 : index
    %453 = vector.load %arg9[%c0_114, %c0_115] : memref<32x32xbf16, #tpu.memory_space<vmem>>, vector<32x32xbf16>
    %cst_116 = arith.constant dense<0.000000e+00> : vector<1x32xf32>
    %454 = tpu.matmul %452, %453, %cst_116 {dimension_numbers = #tpu.dot_dimension_numbers<[1], [0], [0], [1], [0, 0, 1, 1], [], []>} : vector<1x32xbf16>, vector<32x32xbf16>, vector<1x32xf32> -> vector<1x32xf32>
    %c0_117 = arith.constant 0 : index
    %c0_118 = arith.constant 0 : index
    %455 = vector.load %arg10[%c0_117, %c0_118] : memref<1x32xf32, #tpu.memory_space<vmem>>, vector<1x32xf32>
    %456 = arith.addf %454, %455 : vector<1x32xf32>
    %457 = math.tanh %456 : vector<1x32xf32>
    %458 = arith.truncf %457 : vector<1x32xf32> to vector<1x32xbf16>
    %c0_119 = arith.constant 0 : index
    %c0_120 = arith.constant 0 : index
    %459 = vector.load %arg11[%c0_119, %c0_120] : memref<32x256xbf16, #tpu.memory_space<vmem>>, vector<32x256xbf16>
    %cst_121 = arith.constant dense<0.000000e+00> : vector<1x256xf32>
    %460 = tpu.matmul %458, %459, %cst_121 {dimension_numbers = #tpu.dot_dimension_numbers<[1], [0], [0], [1], [0, 0, 1, 1], [], []>} : vector<1x32xbf16>, vector<32x256xbf16>, vector<1x256xf32> -> vector<1x256xf32>
    %c0_122 = arith.constant 0 : index
    %c0_123 = arith.constant 0 : index
    %461 = vector.load %arg12[%c0_122, %c0_123] : memref<1x256xf32, #tpu.memory_space<vmem>>, vector<1x256xf32>
    %462 = arith.addf %460, %461 : vector<1x256xf32>
    %cst_124 = arith.constant 0.000000e+00 : f32
    %463 = vector.broadcast %cst_124 : f32 to vector<1x256xf32>
    %464 = arith.maximumf %462, %463 : vector<1x256xf32>
    %c0_125 = arith.constant 0 : index
    %c0_126 = arith.constant 0 : index
    %465 = vector.load %arg13[%c0_125, %c0_126] : memref<1x256xf32, #tpu.memory_space<vmem>>, vector<1x256xf32>
    tpu.vector_store %arg13[%c0_125, %c0_126], %464 {strides = array<i32>} : memref<1x256xf32, #tpu.memory_space<vmem>>, vector<1x256xf32>,
    return
  }
}

module attributes {stable_mosaic.version = 11 : i64} {
  func.func @_conv_pool_act_kernel(%arg0: memref<1x144x64xbf16, #tpu.memory_space<vmem>>, %arg1: memref<8x144xbf16, #tpu.memory_space<vmem>>, %arg2: memref<8x1xf32, #tpu.memory_space<vmem>>, %arg3: memref<8x64xf32, #tpu.memory_space<vmem>>) attributes {dimension_semantics = [], scalar_prefetch = 0 : i64, scratch_operands = 0 : i64, tpu.core_type = #tpu.core_type<tc>} {
    %c0 = arith.constant 0 : index
    %c0_0 = arith.constant 0 : index
    %0 = vector.load %arg1[%c0, %c0_0] : memref<8x144xbf16, #tpu.memory_space<vmem>>, vector<8x144xbf16>
    %c0_1 = arith.constant 0 : index
    %c0_2 = arith.constant 0 : index
    %c0_3 = arith.constant 0 : index
    %1 = vector.load %arg0[%c0_1, %c0_2, %c0_3] : memref<1x144x64xbf16, #tpu.memory_space<vmem>>, vector<1x144x64xbf16>
    %2 = vector.shape_cast %1 : vector<1x144x64xbf16> to vector<144x64xbf16>
    %cst = arith.constant dense<0.000000e+00> : vector<8x64xf32>
    %3 = tpu.matmul %0, %2, %cst {dimension_numbers = #tpu.dot_dimension_numbers<[1], [0], [0], [1], [0, 0, 1, 1], [], []>} : vector<8x144xbf16>, vector<144x64xbf16>, vector<8x64xf32> -> vector<8x64xf32>
    %c0_4 = arith.constant 0 : index
    %c0_5 = arith.constant 0 : index
    %4 = vector.load %arg2[%c0_4, %c0_5] : memref<8x1xf32, #tpu.memory_space<vmem>>, vector<8x1xf32>
    %5 = vector.broadcast %4 : vector<8x1xf32> to vector<8x64xf32>
    %6 = arith.addf %3, %5 : vector<8x64xf32>
    %cst_6 = arith.constant 0.000000e+00 : f32
    %7 = vector.broadcast %cst_6 : f32 to vector<8x64xf32>
    %8 = arith.maximumf %6, %7 : vector<8x64xf32>
    %c0_7 = arith.constant 0 : index
    %c0_8 = arith.constant 0 : index
    %9 = vector.load %arg3[%c0_7, %c0_8] : memref<8x64xf32, #tpu.memory_space<vmem>>, vector<8x64xf32>
    tpu.vector_store %arg3[%c0_7, %c0_8], %8 {strides = array<i32>} : memref<8x64xf32, #tpu.memory_space<vmem>>, vector<8x64xf32>,
    return
  }
}

module attributes {stable_mosaic.version = 11 : i64} {
  func.func @_conv_pool_act_kernel(%arg0: memref<1x72x256xbf16, #tpu.memory_space<vmem>>, %arg1: memref<3x72xbf16, #tpu.memory_space<vmem>>, %arg2: memref<3x1xf32, #tpu.memory_space<vmem>>, %arg3: memref<3x256xf32, #tpu.memory_space<vmem>>) attributes {dimension_semantics = [], scalar_prefetch = 0 : i64, scratch_operands = 0 : i64, tpu.core_type = #tpu.core_type<tc>} {
    %c0 = arith.constant 0 : index
    %c0_0 = arith.constant 0 : index
    %0 = vector.load %arg1[%c0, %c0_0] : memref<3x72xbf16, #tpu.memory_space<vmem>>, vector<3x72xbf16>
    %c0_1 = arith.constant 0 : index
    %c0_2 = arith.constant 0 : index
    %c0_3 = arith.constant 0 : index
    %1 = vector.load %arg0[%c0_1, %c0_2, %c0_3] : memref<1x72x256xbf16, #tpu.memory_space<vmem>>, vector<1x72x256xbf16>
    %2 = vector.shape_cast %1 : vector<1x72x256xbf16> to vector<72x256xbf16>
    %cst = arith.constant dense<0.000000e+00> : vector<3x256xf32>
    %3 = tpu.matmul %0, %2, %cst {dimension_numbers = #tpu.dot_dimension_numbers<[1], [0], [0], [1], [0, 0, 1, 1], [], []>} : vector<3x72xbf16>, vector<72x256xbf16>, vector<3x256xf32> -> vector<3x256xf32>
    %c0_4 = arith.constant 0 : index
    %c0_5 = arith.constant 0 : index
    %4 = vector.load %arg2[%c0_4, %c0_5] : memref<3x1xf32, #tpu.memory_space<vmem>>, vector<3x1xf32>
    %5 = vector.broadcast %4 : vector<3x1xf32> to vector<3x256xf32>
    %6 = arith.addf %3, %5 : vector<3x256xf32>
    %7 = arith.negf %6 : vector<3x256xf32>
    %8 = math.exp %7 : vector<3x256xf32>
    %cst_6 = arith.constant 1.000000e+00 : f32
    %9 = vector.broadcast %cst_6 : f32 to vector<3x256xf32>
    %10 = arith.addf %9, %8 : vector<3x256xf32>
    %11 = arith.divf %9, %10 : vector<3x256xf32>
    %c0_7 = arith.constant 0 : index
    %c0_8 = arith.constant 0 : index
    %12 = vector.load %arg3[%c0_7, %c0_8] : memref<3x256xf32, #tpu.memory_space<vmem>>, vector<3x256xf32>
    tpu.vector_store %arg3[%c0_7, %c0_8], %11 {strides = array<i32>} : memref<3x256xf32, #tpu.memory_space<vmem>>, vector<3x256xf32>,
    return
  }
}

</mosaic_0001>

<llo_original>
// kernel: encoder_decoder_forward.5
$region0: #{encoder_decoder_forward.5}
  #allocation0 [shape = 'u32[]', space=smem, size = 0x4, offset = 0x4, fixed_abs, tag = 'smem constant byte address 0x4 - core index']
  #allocation1 [shape = 'u32[72,128]{1,0:T(1,128)}', space=vmem, size = 0x9000, scoped, tag = 'internal scratch']
  %s0 = inlined_call_operand.vmem [shape: bf16[4,27,448], index: 0, kind: input, shape index: {}]
  %s1 = inlined_call_operand.vmem [shape: bf16[8,27], index: 1, kind: input, shape index: {}]
  %s2 = inlined_call_operand.vmem [shape: f32[8,1], index: 2, kind: input, shape index: {}]
  %s3 = inlined_call_operand.vmem [shape: f32[8,448], index: 3, kind: output, shape index: {}]
  %s4 = sld [smem:[#allocation0]]
  $region22: #{encoder_decoder_forward.5} parent=0
    _
  %s6 = ssub.s32 1, %s4
  %s7 = scalar_select 0, %s6, %s4
  // Predicated region
  $region2: #{encoder_decoder_forward.5} parent=0 // pred_check
    _
  $region3: #{encoder_decoder_forward.5} parent=0 // pred_check_branch
    %9 = sbr.rel (0) target = $region5
  $region4: #{encoder_decoder_forward.5} parent=0 // pred_region
    _
  $region5: #{encoder_decoder_forward.5} parent=0 // pred_fallthru
    _
  // Predicated region
  $region6: #{encoder_decoder_forward.5} parent=0 // pred_check
    _
  $region7: #{encoder_decoder_forward.5} parent=0 // pred_check_branch
    %11 = sbr.rel (0) target = $region9
  $region8: #{encoder_decoder_forward.5} parent=0 // pred_region
    _
  $region9: #{encoder_decoder_forward.5} parent=0 // pred_fallthru
    _
  // Predicated region
  $region10: #{encoder_decoder_forward.5} parent=0 // pred_check
    _
  $region11: #{encoder_decoder_forward.5} parent=0 // pred_check_branch
    %13 = sbr.rel (0) target = $region13
  $region12: #{encoder_decoder_forward.5} parent=0 // pred_region
    _
  $region13: #{encoder_decoder_forward.5} parent=0 // pred_fallthru
    _
  %v15 = vld [vmem:[%s1] sm:$0xf]
  %v16 = vld [vmem:[%s0] sm:$0xff]
  %v17 = vld [vmem:[%s0 + $0x8] sm:$0xff]
  %v18 = vld [vmem:[%s0 + $0x10] sm:$0xff]
  %v19 = vld [vmem:[%s0 + $0x18] sm:$0xff]
  %v20 = vld [vmem:[%s0 + $0x20] sm:$0xff]
  %v21 = vld [vmem:[%s0 + $0x28] sm:$0xff]
  %v22 = vld [vmem:[%s0 + $0x30] sm:$0x33]
  %v23 = vld [vmem:[%s0 + $0x38] sm:$0x33]
  %v32 = vunpack.c.l.b16 %v16
  %v33 = vunpack.c.h.b16 %v16
  %v34 = vunpack.c.l.b16 %v17
  %v35 = vunpack.c.h.b16 %v17
  %v36 = vunpack.c.l.b16 %v18
  %v37 = vunpack.c.h.b16 %v18
  %v38 = vunpack.c.l.b16 %v19
  %v39 = vunpack.c.h.b16 %v19
  %v40 = vunpack.c.l.b16 %v20
  %v41 = vunpack.c.h.b16 %v20
  %v42 = vunpack.c.l.b16 %v21
  %v43 = vunpack.c.h.b16 %v21
  %v44 = vunpack.c.l.b16 %v22
  %v45 = vunpack.c.h.b16 %v22
  %v46 = vunpack.c.l.b16 %v23
  %v47 = vunpack.c.h.b16 %v23
  %v48 = vpack.c.b16 %v36, %v32
  %v49 = vpack.c.b16 %v37, %v33
  %v50 = vpack.c.b16 %v38, %v34
  %v51 = vpack.c.b16 %v39, %v35
  %v52 = vpack.c.b16 %v44, %v40
  %v53 = vpack.c.b16 %v45, %v41
  %v54 = vpack.c.b16 %v46, %v42
  %v55 = vpack.c.b16 %v47, %v43
  %vm60 = vcmask 220160
  %v62 = vsel %vm60, %v15, 0
  %vm64 = vcmask 1044480
  %vm65 = vcmask 1045504
  %v66 = vsel %vm64, 4294967295, 65535
  %v67 = vsel %vm65, %v66, 0
  %v69 = vand.u32 %v52, %v67
  %v72 = vand.u32 %v53, %v67
  %v75 = vand.u32 %v54, %v67
  %v78 = vand.u32 %v55, %v67
  %80 = vmatpush.bf16.msra.mxu0 0
  %81 = vmatpush.bf16.msra.mxu0 0
  %82 = vmatpush.bf16.msra.mxu0 0
  %83 = vmatpush.bf16.msra.mxu0 0
  %84 = vmatpush.bf16.msra.mxu0 0
  %85 = vmatpush.bf16.msra.mxu0 0
  %86 = vmatpush.bf16.msra.mxu0 %v69
  %87 = vmatpush.bf16.msra.mxu0 %v48
  %88 = vmatmul.bf16.gmra.mxu0 %v62
  %v89 = vpop.f32.mrf.mxu0
  %v90 = vadd.f32 0.0, %v89
  %v91 = vpop.f32.mrf.mxu0
  %92 = vdwg.mxu0
  %93 = vmatpush.bf16.msra.mxu0 0
  %94 = vmatpush.bf16.msra.mxu0 0
  %95 = vmatpush.bf16.msra.mxu0 0
  %96 = vmatpush.bf16.msra.mxu0 0
  %97 = vmatpush.bf16.msra.mxu0 0
  %98 = vmatpush.bf16.msra.mxu0 0
  %99 = vmatpush.bf16.msra.mxu0 %v72
  %100 = vmatpush.bf16.msra.mxu0 %v49
  %101 = vmatmul.bf16.gmra.mxu0 %v62
  %v102 = vpop.f32.mrf.mxu0
  %v103 = vadd.f32 0.0, %v102
  %v104 = vpop.f32.mrf.mxu0
  %105 = vdwg.mxu0
  %106 = vmatpush.bf16.msra.mxu0 0
  %107 = vmatpush.bf16.msra.mxu0 0
  %108 = vmatpush.bf16.msra.mxu0 0
  %109 = vmatpush.bf16.msra.mxu0 0
  %110 = vmatpush.bf16.msra.mxu0 0
  %111 = vmatpush.bf16.msra.mxu0 0
  %112 = vmatpush.bf16.msra.mxu0 %v75
  %113 = vmatpush.bf16.msra.mxu0 %v50
  %114 = vmatmul.bf16.gmra.mxu0 %v62
  %v115 = vpop.f32.mrf.mxu0
  %v116 = vadd.f32 0.0, %v115
  %v117 = vpop.f32.mrf.mxu0
  %118 = vdwg.mxu0
  %119 = vmatpush.bf16.msra.mxu0 0
  %120 = vmatpush.bf16.msra.mxu0 0
  %121 = vmatpush.bf16.msra.mxu0 0
  %122 = vmatpush.bf16.msra.mxu0 0
  %123 = vmatpush.bf16.msra.mxu0 0
  %124 = vmatpush.bf16.msra.mxu0 0
  %125 = vmatpush.bf16.msra.mxu0 %v78
  %126 = vmatpush.bf16.msra.mxu0 %v51
  %127 = vmatmul.bf16.gmra.mxu0 %v62
  %v128 = vpop.f32.mrf.mxu0
  %v129 = vadd.f32 0.0, %v128
  %v130 = vpop.f32.mrf.mxu0
  %131 = vdwg.mxu0
  %s132 = scalar_lea.vmem %s0, 64
  %v133 = vld [vmem:[%s132] sm:$0xff]
  %v134 = vld [vmem:[%s132 + $0x8] sm:$0xff]
  %v135 = vld [vmem:[%s132 + $0x10] sm:$0xff]
  %v136 = vld [vmem:[%s132 + $0x18] sm:$0xff]
  %v137 = vld [vmem:[%s132 + $0x20] sm:$0xff]
  %v138 = vld [vmem:[%s132 + $0x28] sm:$0xff]
  %v139 = vld [vmem:[%s132 + $0x30] sm:$0x33]
  %v140 = vld [vmem:[%s132 + $0x38] sm:$0x33]
  %v149 = vunpack.c.l.b16 %v133
  %v150 = vunpack.c.h.b16 %v133
  %v151 = vunpack.c.l.b16 %v134
  %v152 = vunpack.c.h.b16 %v134
  %v153 = vunpack.c.l.b16 %v135
  %v154 = vunpack.c.h.b16 %v135
  %v155 = vunpack.c.l.b16 %v136
  %v156 = vunpack.c.h.b16 %v136
  %v157 = vunpack.c.l.b16 %v137
  %v158 = vunpack.c.h.b16 %v137
  %v159 = vunpack.c.l.b16 %v138
  %v160 = vunpack.c.h.b16 %v138
  %v161 = vunpack.c.l.b16 %v139
  %v162 = vunpack.c.h.b16 %v139
  %v163 = vunpack.c.l.b16 %v140
  %v164 = vunpack.c.h.b16 %v140
  %v165 = vpack.c.b16 %v153, %v149
  %v166 = vpack.c.b16 %v154, %v150
  %v167 = vpack.c.b16 %v155, %v151
  %v168 = vpack.c.b16 %v156, %v152
  %v169 = vpack.c.b16 %v161, %v157
  %v170 = vpack.c.b16 %v162, %v158
  %v171 = vpack.c.b16 %v163, %v159
  %v172 = vpack.c.b16 %v164, %v160
  %v178 = vand.u32 %v169, %v67
  %v181 = vand.u32 %v170, %v67
  %v184 = vand.u32 %v171, %v67
  %v187 = vand.u32 %v172, %v67
  %189 = vmatpush.bf16.msra.mxu0 0
  %190 = vmatpush.bf16.msra.mxu0 0
  %191 = vmatpush.bf16.msra.mxu0 0
  %192 = vmatpush.bf16.msra.mxu0 0
  %193 = vmatpush.bf16.msra.mxu0 0
  %194 = vmatpush.bf16.msra.mxu0 0
  %195 = vmatpush.bf16.msra.mxu0 %v178
  %196 = vmatpush.bf16.msra.mxu0 %v165
  %197 = vmatmul.bf16.gmra.mxu0 %v62
  %v198 = vpop.f32.mrf.mxu0
  %v199 = vadd.f32 0.0, %v198
  %v200 = vpop.f32.mrf.mxu0
  %201 = vdwg.mxu0
  %202 = vmatpush.bf16.msra.mxu0 0
  %203 = vmatpush.bf16.msra.mxu0 0
  %204 = vmatpush.bf16.msra.mxu0 0
  %205 = vmatpush.bf16.msra.mxu0 0
  %206 = vmatpush.bf16.msra.mxu0 0
  %207 = vmatpush.bf16.msra.mxu0 0
  %208 = vmatpush.bf16.msra.mxu0 %v181
  %209 = vmatpush.bf16.msra.mxu0 %v166
  %210 = vmatmul.bf16.gmra.mxu0 %v62
  %v211 = vpop.f32.mrf.mxu0
  %v212 = vadd.f32 0.0, %v211
  %v213 = vpop.f32.mrf.mxu0
  %214 = vdwg.mxu0
  %215 = vmatpush.bf16.msra.mxu0 0
  %216 = vmatpush.bf16.msra.mxu0 0
  %217 = vmatpush.bf16.msra.mxu0 0
  %218 = vmatpush.bf16.msra.mxu0 0
  %219 = vmatpush.bf16.msra.mxu0 0
  %220 = vmatpush.bf16.msra.mxu0 0
  %221 = vmatpush.bf16.msra.mxu0 %v184
  %222 = vmatpush.bf16.msra.mxu0 %v167
  %223 = vmatmul.bf16.gmra.mxu0 %v62
  %v224 = vpop.f32.mrf.mxu0
  %v225 = vadd.f32 0.0, %v224
  %v226 = vpop.f32.mrf.mxu0
  %227 = vdwg.mxu0
  %228 = vmatpush.bf16.msra.mxu0 0
  %229 = vmatpush.bf16.msra.mxu0 0
  %230 = vmatpush.bf16.msra.mxu0 0
  %231 = vmatpush.bf16.msra.mxu0 0
  %232 = vmatpush.bf16.msra.mxu0 0
  %233 = vmatpush.bf16.msra.mxu0 0
  %234 = vmatpush.bf16.msra.mxu0 %v187
  %235 = vmatpush.bf16.msra.mxu0 %v168
  %236 = vmatmul.bf16.gmra.mxu0 %v62
  %v237 = vpop.f32.mrf.mxu0
  %v238 = vadd.f32 0.0, %v237
  %v239 = vpop.f32.mrf.mxu0
  %240 = vdwg.mxu0
  %v241 = vmax.f32 %v90, %v199
  %v242 = vmax.f32 %v103, %v212
  %v243 = vmax.f32 %v116, %v225
  %v244 = vmax.f32 %v129, %v238
  %s245 = scalar_lea.vmem %s0, 128
  %v246 = vld [vmem:[%s245] sm:$0xff]
  %v247 = vld [vmem:[%s245 + $0x8] sm:$0xff]
  %v248 = vld [vmem:[%s245 + $0x10] sm:$0xff]
  %v249 = vld [vmem:[%s245 + $0x18] sm:$0xff]
  %v250 = vld [vmem:[%s245 + $0x20] sm:$0xff]
  %v251 = vld [vmem:[%s245 + $0x28] sm:$0xff]
  %v252 = vld [vmem:[%s245 + $0x30] sm:$0x33]
  %v253 = vld [vmem:[%s245 + $0x38] sm:$0x33]
  %v262 = vunpack.c.l.b16 %v246
  %v263 = vunpack.c.h.b16 %v246
  %v264 = vunpack.c.l.b16 %v247
  %v265 = vunpack.c.h.b16 %v247
  %v266 = vunpack.c.l.b16 %v248
  %v267 = vunpack.c.h.b16 %v248
  %v268 = vunpack.c.l.b16 %v249
  %v269 = vunpack.c.h.b16 %v249
  %v270 = vunpack.c.l.b16 %v250
  %v271 = vunpack.c.h.b16 %v250
  %v272 = vunpack.c.l.b16 %v251
  %v273 = vunpack.c.h.b16 %v251
  %v274 = vunpack.c.l.b16 %v252
  %v275 = vunpack.c.h.b16 %v252
  %v276 = vunpack.c.l.b16 %v253
  %v277 = vunpack.c.h.b16 %v253
  %v278 = vpack.c.b16 %v266, %v262
  %v279 = vpack.c.b16 %v267, %v263
  %v280 = vpack.c.b16 %v268, %v264
  %v281 = vpack.c.b16 %v269, %v265
  %v282 = vpack.c.b16 %v274, %v270
  %v283 = vpack.c.b16 %v275, %v271
  %v284 = vpack.c.b16 %v276, %v272
  %v285 = vpack.c.b16 %v277, %v273
  %v291 = vand.u32 %v282, %v67
  %v294 = vand.u32 %v283, %v67
  %v297 = vand.u32 %v284, %v67
  %v300 = vand.u32 %v285, %v67
  %302 = vmatpush.bf16.msra.mxu0 0
  %303 = vmatpush.bf16.msra.mxu0 0
  %304 = vmatpush.bf16.msra.mxu0 0
  %305 = vmatpush.bf16.msra.mxu0 0
  %306 = vmatpush.bf16.msra.mxu0 0
  %307 = vmatpush.bf16.msra.mxu0 0
  %308 = vmatpush.bf16.msra.mxu0 %v291
  %309 = vmatpush.bf16.msra.mxu0 %v278
  %310 = vmatmul.bf16.gmra.mxu0 %v62
  %v311 = vpop.f32.mrf.mxu0
  %v312 = vadd.f32 0.0, %v311
  %v313 = vpop.f32.mrf.mxu0
  %314 = vdwg.mxu0
  %315 = vmatpush.bf16.msra.mxu0 0
  %316 = vmatpush.bf16.msra.mxu0 0
  %317 = vmatpush.bf16.msra.mxu0 0
  %318 = vmatpush.bf16.msra.mxu0 0
  %319 = vmatpush.bf16.msra.mxu0 0
  %320 = vmatpush.bf16.msra.mxu0 0
  %321 = vmatpush.bf16.msra.mxu0 %v294
  %322 = vmatpush.bf16.msra.mxu0 %v279
  %323 = vmatmul.bf16.gmra.mxu0 %v62
  %v324 = vpop.f32.mrf.mxu0
  %v325 = vadd.f32 0.0, %v324
  %v326 = vpop.f32.mrf.mxu0
  %327 = vdwg.mxu0
  %328 = vmatpush.bf16.msra.mxu0 0
  %329 = vmatpush.bf16.msra.mxu0 0
  %330 = vmatpush.bf16.msra.mxu0 0
  %331 = vmatpush.bf16.msra.mxu0 0
  %332 = vmatpush.bf16.msra.mxu0 0
  %333 = vmatpush.bf16.msra.mxu0 0
  %334 = vmatpush.bf16.msra.mxu0 %v297
  %335 = vmatpush.bf16.msra.mxu0 %v280
  %336 = vmatmul.bf16.gmra.mxu0 %v62
  %v337 = vpop.f32.mrf.mxu0
  %v338 = vadd.f32 0.0, %v337
  %v339 = vpop.f32.mrf.mxu0
  %340 = vdwg.mxu0
  %341 = vmatpush.bf16.msra.mxu0 0
  %342 = vmatpush.bf16.msra.mxu0 0
  %343 = vmatpush.bf16.msra.mxu0 0
  %344 = vmatpush.bf16.msra.mxu0 0
  %345 = vmatpush.bf16.msra.mxu0 0
  %346 = vmatpush.bf16.msra.mxu0 0
  %347 = vmatpush.bf16.msra.mxu0 %v300
  %348 = vmatpush.bf16.msra.mxu0 %v281
  %349 = vmatmul.bf16.gmra.mxu0 %v62
  %v350 = vpop.f32.mrf.mxu0
  %v351 = vadd.f32 0.0, %v350
  %v352 = vpop.f32.mrf.mxu0
  %353 = vdwg.mxu0
  %v354 = vmax.f32 %v241, %v312
  %v355 = vmax.f32 %v242, %v325
  %v356 = vmax.f32 %v243, %v338
  %v357 = vmax.f32 %v244, %v351
  %s358 = scalar_lea.vmem %s0, 192
  %v359 = vld [vmem:[%s358] sm:$0xff]
  %v360 = vld [vmem:[%s358 + $0x8] sm:$0xff]
  %v361 = vld [vmem:[%s358 + $0x10] sm:$0xff]
  %v362 = vld [vmem:[%s358 + $0x18] sm:$0xff]
  %v363 = vld [vmem:[%s358 + $0x20] sm:$0xff]
  %v364 = vld [vmem:[%s358 + $0x28] sm:$0xff]
  %v365 = vld [vmem:[%s358 + $0x30] sm:$0x33]
  %v366 = vld [vmem:[%s358 + $0x38] sm:$0x33]
  %v375 = vunpack.c.l.b16 %v359
  %v376 = vunpack.c.h.b16 %v359
  %v377 = vunpack.c.l.b16 %v360
  %v378 = vunpack.c.h.b16 %v360
  %v379 = vunpack.c.l.b16 %v361
  %v380 = vunpack.c.h.b16 %v361
  %v381 = vunpack.c.l.b16 %v362
  %v382 = vunpack.c.h.b16 %v362
  %v383 = vunpack.c.l.b16 %v363
  %v384 = vunpack.c.h.b16 %v363
  %v385 = vunpack.c.l.b16 %v364
  %v386 = vunpack.c.h.b16 %v364
  %v387 = vunpack.c.l.b16 %v365
  %v388 = vunpack.c.h.b16 %v365
  %v389 = vunpack.c.l.b16 %v366
  %v390 = vunpack.c.h.b16 %v366
  %v391 = vpack.c.b16 %v379, %v375
  %v392 = vpack.c.b16 %v380, %v376
  %v393 = vpack.c.b16 %v381, %v377
  %v394 = vpack.c.b16 %v382, %v378
  %v395 = vpack.c.b16 %v387, %v383
  %v396 = vpack.c.b16 %v388, %v384
  %v397 = vpack.c.b16 %v389, %v385
  %v398 = vpack.c.b16 %v390, %v386
  %v404 = vand.u32 %v395, %v67
  %v407 = vand.u32 %v396, %v67
  %v410 = vand.u32 %v397, %v67
  %v413 = vand.u32 %v398, %v67
  %415 = vmatpush.bf16.msra.mxu0 0
  %416 = vmatpush.bf16.msra.mxu0 0
  %417 = vmatpush.bf16.msra.mxu0 0
  %418 = vmatpush.bf16.msra.mxu0 0
  %419 = vmatpush.bf16.msra.mxu0 0
  %420 = vmatpush.bf16.msra.mxu0 0
  %421 = vmatpush.bf16.msra.mxu0 %v404
  %422 = vmatpush.bf16.msra.mxu0 %v391
  %423 = vmatmul.bf16.gmra.mxu0 %v62
  %v424 = vpop.f32.mrf.mxu0
  %v425 = vadd.f32 0.0, %v424
  %v426 = vpop.f32.mrf.mxu0
  %427 = vdwg.mxu0
  %428 = vmatpush.bf16.msra.mxu0 0
  %429 = vmatpush.bf16.msra.mxu0 0
  %430 = vmatpush.bf16.msra.mxu0 0
  %431 = vmatpush.bf16.msra.mxu0 0
  %432 = vmatpush.bf16.msra.mxu0 0
  %433 = vmatpush.bf16.msra.mxu0 0
  %434 = vmatpush.bf16.msra.mxu0 %v407
  %435 = vmatpush.bf16.msra.mxu0 %v392
  %436 = vmatmul.bf16.gmra.mxu0 %v62
  %v437 = vpop.f32.mrf.mxu0
  %v438 = vadd.f32 0.0, %v437
  %v439 = vpop.f32.mrf.mxu0
  %440 = vdwg.mxu0
  %441 = vmatpush.bf16.msra.mxu0 0
  %442 = vmatpush.bf16.msra.mxu0 0
  %443 = vmatpush.bf16.msra.mxu0 0
  %444 = vmatpush.bf16.msra.mxu0 0
  %445 = vmatpush.bf16.msra.mxu0 0
  %446 = vmatpush.bf16.msra.mxu0 0
  %447 = vmatpush.bf16.msra.mxu0 %v410
  %448 = vmatpush.bf16.msra.mxu0 %v393
  %449 = vmatmul.bf16.gmra.mxu0 %v62
  %v450 = vpop.f32.mrf.mxu0
  %v451 = vadd.f32 0.0, %v450
  %v452 = vpop.f32.mrf.mxu0
  %453 = vdwg.mxu0
  %454 = vmatpush.bf16.msra.mxu0 0
  %455 = vmatpush.bf16.msra.mxu0 0
  %456 = vmatpush.bf16.msra.mxu0 0
  %457 = vmatpush.bf16.msra.mxu0 0
  %458 = vmatpush.bf16.msra.mxu0 0
  %459 = vmatpush.bf16.msra.mxu0 0
  %460 = vmatpush.bf16.msra.mxu0 %v413
  %461 = vmatpush.bf16.msra.mxu0 %v394
  %462 = vmatmul.bf16.gmra.mxu0 %v62
  %v463 = vpop.f32.mrf.mxu0
  %v464 = vadd.f32 0.0, %v463
  %v465 = vpop.f32.mrf.mxu0
  %466 = vdwg.mxu0
  %v467 = vmax.f32 %v354, %v425
  %v468 = vmax.f32 %v355, %v438
  %v469 = vmax.f32 %v356, %v451
  %v470 = vmax.f32 %v357, %v464
  %v471 = vld [vmem:[%s2] sm:$0xff]
  %473 = vset.pattern.permute.xlu0 0
  %474 = vperm.xlu0 %473, %v471
  %v475 = vpop.permute.xlu0 %474
  %v477 = vadd.f32 %v467, %v475
  %v478 = vadd.f32 %v468, %v475
  %v479 = vadd.f32 %v469, %v475
  %v480 = vadd.f32 %v470, %v475
  %v481 = vmax.f32 %v477, 0.0
  %v482 = vmax.f32 %v478, 0.0
  %v483 = vmax.f32 %v479, 0.0
  %v484 = vmax.f32 %v480, 0.0
  %485 = vst [vmem:[%s3] sm:$0xff] %v481
  %486 = vst [vmem:[%s3 + $0x8] sm:$0xff] %v482
  %487 = vst [vmem:[%s3 + $0x10] sm:$0xff] %v483
  %vm488 = vcmask 523264
  %489 = vst.msk [vmem:[%s3 + $0x18] sm:$0xff] %vm488, %v484
  // Predicated region
  $region14: #{encoder_decoder_forward.5} parent=0 // pred_check
    _
  $region15: #{encoder_decoder_forward.5} parent=0 // pred_check_branch
    %491 = sbr.rel (0) target = $region17
  $region16: #{encoder_decoder_forward.5} parent=0 // pred_region
    _
  $region17: #{encoder_decoder_forward.5} parent=0 // pred_fallthru
    _
  // Predicated region
  $region18: #{encoder_decoder_forward.5} parent=0 // pred_check
    _
  $region19: #{encoder_decoder_forward.5} parent=0 // pred_check_branch
    %493 = sbr.rel (0) target = $region21
  $region20: #{encoder_decoder_forward.5} parent=0 // pred_region
    _
  $region21: #{encoder_decoder_forward.5} parent=0 // pred_fallthru
    _

// kernel: encoder_decoder_forward.6
$region0: #{encoder_decoder_forward.6}
  #allocation0 [shape = 'u32[]', space=smem, size = 0x4, offset = 0x4, fixed_abs, tag = 'smem constant byte address 0x4 - core index']
  #allocation1 [shape = 'u32[72,128]{1,0:T(1,128)}', space=vmem, size = 0x9000, scoped, tag = 'internal scratch']
  %s0 = inlined_call_operand.vmem [shape: bf16[4,72,112], index: 0, kind: input, shape index: {}]
  %s1 = inlined_call_operand.vmem [shape: bf16[16,72], index: 1, kind: input, shape index: {}]
  %s2 = inlined_call_operand.vmem [shape: f32[16,1], index: 2, kind: input, shape index: {}]
  %s3 = inlined_call_operand.vmem [shape: f32[16,112], index: 3, kind: output, shape index: {}]
  %s4 = sld [smem:[#allocation0]]
  $region22: #{encoder_decoder_forward.6} parent=0
    _
  %s6 = ssub.s32 1, %s4
  %s7 = scalar_select 0, %s6, %s4
  // Predicated region
  $region2: #{encoder_decoder_forward.6} parent=0 // pred_check
    _
  $region3: #{encoder_decoder_forward.6} parent=0 // pred_check_branch
    %9 = sbr.rel (0) target = $region5
  $region4: #{encoder_decoder_forward.6} parent=0 // pred_region
    _
  $region5: #{encoder_decoder_forward.6} parent=0 // pred_fallthru
    _
  // Predicated region
  $region6: #{encoder_decoder_forward.6} parent=0 // pred_check
    _
  $region7: #{encoder_decoder_forward.6} parent=0 // pred_check_branch
    %11 = sbr.rel (0) target = $region9
  $region8: #{encoder_decoder_forward.6} parent=0 // pred_region
    _
  $region9: #{encoder_decoder_forward.6} parent=0 // pred_fallthru
    _
  // Predicated region
  $region10: #{encoder_decoder_forward.6} parent=0 // pred_check
    _
  $region11: #{encoder_decoder_forward.6} parent=0 // pred_check_branch
    %13 = sbr.rel (0) target = $region13
  $region12: #{encoder_decoder_forward.6} parent=0 // pred_region
    _
  $region13: #{encoder_decoder_forward.6} parent=0 // pred_fallthru
    _
  %v15 = vld [vmem:[%s1] sm:$0xf]
  %v16 = vld [vmem:[%s1 + $0x4] sm:$0xf]
  %v17 = vld [vmem:[%s0] sm:$0xf]
  %v18 = vld [vmem:[%s0 + $0x4] sm:$0xf]
  %v19 = vld [vmem:[%s0 + $0x8] sm:$0xf]
  %v20 = vld [vmem:[%s0 + $0xc] sm:$0xf]
  %v21 = vld [vmem:[%s0 + $0x10] sm:$0xf]
  %v22 = vld [vmem:[%s0 + $0x14] sm:$0xf]
  %v23 = vld [vmem:[%s0 + $0x18] sm:$0xf]
  %v24 = vld [vmem:[%s0 + $0x1c] sm:$0xf]
  %v25 = vld [vmem:[%s0 + $0x20] sm:$0xf]
  %v28 = vunpack.c.l.b16 %v15
  %v29 = vunpack.c.l.b16 %v16
  %v30 = vpack.c.b16 %v29, %v28
  %v40 = vunpack.c.l.b16 %v17
  %v41 = vunpack.c.l.b16 %v18
  %v42 = vunpack.c.l.b16 %v19
  %v43 = vunpack.c.l.b16 %v20
  %v44 = vunpack.c.l.b16 %v21
  %v45 = vunpack.c.l.b16 %v22
  %v46 = vunpack.c.l.b16 %v23
  %v47 = vunpack.c.l.b16 %v24
  %v48 = vunpack.c.l.b16 %v25
  %v49 = vpack.c.b16 %v41, %v40
  %v50 = vpack.c.b16 %v43, %v42
  %v51 = vpack.c.b16 %v45, %v44
  %v52 = vpack.c.b16 %v47, %v46
  %v53 = vpack.c.b16 %v48, %v48
  %vm58 = vcmask 588800
  %v60 = vsel %vm58, %v30, 0
  %vm62 = vcmask 1043456
  %v64 = vsel %vm62, %v53, 0
  %66 = vmatpush.bf16.msra.mxu0 0
  %67 = vmatpush.bf16.msra.mxu0 0
  %68 = vmatpush.bf16.msra.mxu0 0
  %69 = vmatpush.bf16.msra.mxu0 %v64
  %70 = vmatpush.bf16.msra.mxu0 %v52
  %71 = vmatpush.bf16.msra.mxu0 %v51
  %72 = vmatpush.bf16.msra.mxu0 %v50
  %73 = vmatpush.bf16.msra.mxu0 %v49
  %74 = vmatmul.bf16.gmra.mxu0 %v60
  %v75 = vpop.f32.mrf.mxu0
  %v76 = vadd.f32 0.0, %v75
  %v77 = vpop.f32.mrf.mxu0
  %v78 = vadd.f32 0.0, %v77
  %79 = vdwg.mxu0
  %s80 = scalar_lea.vmem %s0, 36
  %v81 = vld [vmem:[%s80] sm:$0xf]
  %v82 = vld [vmem:[%s80 + $0x4] sm:$0xf]
  %v83 = vld [vmem:[%s80 + $0x8] sm:$0xf]
  %v84 = vld [vmem:[%s80 + $0xc] sm:$0xf]
  %v85 = vld [vmem:[%s80 + $0x10] sm:$0xf]
  %v86 = vld [vmem:[%s80 + $0x14] sm:$0xf]
  %v87 = vld [vmem:[%s80 + $0x18] sm:$0xf]
  %v88 = vld [vmem:[%s80 + $0x1c] sm:$0xf]
  %v89 = vld [vmem:[%s80 + $0x20] sm:$0xf]
  %v99 = vunpack.c.l.b16 %v81
  %v100 = vunpack.c.l.b16 %v82
  %v101 = vunpack.c.l.b16 %v83
  %v102 = vunpack.c.l.b16 %v84
  %v103 = vunpack.c.l.b16 %v85
  %v104 = vunpack.c.l.b16 %v86
  %v105 = vunpack.c.l.b16 %v87
  %v106 = vunpack.c.l.b16 %v88
  %v107 = vunpack.c.l.b16 %v89
  %v108 = vpack.c.b16 %v100, %v99
  %v109 = vpack.c.b16 %v102, %v101
  %v110 = vpack.c.b16 %v104, %v103
  %v111 = vpack.c.b16 %v106, %v105
  %v112 = vpack.c.b16 %v107, %v107
  %v118 = vsel %vm62, %v112, 0
  %120 = vmatpush.bf16.msra.mxu0 0
  %121 = vmatpush.bf16.msra.mxu0 0
  %122 = vmatpush.bf16.msra.mxu0 0
  %123 = vmatpush.bf16.msra.mxu0 %v118
  %124 = vmatpush.bf16.msra.mxu0 %v111
  %125 = vmatpush.bf16.msra.mxu0 %v110
  %126 = vmatpush.bf16.msra.mxu0 %v109
  %127 = vmatpush.bf16.msra.mxu0 %v108
  %128 = vmatmul.bf16.gmra.mxu0 %v60
  %v129 = vpop.f32.mrf.mxu0
  %v130 = vadd.f32 0.0, %v129
  %v131 = vpop.f32.mrf.mxu0
  %v132 = vadd.f32 0.0, %v131
  %133 = vdwg.mxu0
  %v134 = vmax.f32 %v76, %v130
  %v135 = vmax.f32 %v78, %v132
  %s136 = scalar_lea.vmem %s0, 72
  %v137 = vld [vmem:[%s136] sm:$0xf]
  %v138 = vld [vmem:[%s136 + $0x4] sm:$0xf]
  %v139 = vld [vmem:[%s136 + $0x8] sm:$0xf]
  %v140 = vld [vmem:[%s136 + $0xc] sm:$0xf]
  %v141 = vld [vmem:[%s136 + $0x10] sm:$0xf]
  %v142 = vld [vmem:[%s136 + $0x14] sm:$0xf]
  %v143 = vld [vmem:[%s136 + $0x18] sm:$0xf]
  %v144 = vld [vmem:[%s136 + $0x1c] sm:$0xf]
  %v145 = vld [vmem:[%s136 + $0x20] sm:$0xf]
  %v155 = vunpack.c.l.b16 %v137
  %v156 = vunpack.c.l.b16 %v138
  %v157 = vunpack.c.l.b16 %v139
  %v158 = vunpack.c.l.b16 %v140
  %v159 = vunpack.c.l.b16 %v141
  %v160 = vunpack.c.l.b16 %v142
  %v161 = vunpack.c.l.b16 %v143
  %v162 = vunpack.c.l.b16 %v144
  %v163 = vunpack.c.l.b16 %v145
  %v164 = vpack.c.b16 %v156, %v155
  %v165 = vpack.c.b16 %v158, %v157
  %v166 = vpack.c.b16 %v160, %v159
  %v167 = vpack.c.b16 %v162, %v161
  %v168 = vpack.c.b16 %v163, %v163
  %v174 = vsel %vm62, %v168, 0
  %176 = vmatpush.bf16.msra.mxu0 0
  %177 = vmatpush.bf16.msra.mxu0 0
  %178 = vmatpush.bf16.msra.mxu0 0
  %179 = vmatpush.bf16.msra.mxu0 %v174
  %180 = vmatpush.bf16.msra.mxu0 %v167
  %181 = vmatpush.bf16.msra.mxu0 %v166
  %182 = vmatpush.bf16.msra.mxu0 %v165
  %183 = vmatpush.bf16.msra.mxu0 %v164
  %184 = vmatmul.bf16.gmra.mxu0 %v60
  %v185 = vpop.f32.mrf.mxu0
  %v186 = vadd.f32 0.0, %v185
  %v187 = vpop.f32.mrf.mxu0
  %v188 = vadd.f32 0.0, %v187
  %189 = vdwg.mxu0
  %v190 = vmax.f32 %v134, %v186
  %v191 = vmax.f32 %v135, %v188
  %s192 = scalar_lea.vmem %s0, 108
  %v193 = vld [vmem:[%s192] sm:$0xf]
  %v194 = vld [vmem:[%s192 + $0x4] sm:$0xf]
  %v195 = vld [vmem:[%s192 + $0x8] sm:$0xf]
  %v196 = vld [vmem:[%s192 + $0xc] sm:$0xf]
  %v197 = vld [vmem:[%s192 + $0x10] sm:$0xf]
  %v198 = vld [vmem:[%s192 + $0x14] sm:$0xf]
  %v199 = vld [vmem:[%s192 + $0x18] sm:$0xf]
  %v200 = vld [vmem:[%s192 + $0x1c] sm:$0xf]
  %v201 = vld [vmem:[%s192 + $0x20] sm:$0xf]
  %v211 = vunpack.c.l.b16 %v193
  %v212 = vunpack.c.l.b16 %v194
  %v213 = vunpack.c.l.b16 %v195
  %v214 = vunpack.c.l.b16 %v196
  %v215 = vunpack.c.l.b16 %v197
  %v216 = vunpack.c.l.b16 %v198
  %v217 = vunpack.c.l.b16 %v199
  %v218 = vunpack.c.l.b16 %v200
  %v219 = vunpack.c.l.b16 %v201
  %v220 = vpack.c.b16 %v212, %v211
  %v221 = vpack.c.b16 %v214, %v213
  %v222 = vpack.c.b16 %v216, %v215
  %v223 = vpack.c.b16 %v218, %v217
  %v224 = vpack.c.b16 %v219, %v219
  %v230 = vsel %vm62, %v224, 0
  %232 = vmatpush.bf16.msra.mxu0 0
  %233 = vmatpush.bf16.msra.mxu0 0
  %234 = vmatpush.bf16.msra.mxu0 0
  %235 = vmatpush.bf16.msra.mxu0 %v230
  %236 = vmatpush.bf16.msra.mxu0 %v223
  %237 = vmatpush.bf16.msra.mxu0 %v222
  %238 = vmatpush.bf16.msra.mxu0 %v221
  %239 = vmatpush.bf16.msra.mxu0 %v220
  %240 = vmatmul.bf16.gmra.mxu0 %v60
  %v241 = vpop.f32.mrf.mxu0
  %v242 = vadd.f32 0.0, %v241
  %v243 = vpop.f32.mrf.mxu0
  %v244 = vadd.f32 0.0, %v243
  %245 = vdwg.mxu0
  %v246 = vmax.f32 %v190, %v242
  %v247 = vmax.f32 %v191, %v244
  %v248 = vld [vmem:[%s2] sm:$0xff]
  %v249 = vld [vmem:[%s2 + $0x8] sm:$0xff]
  %251 = vset.pattern.permute.xlu0 0
  %252 = vperm.xlu0 %251, %v248
  %v253 = vpop.permute.xlu0 %252
  %256 = vset.pattern.permute.xlu0 0
  %257 = vperm.xlu0 %256, %v249
  %v258 = vpop.permute.xlu0 %257
  %v260 = vadd.f32 %v246, %v253
  %v261 = vadd.f32 %v247, %v258
  %v262 = vmax.f32 %v260, 0.0
  %v263 = vmax.f32 %v261, 0.0
  %vm264 = vcmask 916480
  %265 = vst.msk [vmem:[%s3] sm:$0xff] %vm264, %v262
  %266 = vst.msk [vmem:[%s3 + $0x8] sm:$0xff] %vm264, %v263
  // Predicated region
  $region14: #{encoder_decoder_forward.6} parent=0 // pred_check
    _
  $region15: #{encoder_decoder_forward.6} parent=0 // pred_check_branch
    %268 = sbr.rel (0) target = $region17
  $region16: #{encoder_decoder_forward.6} parent=0 // pred_region
    _
  $region17: #{encoder_decoder_forward.6} parent=0 // pred_fallthru
    _
  // Predicated region
  $region18: #{encoder_decoder_forward.6} parent=0 // pred_check
    _
  $region19: #{encoder_decoder_forward.6} parent=0 // pred_check_branch
    %270 = sbr.rel (0) target = $region21
  $region20: #{encoder_decoder_forward.6} parent=0 // pred_region
    _
  $region21: #{encoder_decoder_forward.6} parent=0 // pred_fallthru
    _

// kernel: encoder_decoder_forward.8
$region0: #{encoder_decoder_forward.8}
  #allocation0 [shape = 'u32[]', space=smem, size = 0x4, offset = 0x4, fixed_abs, tag = 'smem constant byte address 0x4 - core index']
  #allocation1 [shape = 'u32[72,128]{1,0:T(1,128)}', space=vmem, size = 0x9000, scoped, tag = 'internal scratch']
  %s0 = inlined_call_operand.vmem [shape: bf16[1,144,64], index: 0, kind: input, shape index: {}]
  %s1 = inlined_call_operand.vmem [shape: bf16[8,144], index: 1, kind: input, shape index: {}]
  %s2 = inlined_call_operand.vmem [shape: f32[8,1], index: 2, kind: input, shape index: {}]
  %s3 = inlined_call_operand.vmem [shape: f32[8,64], index: 3, kind: output, shape index: {}]
  %s4 = sld [smem:[#allocation0]]
  $region22: #{encoder_decoder_forward.8} parent=0
    _
  %s6 = ssub.s32 1, %s4
  %s7 = scalar_select 0, %s6, %s4
  // Predicated region
  $region2: #{encoder_decoder_forward.8} parent=0 // pred_check
    _
  $region3: #{encoder_decoder_forward.8} parent=0 // pred_check_branch
    %9 = sbr.rel (0) target = $region5
  $region4: #{encoder_decoder_forward.8} parent=0 // pred_region
    _
  $region5: #{encoder_decoder_forward.8} parent=0 // pred_fallthru
    _
  // Predicated region
  $region6: #{encoder_decoder_forward.8} parent=0 // pred_check
    _
  $region7: #{encoder_decoder_forward.8} parent=0 // pred_check_branch
    %11 = sbr.rel (0) target = $region9
  $region8: #{encoder_decoder_forward.8} parent=0 // pred_region
    _
  $region9: #{encoder_decoder_forward.8} parent=0 // pred_fallthru
    _
  // Predicated region
  $region10: #{encoder_decoder_forward.8} parent=0 // pred_check
    _
  $region11: #{encoder_decoder_forward.8} parent=0 // pred_check_branch
    %13 = sbr.rel (0) target = $region13
  $region12: #{encoder_decoder_forward.8} parent=0 // pred_region
    _
  $region13: #{encoder_decoder_forward.8} parent=0 // pred_fallthru
    _
  %v15 = vld [vmem:[%s1] sm:$0xff]
  %v16 = vld [vmem:[%s0] sm:$0xf]
  %v17 = vld [vmem:[%s0 + $0x4] sm:$0xf]
  %v18 = vld [vmem:[%s0 + $0x8] sm:$0xf]
  %v19 = vld [vmem:[%s0 + $0xc] sm:$0xf]
  %v20 = vld [vmem:[%s0 + $0x10] sm:$0xf]
  %v21 = vld [vmem:[%s0 + $0x14] sm:$0xf]
  %v22 = vld [vmem:[%s0 + $0x18] sm:$0xf]
  %v23 = vld [vmem:[%s0 + $0x1c] sm:$0xf]
  %v24 = vld [vmem:[%s0 + $0x20] sm:$0xf]
  %v25 = vld [vmem:[%s0 + $0x24] sm:$0xf]
  %v26 = vld [vmem:[%s0 + $0x28] sm:$0xf]
  %v27 = vld [vmem:[%s0 + $0x2c] sm:$0xf]
  %v28 = vld [vmem:[%s0 + $0x30] sm:$0xf]
  %v29 = vld [vmem:[%s0 + $0x34] sm:$0xf]
  %v30 = vld [vmem:[%s0 + $0x38] sm:$0xf]
  %v31 = vld [vmem:[%s0 + $0x3c] sm:$0xf]
  %v32 = vld [vmem:[%s0 + $0x40] sm:$0xf]
  %v33 = vld [vmem:[%s0 + $0x44] sm:$0xf]
  %v34 = vld [vmem:[%s2] sm:$0xff]
  %36 = vset.pattern.permute.xlu0 0
  %37 = vperm.xlu0 %36, %v34
  %v38 = vpop.permute.xlu0 %37
  %v41 = vunpack.c.l.b16 %v15
  %v42 = vunpack.c.h.b16 %v15
  %v43 = vpack.c.b16 %v41, %v41
  %v44 = vpack.c.b16 %v42, %v42
  %v64 = vunpack.c.l.b16 %v16
  %v65 = vunpack.c.l.b16 %v17
  %v66 = vunpack.c.l.b16 %v18
  %v67 = vunpack.c.l.b16 %v19
  %v68 = vunpack.c.l.b16 %v20
  %v69 = vunpack.c.l.b16 %v21
  %v70 = vunpack.c.l.b16 %v22
  %v71 = vunpack.c.l.b16 %v23
  %v72 = vunpack.c.l.b16 %v24
  %v73 = vunpack.c.l.b16 %v25
  %v74 = vunpack.c.l.b16 %v26
  %v75 = vunpack.c.l.b16 %v27
  %v76 = vunpack.c.l.b16 %v28
  %v77 = vunpack.c.l.b16 %v29
  %v78 = vunpack.c.l.b16 %v30
  %v79 = vunpack.c.l.b16 %v31
  %v80 = vunpack.c.l.b16 %v32
  %v81 = vunpack.c.l.b16 %v33
  %v82 = vpack.c.b16 %v65, %v64
  %v83 = vpack.c.b16 %v67, %v66
  %v84 = vpack.c.b16 %v69, %v68
  %v85 = vpack.c.b16 %v71, %v70
  %v86 = vpack.c.b16 %v73, %v72
  %v87 = vpack.c.b16 %v75, %v74
  %v88 = vpack.c.b16 %v77, %v76
  %v89 = vpack.c.b16 %v79, %v78
  %v90 = vpack.c.b16 %v81, %v80
  %vm100 = vcmask 130048
  %v102 = vsel %vm100, %v44, 0
  %104 = vmatpush.bf16.msra.mxu0 %v89
  %105 = vmatpush.bf16.msra.mxu0 %v88
  %106 = vmatpush.bf16.msra.mxu0 %v87
  %107 = vmatpush.bf16.msra.mxu0 %v86
  %108 = vmatpush.bf16.msra.mxu0 %v85
  %109 = vmatpush.bf16.msra.mxu0 %v84
  %110 = vmatpush.bf16.msra.mxu0 %v83
  %111 = vmatpush.bf16.msra.mxu0 %v82
  %112 = vmatmul.bf16.gmra.mxu0 %v43
  %v113 = vpop.f32.mrf.mxu0
  %v114 = vadd.f32 %v38, %v113
  %v115 = vpop.f32.mrf.mxu0
  %116 = vdwg.mxu0
  %117 = vmatpush.bf16.msra.mxu0 0
  %118 = vmatpush.bf16.msra.mxu0 0
  %119 = vmatpush.bf16.msra.mxu0 0
  %120 = vmatpush.bf16.msra.mxu0 0
  %121 = vmatpush.bf16.msra.mxu0 0
  %122 = vmatpush.bf16.msra.mxu0 0
  %123 = vmatpush.bf16.msra.mxu0 0
  %124 = vmatpush.bf16.msra.mxu0 %v90
  %125 = vmatmul.bf16.gmra.mxu0 %v102
  %v126 = vpop.f32.mrf.mxu0
  %v127 = vadd.f32 %v114, %v126
  %v128 = vpop.f32.mrf.mxu0
  %129 = vdwg.mxu0
  %v130 = vmax.f32 %v127, 0.0
  %vm131 = vcmask 523264
  %132 = vst.msk [vmem:[%s3] sm:$0xff] %vm131, %v130
  // Predicated region
  $region14: #{encoder_decoder_forward.8} parent=0 // pred_check
    _
  $region15: #{encoder_decoder_forward.8} parent=0 // pred_check_branch
    %134 = sbr.rel (0) target = $region17
  $region16: #{encoder_decoder_forward.8} parent=0 // pred_region
    _
  $region17: #{encoder_decoder_forward.8} parent=0 // pred_fallthru
    _
  // Predicated region
  $region18: #{encoder_decoder_forward.8} parent=0 // pred_check
    _
  $region19: #{encoder_decoder_forward.8} parent=0 // pred_check_branch
    %136 = sbr.rel (0) target = $region21
  $region20: #{encoder_decoder_forward.8} parent=0 // pred_region
    _
  $region21: #{encoder_decoder_forward.8} parent=0 // pred_fallthru
    _

// kernel: encoder_decoder_forward.7
$region0: #{encoder_decoder_forward.7}
  #allocation0 [shape = 'u32[]', space=smem, size = 0x4, offset = 0x4, fixed_abs, tag = 'smem constant byte address 0x4 - core index']
  #allocation1 [shape = 'u32[72,128]{1,0:T(1,128)}', space=vmem, size = 0x9000, scoped, tag = 'internal scratch']
  #allocation2 [shape = 'f32[7,32]{1,0:T(8,128)}', space=vmem, size = 0x1000, scoped, tag = 'scratch operand']
  %s0 = inlined_call_operand.vmem [shape: bf16[7,256], index: 0, kind: input, shape index: {}]
  %s1 = inlined_call_operand.vmem [shape: bf16[256,64], index: 1, kind: input, shape index: {}]
  %s2 = inlined_call_operand.vmem [shape: f32[1,64], index: 2, kind: input, shape index: {}]
  %s3 = inlined_call_operand.vmem [shape: bf16[64,128], index: 3, kind: input, shape index: {}]
  %s4 = inlined_call_operand.vmem [shape: bf16[32,128], index: 4, kind: input, shape index: {}]
  %s5 = inlined_call_operand.vmem [shape: f32[1,128], index: 5, kind: input, shape index: {}]
  %s6 = inlined_call_operand.vmem [shape: bf16[32,128], index: 6, kind: input, shape index: {}]
  %s7 = inlined_call_operand.vmem [shape: bf16[32,128], index: 7, kind: input, shape index: {}]
  %s8 = inlined_call_operand.vmem [shape: f32[1,128], index: 8, kind: input, shape index: {}]
  %s9 = inlined_call_operand.vmem [shape: bf16[32,32], index: 9, kind: input, shape index: {}]
  %s10 = inlined_call_operand.vmem [shape: f32[1,32], index: 10, kind: input, shape index: {}]
  %s11 = inlined_call_operand.vmem [shape: bf16[32,256], index: 11, kind: input, shape index: {}]
  %s12 = inlined_call_operand.vmem [shape: f32[1,256], index: 12, kind: input, shape index: {}]
  %s13 = inlined_call_operand.vmem [shape: f32[1,256], index: 13, kind: output, shape index: {}]
  %s14 = sld [smem:[#allocation0]]
  $region62: #{encoder_decoder_forward.7} parent=0
    _
  %s16 = ssub.s32 1, %s14
  %s17 = scalar_select 0, %s16, %s14
  // Predicated region
  $region2: #{encoder_decoder_forward.7} parent=0 // pred_check
    _
  $region3: #{encoder_decoder_forward.7} parent=0 // pred_check_branch
    %19 = sbr.rel (0) target = $region5
  $region4: #{encoder_decoder_forward.7} parent=0 // pred_region
    _
  $region5: #{encoder_decoder_forward.7} parent=0 // pred_fallthru
    _
  // Predicated region
  $region6: #{encoder_decoder_forward.7} parent=0 // pred_check
    _
  $region7: #{encoder_decoder_forward.7} parent=0 // pred_check_branch
    %21 = sbr.rel (0) target = $region9
  $region8: #{encoder_decoder_forward.7} parent=0 // pred_region
    _
  $region9: #{encoder_decoder_forward.7} parent=0 // pred_fallthru
    _
  // Predicated region
  $region10: #{encoder_decoder_forward.7} parent=0 // pred_check
    _
  $region11: #{encoder_decoder_forward.7} parent=0 // pred_check_branch
    %23 = sbr.rel (0) target = $region13
  $region12: #{encoder_decoder_forward.7} parent=0 // pred_region
    _
  $region13: #{encoder_decoder_forward.7} parent=0 // pred_fallthru
    _
  // Predicated region
  $region14: #{encoder_decoder_forward.7} parent=0 // pred_check
    _
  $region15: #{encoder_decoder_forward.7} parent=0 // pred_check_branch
    %25 = sbr.rel (0) target = $region17
  $region16: #{encoder_decoder_forward.7} parent=0 // pred_region
    _
  $region17: #{encoder_decoder_forward.7} parent=0 // pred_fallthru
    _
  // Predicated region
  $region18: #{encoder_decoder_forward.7} parent=0 // pred_check
    _
  $region19: #{encoder_decoder_forward.7} parent=0 // pred_check_branch
    %27 = sbr.rel (0) target = $region21
  $region20: #{encoder_decoder_forward.7} parent=0 // pred_region
    _
  $region21: #{encoder_decoder_forward.7} parent=0 // pred_fallthru
    _
  // Predicated region
  $region22: #{encoder_decoder_forward.7} parent=0 // pred_check
    _
  $region23: #{encoder_decoder_forward.7} parent=0 // pred_check_branch
    %29 = sbr.rel (0) target = $region25
  $region24: #{encoder_decoder_forward.7} parent=0 // pred_region
    _
  $region25: #{encoder_decoder_forward.7} parent=0 // pred_fallthru
    _
  // Predicated region
  $region26: #{encoder_decoder_forward.7} parent=0 // pred_check
    _
  $region27: #{encoder_decoder_forward.7} parent=0 // pred_check_branch
    %31 = sbr.rel (0) target = $region29
  $region28: #{encoder_decoder_forward.7} parent=0 // pred_region
    _
  $region29: #{encoder_decoder_forward.7} parent=0 // pred_fallthru
    _
  // Predicated region
  $region30: #{encoder_decoder_forward.7} parent=0 // pred_check
    _
  $region31: #{encoder_decoder_forward.7} parent=0 // pred_check_branch
    %33 = sbr.rel (0) target = $region33
  $region32: #{encoder_decoder_forward.7} parent=0 // pred_region
    _
  $region33: #{encoder_decoder_forward.7} parent=0 // pred_fallthru
    _
  // Predicated region
  $region34: #{encoder_decoder_forward.7} parent=0 // pred_check
    _
  $region35: #{encoder_decoder_forward.7} parent=0 // pred_check_branch
    %35 = sbr.rel (0) target = $region37
  $region36: #{encoder_decoder_forward.7} parent=0 // pred_region
    _
  $region37: #{encoder_decoder_forward.7} parent=0 // pred_fallthru
    _
  // Predicated region
  $region38: #{encoder_decoder_forward.7} parent=0 // pred_check
    _
  $region39: #{encoder_decoder_forward.7} parent=0 // pred_check_branch
    %37 = sbr.rel (0) target = $region41
  $region40: #{encoder_decoder_forward.7} parent=0 // pred_region
    _
  $region41: #{encoder_decoder_forward.7} parent=0 // pred_fallthru
    _
  // Predicated region
  $region42: #{encoder_decoder_forward.7} parent=0 // pred_check
    _
  $region43: #{encoder_decoder_forward.7} parent=0 // pred_check_branch
    %39 = sbr.rel (0) target = $region45
  $region44: #{encoder_decoder_forward.7} parent=0 // pred_region
    _
  $region45: #{encoder_decoder_forward.7} parent=0 // pred_fallthru
    _
  // Predicated region
  $region46: #{encoder_decoder_forward.7} parent=0 // pred_check
    _
  $region47: #{encoder_decoder_forward.7} parent=0 // pred_check_branch
    %41 = sbr.rel (0) target = $region49
  $region48: #{encoder_decoder_forward.7} parent=0 // pred_region
    _
  $region49: #{encoder_decoder_forward.7} parent=0 // pred_fallthru
    _
  // Predicated region
  $region50: #{encoder_decoder_forward.7} parent=0 // pred_check
    _
  $region51: #{encoder_decoder_forward.7} parent=0 // pred_check_branch
    %43 = sbr.rel (0) target = $region53
  $region52: #{encoder_decoder_forward.7} parent=0 // pred_region
    _
  $region53: #{encoder_decoder_forward.7} parent=0 // pred_fallthru
    _
  %v45 = vld [vmem:[%s0] sm:$0xff]
  %v46 = vld [vmem:[%s1] sm:$0xf]
  %v47 = vld [vmem:[%s1 + $0x4] sm:$0xf]
  %v48 = vld [vmem:[%s1 + $0x8] sm:$0xf]
  %v49 = vld [vmem:[%s1 + $0xc] sm:$0xf]
  %v50 = vld [vmem:[%s1 + $0x10] sm:$0xf]
  %v51 = vld [vmem:[%s1 + $0x14] sm:$0xf]
  %v52 = vld [vmem:[%s1 + $0x18] sm:$0xf]
  %v53 = vld [vmem:[%s1 + $0x1c] sm:$0xf]
  %v54 = vld [vmem:[%s1 + $0x20] sm:$0xf]
  %v55 = vld [vmem:[%s1 + $0x24] sm:$0xf]
  %v56 = vld [vmem:[%s1 + $0x28] sm:$0xf]
  %v57 = vld [vmem:[%s1 + $0x2c] sm:$0xf]
  %v58 = vld [vmem:[%s1 + $0x30] sm:$0xf]
  %v59 = vld [vmem:[%s1 + $0x34] sm:$0xf]
  %v60 = vld [vmem:[%s1 + $0x38] sm:$0xf]
  %v61 = vld [vmem:[%s1 + $0x3c] sm:$0xf]
  %v62 = vld [vmem:[%s1 + $0x40] sm:$0xf]
  %v63 = vld [vmem:[%s1 + $0x44] sm:$0xf]
  %v64 = vld [vmem:[%s1 + $0x48] sm:$0xf]
  %v65 = vld [vmem:[%s1 + $0x4c] sm:$0xf]
  %v66 = vld [vmem:[%s1 + $0x50] sm:$0xf]
  %v67 = vld [vmem:[%s1 + $0x54] sm:$0xf]
  %v68 = vld [vmem:[%s1 + $0x58] sm:$0xf]
  %v69 = vld [vmem:[%s1 + $0x5c] sm:$0xf]
  %v70 = vld [vmem:[%s1 + $0x60] sm:$0xf]
  %v71 = vld [vmem:[%s1 + $0x64] sm:$0xf]
  %v72 = vld [vmem:[%s1 + $0x68] sm:$0xf]
  %v73 = vld [vmem:[%s1 + $0x6c] sm:$0xf]
  %v74 = vld [vmem:[%s1 + $0x70] sm:$0xf]
  %v75 = vld [vmem:[%s1 + $0x74] sm:$0xf]
  %v76 = vld [vmem:[%s1 + $0x78] sm:$0xf]
  %v77 = vld [vmem:[%s1 + $0x7c] sm:$0xf]
  %v78 = vld [vmem:[%s2] sm:$0x1]
  %v80 = vperm.slane %v78, 0
  %v83 = vunpack.c.l.b16 %v45
  %v84 = vunpack.c.h.b16 %v45
  %v85 = vpack.c.b16 %v83, %v83
  %v86 = vpack.c.b16 %v84, %v84
  %v121 = vunpack.c.l.b16 %v46
  %v122 = vunpack.c.l.b16 %v47
  %v123 = vunpack.c.l.b16 %v48
  %v124 = vunpack.c.l.b16 %v49
  %v125 = vunpack.c.l.b16 %v50
  %v126 = vunpack.c.l.b16 %v51
  %v127 = vunpack.c.l.b16 %v52
  %v128 = vunpack.c.l.b16 %v53
  %v129 = vunpack.c.l.b16 %v54
  %v130 = vunpack.c.l.b16 %v55
  %v131 = vunpack.c.l.b16 %v56
  %v132 = vunpack.c.l.b16 %v57
  %v133 = vunpack.c.l.b16 %v58
  %v134 = vunpack.c.l.b16 %v59
  %v135 = vunpack.c.l.b16 %v60
  %v136 = vunpack.c.l.b16 %v61
  %v137 = vunpack.c.l.b16 %v62
  %v138 = vunpack.c.l.b16 %v63
  %v139 = vunpack.c.l.b16 %v64
  %v140 = vunpack.c.l.b16 %v65
  %v141 = vunpack.c.l.b16 %v66
  %v142 = vunpack.c.l.b16 %v67
  %v143 = vunpack.c.l.b16 %v68
  %v144 = vunpack.c.l.b16 %v69
  %v145 = vunpack.c.l.b16 %v70
  %v146 = vunpack.c.l.b16 %v71
  %v147 = vunpack.c.l.b16 %v72
  %v148 = vunpack.c.l.b16 %v73
  %v149 = vunpack.c.l.b16 %v74
  %v150 = vunpack.c.l.b16 %v75
  %v151 = vunpack.c.l.b16 %v76
  %v152 = vunpack.c.l.b16 %v77
  %v153 = vpack.c.b16 %v122, %v121
  %v154 = vpack.c.b16 %v124, %v123
  %v155 = vpack.c.b16 %v126, %v125
  %v156 = vpack.c.b16 %v128, %v127
  %v157 = vpack.c.b16 %v130, %v129
  %v158 = vpack.c.b16 %v132, %v131
  %v159 = vpack.c.b16 %v134, %v133
  %v160 = vpack.c.b16 %v136, %v135
  %v161 = vpack.c.b16 %v138, %v137
  %v162 = vpack.c.b16 %v140, %v139
  %v163 = vpack.c.b16 %v142, %v141
  %v164 = vpack.c.b16 %v144, %v143
  %v165 = vpack.c.b16 %v146, %v145
  %v166 = vpack.c.b16 %v148, %v147
  %v167 = vpack.c.b16 %v150, %v149
  %v168 = vpack.c.b16 %v152, %v151
  %185 = vmatpush.bf16.msra.mxu0 %v160
  %186 = vmatpush.bf16.msra.mxu0 %v159
  %187 = vmatpush.bf16.msra.mxu0 %v158
  %188 = vmatpush.bf16.msra.mxu0 %v157
  %189 = vmatpush.bf16.msra.mxu0 %v156
  %190 = vmatpush.bf16.msra.mxu0 %v155
  %191 = vmatpush.bf16.msra.mxu0 %v154
  %192 = vmatpush.bf16.msra.mxu0 %v153
  %193 = vmatmul.bf16.gmra.mxu0 %v85
  %v194 = vpop.f32.mrf.mxu0
  %v195 = vadd.f32 %v80, %v194
  %v196 = vpop.f32.mrf.mxu0
  %197 = vdwg.mxu0
  %198 = vmatpush.bf16.msra.mxu0 %v168
  %199 = vmatpush.bf16.msra.mxu0 %v167
  %200 = vmatpush.bf16.msra.mxu0 %v166
  %201 = vmatpush.bf16.msra.mxu0 %v165
  %202 = vmatpush.bf16.msra.mxu0 %v164
  %203 = vmatpush.bf16.msra.mxu0 %v163
  %204 = vmatpush.bf16.msra.mxu0 %v162
  %205 = vmatpush.bf16.msra.mxu0 %v161
  %206 = vmatmul.bf16.gmra.mxu0 %v86
  %v207 = vpop.f32.mrf.mxu0
  %v208 = vadd.f32 %v195, %v207
  %v209 = vpop.f32.mrf.mxu0
  %210 = vdwg.mxu0
  %v211 = vmax.f32 %v208, 0.0
  %v212 = vpack.c.bf16 %v211, %v211
  %v213 = vld [vmem:[%s3] sm:$0xf]
  %v214 = vld [vmem:[%s3 + $0x4] sm:$0xf]
  %v215 = vld [vmem:[%s3 + $0x8] sm:$0xf]
  %v216 = vld [vmem:[%s3 + $0xc] sm:$0xf]
  %v217 = vld [vmem:[%s3 + $0x10] sm:$0xf]
  %v218 = vld [vmem:[%s3 + $0x14] sm:$0xf]
  %v219 = vld [vmem:[%s3 + $0x18] sm:$0xf]
  %v220 = vld [vmem:[%s3 + $0x1c] sm:$0xf]
  %v221 = vld [vmem:[%s5] sm:$0x1]
  %v223 = vperm.slane %v221, 0
  %v233 = vunpack.c.l.b16 %v213
  %v234 = vunpack.c.l.b16 %v214
  %v235 = vunpack.c.l.b16 %v215
  %v236 = vunpack.c.l.b16 %v216
  %v237 = vunpack.c.l.b16 %v217
  %v238 = vunpack.c.l.b16 %v218
  %v239 = vunpack.c.l.b16 %v219
  %v240 = vunpack.c.l.b16 %v220
  %v241 = vpack.c.b16 %v234, %v233
  %v242 = vpack.c.b16 %v236, %v235
  %v243 = vpack.c.b16 %v238, %v237
  %v244 = vpack.c.b16 %v240, %v239
  %vm249 = vcmask 523264
  %v251 = vsel %vm249, %v212, 0
  %253 = vmatpush.bf16.msra.mxu0 0
  %254 = vmatpush.bf16.msra.mxu0 0
  %255 = vmatpush.bf16.msra.mxu0 0
  %256 = vmatpush.bf16.msra.mxu0 0
  %257 = vmatpush.bf16.msra.mxu0 %v244
  %258 = vmatpush.bf16.msra.mxu0 %v243
  %259 = vmatpush.bf16.msra.mxu0 %v242
  %260 = vmatpush.bf16.msra.mxu0 %v241
  %261 = vmatmul.bf16.gmra.mxu0 %v251
  %v262 = vpop.f32.mrf.mxu0
  %v263 = vadd.f32 %v223, %v262
  %v264 = vpop.f32.mrf.mxu0
  %265 = vdwg.mxu0
  %v266 = vld [vmem:[%s4] sm:$0xf]
  %v267 = vld [vmem:[%s4 + $0x4] sm:$0xf]
  %v268 = vld [vmem:[%s4 + $0x8] sm:$0xf]
  %v269 = vld [vmem:[%s4 + $0xc] sm:$0xf]
  %v274 = vunpack.c.l.b16 %v266
  %v275 = vunpack.c.l.b16 %v267
  %v276 = vunpack.c.l.b16 %v268
  %v277 = vunpack.c.l.b16 %v269
  %v278 = vpack.c.b16 %v275, %v274
  %v279 = vpack.c.b16 %v277, %v276
  %vm282 = vcmask 261120
  %v284 = vsel %vm282, 0, 0
  %286 = vmatpush.bf16.msra.mxu0 0
  %287 = vmatpush.bf16.msra.mxu0 0
  %288 = vmatpush.bf16.msra.mxu0 0
  %289 = vmatpush.bf16.msra.mxu0 0
  %290 = vmatpush.bf16.msra.mxu0 0
  %291 = vmatpush.bf16.msra.mxu0 0
  %292 = vmatpush.bf16.msra.mxu0 %v279
  %293 = vmatpush.bf16.msra.mxu0 %v278
  %294 = vmatmul.bf16.gmra.mxu0 %v284
  %v295 = vpop.f32.mrf.mxu0
  %v296 = vadd.f32 0.0, %v295
  %v297 = vpop.f32.mrf.mxu0
  %298 = vdwg.mxu0
  %v299 = vadd.f32 %v263, %v296
  %v300 = vxor.u32 %v299, 2147483648
  %v301 = vmul.f32 %v300, 1.442695
  %v302 = vpow.pop %v301
  %v303 = vadd.f32 %v302, 1.0
  %v304 = vrcp.pop %v303
  %v305 = vmul.f32 %v303, %v304
  %v306 = vsub.f32 1.0, %v305
  %v307 = vmul.f32 %v304, %v306
  %v308 = vadd.f32 %v304, %v307
  %vm309 = vweird.f32 %v303
  %vm310 = vweird.f32 %v304
  %vm311 = vmor %vm309, %vm310
  %v312 = vsel %vm311, %v304, %v308
  %v313 = vand.u32 2147483647, %v303
  %vm314 = vcmp.eq.f32.partialorder %v313, 8.507059e+37
  %v315 = vand.u32 %v303, 2147483648
  %v316 = vor.u32 1.1754944e-38, %v315
  %v317 = vsel %vm314, %v316, %v312
  %v318 = vmul.f32 1.0, %v317
  %v319 = vtanh.pop %v299
  %v320 = vmul.f32 %v318, 0.0
  %322 = vrot.lane.b32.xlu0 %v319, 64
  %v323 = vpop.permute.xlu0 %322
  %v325 = vmul.f32 %v318, %v323
  %327 = vrot.lane.b32.xlu0 %v325, 32
  %v328 = vpop.permute.xlu0 %327
  %v330 = vadd.f32 %v320, %v328
  %v331 = vtanh.pop %v330
  %333 = vrot.lane.b32.xlu0 %v331, 64
  %v334 = vpop.permute.xlu0 %333
  %v336 = vmul.f32 %v318, %v334
  %338 = vrot.lane.b32.xlu0 %v336, 32
  %v339 = vpop.permute.xlu0 %338
  %vm341 = vcmask 253952
  %342 = vst.msk [vmem:[#allocation2] sm:$0x1] %vm341, %v339
  %v343 = vpack.c.bf16 %v336, %v336
  %v344 = vld [vmem:[%s4] sm:$0xf]
  %v345 = vld [vmem:[%s4 + $0x4] sm:$0xf]
  %v346 = vld [vmem:[%s4 + $0x8] sm:$0xf]
  %v347 = vld [vmem:[%s4 + $0xc] sm:$0xf]
  %349 = vrot.lane.b32.xlu0 %v343, 32
  %v350 = vpop.permute.xlu0 %349
  %v355 = vunpack.c.l.b16 %v344
  %v356 = vunpack.c.l.b16 %v345
  %v357 = vunpack.c.l.b16 %v346
  %v358 = vunpack.c.l.b16 %v347
  %v359 = vpack.c.b16 %v356, %v355
  %v360 = vpack.c.b16 %v358, %v357
  %v364 = vsel %vm282, %v350, 0
  %366 = vmatpush.bf16.msra.mxu0 0
  %367 = vmatpush.bf16.msra.mxu0 0
  %368 = vmatpush.bf16.msra.mxu0 0
  %369 = vmatpush.bf16.msra.mxu0 0
  %370 = vmatpush.bf16.msra.mxu0 0
  %371 = vmatpush.bf16.msra.mxu0 0
  %372 = vmatpush.bf16.msra.mxu0 %v360
  %373 = vmatpush.bf16.msra.mxu0 %v359
  %374 = vmatmul.bf16.gmra.mxu0 %v364
  %v375 = vpop.f32.mrf.mxu0
  %v376 = vadd.f32 0.0, %v375
  %v377 = vpop.f32.mrf.mxu0
  %378 = vdwg.mxu0
  %v380 = vrot.slane %v376, 7
  %v382 = vadd.f32 %v263, %v380
  %v383 = vxor.u32 %v382, 2147483648
  %v384 = vmul.f32 %v383, 1.442695
  %v385 = vpow.pop %v384
  %v386 = vadd.f32 %v385, 1.0
  %v387 = vrcp.pop %v386
  %v388 = vmul.f32 %v386, %v387
  %v389 = vsub.f32 1.0, %v388
  %v390 = vmul.f32 %v387, %v389
  %v391 = vadd.f32 %v387, %v390
  %vm392 = vweird.f32 %v386
  %vm393 = vweird.f32 %v387
  %vm394 = vmor %vm392, %vm393
  %v395 = vsel %vm394, %v387, %v391
  %v396 = vand.u32 2147483647, %v386
  %vm397 = vcmp.eq.f32.partialorder %v396, 8.507059e+37
  %v398 = vand.u32 %v386, 2147483648
  %v399 = vor.u32 1.1754944e-38, %v398
  %v400 = vsel %vm397, %v399, %v395
  %v401 = vmul.f32 1.0, %v400
  %v402 = vtanh.pop %v382
  %v404 = vrot.slane %v330, 7
  %v406 = vmul.f32 %v401, %v404
  %408 = vrot.lane.b32.xlu0 %v402, 64
  %v409 = vpop.permute.xlu0 %408
  %v411 = vmul.f32 %v401, %v409
  %413 = vrot.lane.b32.xlu0 %v411, 32
  %v414 = vpop.permute.xlu0 %413
  %v416 = vadd.f32 %v406, %v414
  %v417 = vtanh.pop %v416
  %419 = vrot.lane.b32.xlu0 %v417, 64
  %v420 = vpop.permute.xlu0 %419
  %v422 = vmul.f32 %v401, %v420
  %424 = vrot.lane.b32.xlu0 %v422, 32
  %v425 = vpop.permute.xlu0 %424
  %vm427 = vcmask 254977
  %428 = vst.msk [vmem:[#allocation2] sm:$0x2] %vm427, %v425
  %v429 = vpack.c.bf16 %v422, %v422
  %v430 = vld [vmem:[%s4] sm:$0xf]
  %v431 = vld [vmem:[%s4 + $0x4] sm:$0xf]
  %v432 = vld [vmem:[%s4 + $0x8] sm:$0xf]
  %v433 = vld [vmem:[%s4 + $0xc] sm:$0xf]
  %v435 = vshrl.u32 %v429, 16
  %437 = vrot.lane.b32.xlu0 %v435, 32
  %v438 = vpop.permute.xlu0 %437
  %v443 = vunpack.c.l.b16 %v430
  %v444 = vunpack.c.l.b16 %v431
  %v445 = vunpack.c.l.b16 %v432
  %v446 = vunpack.c.l.b16 %v433
  %v447 = vpack.c.b16 %v444, %v443
  %v448 = vpack.c.b16 %v446, %v445
  %v452 = vsel %vm282, %v438, 0
  %454 = vmatpush.bf16.msra.mxu0 0
  %455 = vmatpush.bf16.msra.mxu0 0
  %456 = vmatpush.bf16.msra.mxu0 0
  %457 = vmatpush.bf16.msra.mxu0 0
  %458 = vmatpush.bf16.msra.mxu0 0
  %459 = vmatpush.bf16.msra.mxu0 0
  %460 = vmatpush.bf16.msra.mxu0 %v448
  %461 = vmatpush.bf16.msra.mxu0 %v447
  %462 = vmatmul.bf16.gmra.mxu0 %v452
  %v463 = vpop.f32.mrf.mxu0
  %v464 = vadd.f32 0.0, %v463
  %v465 = vpop.f32.mrf.mxu0
  %466 = vdwg.mxu0
  %v468 = vrot.slane %v464, 6
  %v470 = vadd.f32 %v263, %v468
  %v471 = vxor.u32 %v470, 2147483648
  %v472 = vmul.f32 %v471, 1.442695
  %v473 = vpow.pop %v472
  %v474 = vadd.f32 %v473, 1.0
  %v475 = vrcp.pop %v474
  %v476 = vmul.f32 %v474, %v475
  %v477 = vsub.f32 1.0, %v476
  %v478 = vmul.f32 %v475, %v477
  %v479 = vadd.f32 %v475, %v478
  %vm480 = vweird.f32 %v474
  %vm481 = vweird.f32 %v475
  %vm482 = vmor %vm480, %vm481
  %v483 = vsel %vm482, %v475, %v479
  %v484 = vand.u32 2147483647, %v474
  %vm485 = vcmp.eq.f32.partialorder %v484, 8.507059e+37
  %v486 = vand.u32 %v474, 2147483648
  %v487 = vor.u32 1.1754944e-38, %v486
  %v488 = vsel %vm485, %v487, %v483
  %v489 = vmul.f32 1.0, %v488
  %v490 = vtanh.pop %v470
  %v492 = vrot.slane %v416, 7
  %v494 = vmul.f32 %v489, %v492
  %496 = vrot.lane.b32.xlu0 %v490, 64
  %v497 = vpop.permute.xlu0 %496
  %v499 = vmul.f32 %v489, %v497
  %501 = vrot.lane.b32.xlu0 %v499, 32
  %v502 = vpop.permute.xlu0 %501
  %v504 = vadd.f32 %v494, %v502
  %v505 = vtanh.pop %v504
  %507 = vrot.lane.b32.xlu0 %v505, 64
  %v508 = vpop.permute.xlu0 %507
  %v510 = vmul.f32 %v489, %v508
  %512 = vrot.lane.b32.xlu0 %v510, 32
  %v513 = vpop.permute.xlu0 %512
  %vm515 = vcmask 256002
  %516 = vst.msk [vmem:[#allocation2] sm:$0x4] %vm515, %v513
  %v517 = vpack.c.bf16 %v510, %v510
  %v518 = vld [vmem:[%s4] sm:$0xf]
  %v519 = vld [vmem:[%s4 + $0x4] sm:$0xf]
  %v520 = vld [vmem:[%s4 + $0x8] sm:$0xf]
  %v521 = vld [vmem:[%s4 + $0xc] sm:$0xf]
  %v523 = vrot.slane %v517, 1
  %524 = vrot.lane.b32.xlu0 %v523, 32
  %v525 = vpop.permute.xlu0 %524
  %v530 = vunpack.c.l.b16 %v518
  %v531 = vunpack.c.l.b16 %v519
  %v532 = vunpack.c.l.b16 %v520
  %v533 = vunpack.c.l.b16 %v521
  %v534 = vpack.c.b16 %v531, %v530
  %v535 = vpack.c.b16 %v533, %v532
  %v539 = vsel %vm282, %v525, 0
  %541 = vmatpush.bf16.msra.mxu0 0
  %542 = vmatpush.bf16.msra.mxu0 0
  %543 = vmatpush.bf16.msra.mxu0 0
  %544 = vmatpush.bf16.msra.mxu0 0
  %545 = vmatpush.bf16.msra.mxu0 0
  %546 = vmatpush.bf16.msra.mxu0 0
  %547 = vmatpush.bf16.msra.mxu0 %v535
  %548 = vmatpush.bf16.msra.mxu0 %v534
  %549 = vmatmul.bf16.gmra.mxu0 %v539
  %v550 = vpop.f32.mrf.mxu0
  %v551 = vadd.f32 0.0, %v550
  %v552 = vpop.f32.mrf.mxu0
  %553 = vdwg.mxu0
  %v555 = vrot.slane %v551, 5
  %v557 = vadd.f32 %v263, %v555
  %v558 = vxor.u32 %v557, 2147483648
  %v559 = vmul.f32 %v558, 1.442695
  %v560 = vpow.pop %v559
  %v561 = vadd.f32 %v560, 1.0
  %v562 = vrcp.pop %v561
  %v563 = vmul.f32 %v561, %v562
  %v564 = vsub.f32 1.0, %v563
  %v565 = vmul.f32 %v562, %v564
  %v566 = vadd.f32 %v562, %v565
  %vm567 = vweird.f32 %v561
  %vm568 = vweird.f32 %v562
  %vm569 = vmor %vm567, %vm568
  %v570 = vsel %vm569, %v562, %v566
  %v571 = vand.u32 2147483647, %v561
  %vm572 = vcmp.eq.f32.partialorder %v571, 8.507059e+37
  %v573 = vand.u32 %v561, 2147483648
  %v574 = vor.u32 1.1754944e-38, %v573
  %v575 = vsel %vm572, %v574, %v570
  %v576 = vmul.f32 1.0, %v575
  %v577 = vtanh.pop %v557
  %v579 = vrot.slane %v504, 7
  %v581 = vmul.f32 %v576, %v579
  %583 = vrot.lane.b32.xlu0 %v577, 64
  %v584 = vpop.permute.xlu0 %583
  %v586 = vmul.f32 %v576, %v584
  %588 = vrot.lane.b32.xlu0 %v586, 32
  %v589 = vpop.permute.xlu0 %588
  %v591 = vadd.f32 %v581, %v589
  %v592 = vtanh.pop %v591
  %594 = vrot.lane.b32.xlu0 %v592, 64
  %v595 = vpop.permute.xlu0 %594
  %v597 = vmul.f32 %v576, %v595
  %599 = vrot.lane.b32.xlu0 %v597, 32
  %v600 = vpop.permute.xlu0 %599
  %vm602 = vcmask 257027
  %603 = vst.msk [vmem:[#allocation2] sm:$0x8] %vm602, %v600
  %v604 = vpack.c.bf16 %v597, %v597
  %v605 = vld [vmem:[%s4] sm:$0xf]
  %v606 = vld [vmem:[%s4 + $0x4] sm:$0xf]
  %v607 = vld [vmem:[%s4 + $0x8] sm:$0xf]
  %v608 = vld [vmem:[%s4 + $0xc] sm:$0xf]
  %v610 = vshrl.u32 %v604, 16
  %v612 = vrot.slane %v610, 1
  %613 = vrot.lane.b32.xlu0 %v612, 32
  %v614 = vpop.permute.xlu0 %613
  %v619 = vunpack.c.l.b16 %v605
  %v620 = vunpack.c.l.b16 %v606
  %v621 = vunpack.c.l.b16 %v607
  %v622 = vunpack.c.l.b16 %v608
  %v623 = vpack.c.b16 %v620, %v619
  %v624 = vpack.c.b16 %v622, %v621
  %v628 = vsel %vm282, %v614, 0
  %630 = vmatpush.bf16.msra.mxu0 0
  %631 = vmatpush.bf16.msra.mxu0 0
  %632 = vmatpush.bf16.msra.mxu0 0
  %633 = vmatpush.bf16.msra.mxu0 0
  %634 = vmatpush.bf16.msra.mxu0 0
  %635 = vmatpush.bf16.msra.mxu0 0
  %636 = vmatpush.bf16.msra.mxu0 %v624
  %637 = vmatpush.bf16.msra.mxu0 %v623
  %638 = vmatmul.bf16.gmra.mxu0 %v628
  %v639 = vpop.f32.mrf.mxu0
  %v640 = vadd.f32 0.0, %v639
  %v641 = vpop.f32.mrf.mxu0
  %642 = vdwg.mxu0
  %v644 = vrot.slane %v640, 4
  %v646 = vadd.f32 %v263, %v644
  %v647 = vxor.u32 %v646, 2147483648
  %v648 = vmul.f32 %v647, 1.442695
  %v649 = vpow.pop %v648
  %v650 = vadd.f32 %v649, 1.0
  %v651 = vrcp.pop %v650
  %v652 = vmul.f32 %v650, %v651
  %v653 = vsub.f32 1.0, %v652
  %v654 = vmul.f32 %v651, %v653
  %v655 = vadd.f32 %v651, %v654
  %vm656 = vweird.f32 %v650
  %vm657 = vweird.f32 %v651
  %vm658 = vmor %vm656, %vm657
  %v659 = vsel %vm658, %v651, %v655
  %v660 = vand.u32 2147483647, %v650
  %vm661 = vcmp.eq.f32.partialorder %v660, 8.507059e+37
  %v662 = vand.u32 %v650, 2147483648
  %v663 = vor.u32 1.1754944e-38, %v662
  %v664 = vsel %vm661, %v663, %v659
  %v665 = vmul.f32 1.0, %v664
  %v666 = vtanh.pop %v646
  %v668 = vrot.slane %v591, 7
  %v670 = vmul.f32 %v665, %v668
  %672 = vrot.lane.b32.xlu0 %v666, 64
  %v673 = vpop.permute.xlu0 %672
  %v675 = vmul.f32 %v665, %v673
  %677 = vrot.lane.b32.xlu0 %v675, 32
  %v678 = vpop.permute.xlu0 %677
  %v680 = vadd.f32 %v670, %v678
  %v681 = vtanh.pop %v680
  %683 = vrot.lane.b32.xlu0 %v681, 64
  %v684 = vpop.permute.xlu0 %683
  %v686 = vmul.f32 %v665, %v684
  %688 = vrot.lane.b32.xlu0 %v686, 32
  %v689 = vpop.permute.xlu0 %688
  %vm691 = vcmask 258052
  %692 = vst.msk [vmem:[#allocation2] sm:$0x10] %vm691, %v689
  %v693 = vpack.c.bf16 %v686, %v686
  %v694 = vld [vmem:[%s4] sm:$0xf]
  %v695 = vld [vmem:[%s4 + $0x4] sm:$0xf]
  %v696 = vld [vmem:[%s4 + $0x8] sm:$0xf]
  %v697 = vld [vmem:[%s4 + $0xc] sm:$0xf]
  %v699 = vrot.slane %v693, 2
  %700 = vrot.lane.b32.xlu0 %v699, 32
  %v701 = vpop.permute.xlu0 %700
  %v706 = vunpack.c.l.b16 %v694
  %v707 = vunpack.c.l.b16 %v695
  %v708 = vunpack.c.l.b16 %v696
  %v709 = vunpack.c.l.b16 %v697
  %v710 = vpack.c.b16 %v707, %v706
  %v711 = vpack.c.b16 %v709, %v708
  %v715 = vsel %vm282, %v701, 0
  %717 = vmatpush.bf16.msra.mxu0 0
  %718 = vmatpush.bf16.msra.mxu0 0
  %719 = vmatpush.bf16.msra.mxu0 0
  %720 = vmatpush.bf16.msra.mxu0 0
  %721 = vmatpush.bf16.msra.mxu0 0
  %722 = vmatpush.bf16.msra.mxu0 0
  %723 = vmatpush.bf16.msra.mxu0 %v711
  %724 = vmatpush.bf16.msra.mxu0 %v710
  %725 = vmatmul.bf16.gmra.mxu0 %v715
  %v726 = vpop.f32.mrf.mxu0
  %v727 = vadd.f32 0.0, %v726
  %v728 = vpop.f32.mrf.mxu0
  %729 = vdwg.mxu0
  %v731 = vrot.slane %v727, 3
  %v733 = vadd.f32 %v263, %v731
  %v734 = vxor.u32 %v733, 2147483648
  %v735 = vmul.f32 %v734, 1.442695
  %v736 = vpow.pop %v735
  %v737 = vadd.f32 %v736, 1.0
  %v738 = vrcp.pop %v737
  %v739 = vmul.f32 %v737, %v738
  %v740 = vsub.f32 1.0, %v739
  %v741 = vmul.f32 %v738, %v740
  %v742 = vadd.f32 %v738, %v741
  %vm743 = vweird.f32 %v737
  %vm744 = vweird.f32 %v738
  %vm745 = vmor %vm743, %vm744
  %v746 = vsel %vm745, %v738, %v742
  %v747 = vand.u32 2147483647, %v737
  %vm748 = vcmp.eq.f32.partialorder %v747, 8.507059e+37
  %v749 = vand.u32 %v737, 2147483648
  %v750 = vor.u32 1.1754944e-38, %v749
  %v751 = vsel %vm748, %v750, %v746
  %v752 = vmul.f32 1.0, %v751
  %v753 = vtanh.pop %v733
  %v755 = vrot.slane %v680, 7
  %v757 = vmul.f32 %v752, %v755
  %759 = vrot.lane.b32.xlu0 %v753, 64
  %v760 = vpop.permute.xlu0 %759
  %v762 = vmul.f32 %v752, %v760
  %764 = vrot.lane.b32.xlu0 %v762, 32
  %v765 = vpop.permute.xlu0 %764
  %v767 = vadd.f32 %v757, %v765
  %v768 = vtanh.pop %v767
  %770 = vrot.lane.b32.xlu0 %v768, 64
  %v771 = vpop.permute.xlu0 %770
  %v773 = vmul.f32 %v752, %v771
  %775 = vrot.lane.b32.xlu0 %v773, 32
  %v776 = vpop.permute.xlu0 %775
  %vm778 = vcmask 259077
  %779 = vst.msk [vmem:[#allocation2] sm:$0x20] %vm778, %v776
  %v780 = vpack.c.bf16 %v773, %v773
  %v781 = vld [vmem:[%s4] sm:$0xf]
  %v782 = vld [vmem:[%s4 + $0x4] sm:$0xf]
  %v783 = vld [vmem:[%s4 + $0x8] sm:$0xf]
  %v784 = vld [vmem:[%s4 + $0xc] sm:$0xf]
  %v786 = vshrl.u32 %v780, 16
  %v788 = vrot.slane %v786, 2
  %789 = vrot.lane.b32.xlu0 %v788, 32
  %v790 = vpop.permute.xlu0 %789
  %v795 = vunpack.c.l.b16 %v781
  %v796 = vunpack.c.l.b16 %v782
  %v797 = vunpack.c.l.b16 %v783
  %v798 = vunpack.c.l.b16 %v784
  %v799 = vpack.c.b16 %v796, %v795
  %v800 = vpack.c.b16 %v798, %v797
  %v804 = vsel %vm282, %v790, 0
  %806 = vmatpush.bf16.msra.mxu0 0
  %807 = vmatpush.bf16.msra.mxu0 0
  %808 = vmatpush.bf16.msra.mxu0 0
  %809 = vmatpush.bf16.msra.mxu0 0
  %810 = vmatpush.bf16.msra.mxu0 0
  %811 = vmatpush.bf16.msra.mxu0 0
  %812 = vmatpush.bf16.msra.mxu0 %v800
  %813 = vmatpush.bf16.msra.mxu0 %v799
  %814 = vmatmul.bf16.gmra.mxu0 %v804
  %v815 = vpop.f32.mrf.mxu0
  %v816 = vadd.f32 0.0, %v815
  %v817 = vpop.f32.mrf.mxu0
  %818 = vdwg.mxu0
  %v820 = vrot.slane %v816, 2
  %v822 = vadd.f32 %v263, %v820
  %v823 = vxor.u32 %v822, 2147483648
  %v824 = vmul.f32 %v823, 1.442695
  %v825 = vpow.pop %v824
  %v826 = vadd.f32 %v825, 1.0
  %v827 = vrcp.pop %v826
  %v828 = vmul.f32 %v826, %v827
  %v829 = vsub.f32 1.0, %v828
  %v830 = vmul.f32 %v827, %v829
  %v831 = vadd.f32 %v827, %v830
  %vm832 = vweird.f32 %v826
  %vm833 = vweird.f32 %v827
  %vm834 = vmor %vm832, %vm833
  %v835 = vsel %vm834, %v827, %v831
  %v836 = vand.u32 2147483647, %v826
  %vm837 = vcmp.eq.f32.partialorder %v836, 8.507059e+37
  %v838 = vand.u32 %v826, 2147483648
  %v839 = vor.u32 1.1754944e-38, %v838
  %v840 = vsel %vm837, %v839, %v835
  %v841 = vmul.f32 1.0, %v840
  %v842 = vtanh.pop %v822
  %v844 = vrot.slane %v767, 7
  %v846 = vmul.f32 %v841, %v844
  %848 = vrot.lane.b32.xlu0 %v842, 64
  %v849 = vpop.permute.xlu0 %848
  %v851 = vmul.f32 %v841, %v849
  %853 = vrot.lane.b32.xlu0 %v851, 32
  %v854 = vpop.permute.xlu0 %853
  %v856 = vadd.f32 %v846, %v854
  %v857 = vtanh.pop %v856
  %859 = vrot.lane.b32.xlu0 %v857, 64
  %v860 = vpop.permute.xlu0 %859
  %v862 = vmul.f32 %v841, %v860
  %864 = vrot.lane.b32.xlu0 %v862, 32
  %v865 = vpop.permute.xlu0 %864
  %vm867 = vcmask 260102
  %868 = vst.msk [vmem:[#allocation2] sm:$0x40] %vm867, %v865
  %v869 = vld [vmem:[#allocation2] sm:$0x7f]
  %v870 = vpack.c.bf16 %v869, %v869
  %v871 = vld [vmem:[%s6] sm:$0xf]
  %v872 = vld [vmem:[%s6 + $0x4] sm:$0xf]
  %v873 = vld [vmem:[%s6 + $0x8] sm:$0xf]
  %v874 = vld [vmem:[%s6 + $0xc] sm:$0xf]
  %v875 = vld [vmem:[%s8] sm:$0x1]
  %v877 = vperm.slane %v875, 0
  %v883 = vunpack.c.l.b16 %v871
  %v884 = vunpack.c.l.b16 %v872
  %v885 = vunpack.c.l.b16 %v873
  %v886 = vunpack.c.l.b16 %v874
  %v887 = vpack.c.b16 %v884, %v883
  %v888 = vpack.c.b16 %v886, %v885
  %v892 = vsel %vm282, %v870, 0
  %894 = vmatpush.bf16.msra.mxu0 0
  %895 = vmatpush.bf16.msra.mxu0 0
  %896 = vmatpush.bf16.msra.mxu0 0
  %897 = vmatpush.bf16.msra.mxu0 0
  %898 = vmatpush.bf16.msra.mxu0 0
  %899 = vmatpush.bf16.msra.mxu0 0
  %900 = vmatpush.bf16.msra.mxu0 %v888
  %901 = vmatpush.bf16.msra.mxu0 %v887
  %902 = vmatmul.bf16.gmra.mxu0 %v892
  %v903 = vpop.f32.mrf.mxu0
  %v904 = vadd.f32 %v877, %v903
  %v905 = vpop.f32.mrf.mxu0
  %906 = vdwg.mxu0
  %v907 = vld [vmem:[%s7] sm:$0xf]
  %v908 = vld [vmem:[%s7 + $0x4] sm:$0xf]
  %v909 = vld [vmem:[%s7 + $0x8] sm:$0xf]
  %v910 = vld [vmem:[%s7 + $0xc] sm:$0xf]
  %v915 = vunpack.c.l.b16 %v907
  %v916 = vunpack.c.l.b16 %v908
  %v917 = vunpack.c.l.b16 %v909
  %v918 = vunpack.c.l.b16 %v910
  %v919 = vpack.c.b16 %v916, %v915
  %v920 = vpack.c.b16 %v918, %v917
  %923 = vmatpush.bf16.msra.mxu0 0
  %924 = vmatpush.bf16.msra.mxu0 0
  %925 = vmatpush.bf16.msra.mxu0 0
  %926 = vmatpush.bf16.msra.mxu0 0
  %927 = vmatpush.bf16.msra.mxu0 0
  %928 = vmatpush.bf16.msra.mxu0 0
  %929 = vmatpush.bf16.msra.mxu0 %v920
  %930 = vmatpush.bf16.msra.mxu0 %v919
  %931 = vmatmul.bf16.gmra.mxu0 %v284
  %v932 = vpop.f32.mrf.mxu0
  %v933 = vadd.f32 0.0, %v932
  %v934 = vpop.f32.mrf.mxu0
  %935 = vdwg.mxu0
  %v936 = vadd.f32 %v904, %v933
  %v937 = vxor.u32 %v936, 2147483648
  %v938 = vmul.f32 %v937, 1.442695
  %v939 = vpow.pop %v938
  %v940 = vadd.f32 %v939, 1.0
  %v941 = vrcp.pop %v940
  %v942 = vmul.f32 %v940, %v941
  %v943 = vsub.f32 1.0, %v942
  %v944 = vmul.f32 %v941, %v943
  %v945 = vadd.f32 %v941, %v944
  %vm946 = vweird.f32 %v940
  %vm947 = vweird.f32 %v941
  %vm948 = vmor %vm946, %vm947
  %v949 = vsel %vm948, %v941, %v945
  %v950 = vand.u32 2147483647, %v940
  %vm951 = vcmp.eq.f32.partialorder %v950, 8.507059e+37
  %v952 = vand.u32 %v940, 2147483648
  %v953 = vor.u32 1.1754944e-38, %v952
  %v954 = vsel %vm951, %v953, %v949
  %v955 = vmul.f32 1.0, %v954
  %v956 = vtanh.pop %v936
  %v957 = vmul.f32 %v955, 0.0
  %959 = vrot.lane.b32.xlu0 %v956, 64
  %v960 = vpop.permute.xlu0 %959
  %v962 = vmul.f32 %v955, %v960
  %964 = vrot.lane.b32.xlu0 %v962, 32
  %v965 = vpop.permute.xlu0 %964
  %v967 = vadd.f32 %v957, %v965
  %v968 = vtanh.pop %v967
  %970 = vrot.lane.b32.xlu0 %v968, 64
  %v971 = vpop.permute.xlu0 %970
  %v973 = vmul.f32 %v955, %v971
  %v974 = vpack.c.bf16 %v973, %v973
  %976 = vrot.lane.b32.xlu0 %v974, 32
  %v977 = vpop.permute.xlu0 %976
  %v979 = vsel %vm282, %v977, 0
  %981 = vmatpush.bf16.msra.mxu0 0
  %982 = vmatpush.bf16.msra.mxu0 0
  %983 = vmatpush.bf16.msra.mxu0 0
  %984 = vmatpush.bf16.msra.mxu0 0
  %985 = vmatpush.bf16.msra.mxu0 0
  %986 = vmatpush.bf16.msra.mxu0 0
  %987 = vmatpush.bf16.msra.mxu0 %v920
  %988 = vmatpush.bf16.msra.mxu0 %v919
  %989 = vmatmul.bf16.gmra.mxu0 %v979
  %v990 = vpop.f32.mrf.mxu0
  %v991 = vadd.f32 0.0, %v990
  %v992 = vpop.f32.mrf.mxu0
  %993 = vdwg.mxu0
  %v995 = vrot.slane %v991, 7
  %v997 = vadd.f32 %v904, %v995
  %v998 = vxor.u32 %v997, 2147483648
  %v999 = vmul.f32 %v998, 1.442695
  %v1000 = vpow.pop %v999
  %v1001 = vadd.f32 %v1000, 1.0
  %v1002 = vrcp.pop %v1001
  %v1003 = vmul.f32 %v1001, %v1002
  %v1004 = vsub.f32 1.0, %v1003
  %v1005 = vmul.f32 %v1002, %v1004
  %v1006 = vadd.f32 %v1002, %v1005
  %vm1007 = vweird.f32 %v1001
  %vm1008 = vweird.f32 %v1002
  %vm1009 = vmor %vm1007, %vm1008
  %v1010 = vsel %vm1009, %v1002, %v1006
  %v1011 = vand.u32 2147483647, %v1001
  %vm1012 = vcmp.eq.f32.partialorder %v1011, 8.507059e+37
  %v1013 = vand.u32 %v1001, 2147483648
  %v1014 = vor.u32 1.1754944e-38, %v1013
  %v1015 = vsel %vm1012, %v1014, %v1010
  %v1016 = vmul.f32 1.0, %v1015
  %v1017 = vtanh.pop %v997
  %v1019 = vrot.slane %v967, 7
  %v1021 = vmul.f32 %v1016, %v1019
  %1023 = vrot.lane.b32.xlu0 %v1017, 64
  %v1024 = vpop.permute.xlu0 %1023
  %v1026 = vmul.f32 %v1016, %v1024
  %1028 = vrot.lane.b32.xlu0 %v1026, 32
  %v1029 = vpop.permute.xlu0 %1028
  %v1031 = vadd.f32 %v1021, %v1029
  %v1032 = vtanh.pop %v1031
  %1034 = vrot.lane.b32.xlu0 %v1032, 64
  %v1035 = vpop.permute.xlu0 %1034
  %v1037 = vmul.f32 %v1016, %v1035
  %v1038 = vpack.c.bf16 %v1037, %v1037
  %v1040 = vshrl.u32 %v1038, 16
  %1042 = vrot.lane.b32.xlu0 %v1040, 32
  %v1043 = vpop.permute.xlu0 %1042
  %v1045 = vsel %vm282, %v1043, 0
  %1047 = vmatpush.bf16.msra.mxu0 0
  %1048 = vmatpush.bf16.msra.mxu0 0
  %1049 = vmatpush.bf16.msra.mxu0 0
  %1050 = vmatpush.bf16.msra.mxu0 0
  %1051 = vmatpush.bf16.msra.mxu0 0
  %1052 = vmatpush.bf16.msra.mxu0 0
  %1053 = vmatpush.bf16.msra.mxu0 %v920
  %1054 = vmatpush.bf16.msra.mxu0 %v919
  %1055 = vmatmul.bf16.gmra.mxu0 %v1045
  %v1056 = vpop.f32.mrf.mxu0
  %v1057 = vadd.f32 0.0, %v1056
  %v1058 = vpop.f32.mrf.mxu0
  %1059 = vdwg.mxu0
  %v1061 = vrot.slane %v1057, 6
  %v1063 = vadd.f32 %v904, %v1061
  %v1064 = vxor.u32 %v1063, 2147483648
  %v1065 = vmul.f32 %v1064, 1.442695
  %v1066 = vpow.pop %v1065
  %v1067 = vadd.f32 %v1066, 1.0
  %v1068 = vrcp.pop %v1067
  %v1069 = vmul.f32 %v1067, %v1068
  %v1070 = vsub.f32 1.0, %v1069
  %v1071 = vmul.f32 %v1068, %v1070
  %v1072 = vadd.f32 %v1068, %v1071
  %vm1073 = vweird.f32 %v1067
  %vm1074 = vweird.f32 %v1068
  %vm1075 = vmor %vm1073, %vm1074
  %v1076 = vsel %vm1075, %v1068, %v1072
  %v1077 = vand.u32 2147483647, %v1067
  %vm1078 = vcmp.eq.f32.partialorder %v1077, 8.507059e+37
  %v1079 = vand.u32 %v1067, 2147483648
  %v1080 = vor.u32 1.1754944e-38, %v1079
  %v1081 = vsel %vm1078, %v1080, %v1076
  %v1082 = vmul.f32 1.0, %v1081
  %v1083 = vtanh.pop %v1063
  %v1085 = vrot.slane %v1031, 7
  %v1087 = vmul.f32 %v1082, %v1085
  %1089 = vrot.lane.b32.xlu0 %v1083, 64
  %v1090 = vpop.permute.xlu0 %1089
  %v1092 = vmul.f32 %v1082, %v1090
  %1094 = vrot.lane.b32.xlu0 %v1092, 32
  %v1095 = vpop.permute.xlu0 %1094
  %v1097 = vadd.f32 %v1087, %v1095
  %v1098 = vtanh.pop %v1097
  %1100 = vrot.lane.b32.xlu0 %v1098, 64
  %v1101 = vpop.permute.xlu0 %1100
  %v1103 = vmul.f32 %v1082, %v1101
  %v1104 = vpack.c.bf16 %v1103, %v1103
  %v1106 = vrot.slane %v1104, 1
  %1107 = vrot.lane.b32.xlu0 %v1106, 32
  %v1108 = vpop.permute.xlu0 %1107
  %v1110 = vsel %vm282, %v1108, 0
  %1112 = vmatpush.bf16.msra.mxu0 0
  %1113 = vmatpush.bf16.msra.mxu0 0
  %1114 = vmatpush.bf16.msra.mxu0 0
  %1115 = vmatpush.bf16.msra.mxu0 0
  %1116 = vmatpush.bf16.msra.mxu0 0
  %1117 = vmatpush.bf16.msra.mxu0 0
  %1118 = vmatpush.bf16.msra.mxu0 %v920
  %1119 = vmatpush.bf16.msra.mxu0 %v919
  %1120 = vmatmul.bf16.gmra.mxu0 %v1110
  %v1121 = vpop.f32.mrf.mxu0
  %v1122 = vadd.f32 0.0, %v1121
  %v1123 = vpop.f32.mrf.mxu0
  %1124 = vdwg.mxu0
  %v1126 = vrot.slane %v1122, 5
  %v1128 = vadd.f32 %v904, %v1126
  %v1129 = vxor.u32 %v1128, 2147483648
  %v1130 = vmul.f32 %v1129, 1.442695
  %v1131 = vpow.pop %v1130
  %v1132 = vadd.f32 %v1131, 1.0
  %v1133 = vrcp.pop %v1132
  %v1134 = vmul.f32 %v1132, %v1133
  %v1135 = vsub.f32 1.0, %v1134
  %v1136 = vmul.f32 %v1133, %v1135
  %v1137 = vadd.f32 %v1133, %v1136
  %vm1138 = vweird.f32 %v1132
  %vm1139 = vweird.f32 %v1133
  %vm1140 = vmor %vm1138, %vm1139
  %v1141 = vsel %vm1140, %v1133, %v1137
  %v1142 = vand.u32 2147483647, %v1132
  %vm1143 = vcmp.eq.f32.partialorder %v1142, 8.507059e+37
  %v1144 = vand.u32 %v1132, 2147483648
  %v1145 = vor.u32 1.1754944e-38, %v1144
  %v1146 = vsel %vm1143, %v1145, %v1141
  %v1147 = vmul.f32 1.0, %v1146
  %v1148 = vtanh.pop %v1128
  %v1150 = vrot.slane %v1097, 7
  %v1152 = vmul.f32 %v1147, %v1150
  %1154 = vrot.lane.b32.xlu0 %v1148, 64
  %v1155 = vpop.permute.xlu0 %1154
  %v1157 = vmul.f32 %v1147, %v1155
  %1159 = vrot.lane.b32.xlu0 %v1157, 32
  %v1160 = vpop.permute.xlu0 %1159
  %v1162 = vadd.f32 %v1152, %v1160
  %v1163 = vtanh.pop %v1162
  %1165 = vrot.lane.b32.xlu0 %v1163, 64
  %v1166 = vpop.permute.xlu0 %1165
  %v1168 = vmul.f32 %v1147, %v1166
  %v1169 = vpack.c.bf16 %v1168, %v1168
  %v1171 = vshrl.u32 %v1169, 16
  %v1173 = vrot.slane %v1171, 1
  %1174 = vrot.lane.b32.xlu0 %v1173, 32
  %v1175 = vpop.permute.xlu0 %1174
  %v1177 = vsel %vm282, %v1175, 0
  %1179 = vmatpush.bf16.msra.mxu0 0
  %1180 = vmatpush.bf16.msra.mxu0 0
  %1181 = vmatpush.bf16.msra.mxu0 0
  %1182 = vmatpush.bf16.msra.mxu0 0
  %1183 = vmatpush.bf16.msra.mxu0 0
  %1184 = vmatpush.bf16.msra.mxu0 0
  %1185 = vmatpush.bf16.msra.mxu0 %v920
  %1186 = vmatpush.bf16.msra.mxu0 %v919
  %1187 = vmatmul.bf16.gmra.mxu0 %v1177
  %v1188 = vpop.f32.mrf.mxu0
  %v1189 = vadd.f32 0.0, %v1188
  %v1190 = vpop.f32.mrf.mxu0
  %1191 = vdwg.mxu0
  %v1193 = vrot.slane %v1189, 4
  %v1195 = vadd.f32 %v904, %v1193
  %v1196 = vxor.u32 %v1195, 2147483648
  %v1197 = vmul.f32 %v1196, 1.442695
  %v1198 = vpow.pop %v1197
  %v1199 = vadd.f32 %v1198, 1.0
  %v1200 = vrcp.pop %v1199
  %v1201 = vmul.f32 %v1199, %v1200
  %v1202 = vsub.f32 1.0, %v1201
  %v1203 = vmul.f32 %v1200, %v1202
  %v1204 = vadd.f32 %v1200, %v1203
  %vm1205 = vweird.f32 %v1199
  %vm1206 = vweird.f32 %v1200
  %vm1207 = vmor %vm1205, %vm1206
  %v1208 = vsel %vm1207, %v1200, %v1204
  %v1209 = vand.u32 2147483647, %v1199
  %vm1210 = vcmp.eq.f32.partialorder %v1209, 8.507059e+37
  %v1211 = vand.u32 %v1199, 2147483648
  %v1212 = vor.u32 1.1754944e-38, %v1211
  %v1213 = vsel %vm1210, %v1212, %v1208
  %v1214 = vmul.f32 1.0, %v1213
  %v1215 = vtanh.pop %v1195
  %v1217 = vrot.slane %v1162, 7
  %v1219 = vmul.f32 %v1214, %v1217
  %1221 = vrot.lane.b32.xlu0 %v1215, 64
  %v1222 = vpop.permute.xlu0 %1221
  %v1224 = vmul.f32 %v1214, %v1222
  %1226 = vrot.lane.b32.xlu0 %v1224, 32
  %v1227 = vpop.permute.xlu0 %1226
  %v1229 = vadd.f32 %v1219, %v1227
  %v1230 = vtanh.pop %v1229
  %1232 = vrot.lane.b32.xlu0 %v1230, 64
  %v1233 = vpop.permute.xlu0 %1232
  %v1235 = vmul.f32 %v1214, %v1233
  %v1236 = vpack.c.bf16 %v1235, %v1235
  %v1238 = vrot.slane %v1236, 2
  %1239 = vrot.lane.b32.xlu0 %v1238, 32
  %v1240 = vpop.permute.xlu0 %1239
  %v1242 = vsel %vm282, %v1240, 0
  %1244 = vmatpush.bf16.msra.mxu0 0
  %1245 = vmatpush.bf16.msra.mxu0 0
  %1246 = vmatpush.bf16.msra.mxu0 0
  %1247 = vmatpush.bf16.msra.mxu0 0
  %1248 = vmatpush.bf16.msra.mxu0 0
  %1249 = vmatpush.bf16.msra.mxu0 0
  %1250 = vmatpush.bf16.msra.mxu0 %v920
  %1251 = vmatpush.bf16.msra.mxu0 %v919
  %1252 = vmatmul.bf16.gmra.mxu0 %v1242
  %v1253 = vpop.f32.mrf.mxu0
  %v1254 = vadd.f32 0.0, %v1253
  %v1255 = vpop.f32.mrf.mxu0
  %1256 = vdwg.mxu0
  %v1258 = vrot.slane %v1254, 3
  %v1260 = vadd.f32 %v904, %v1258
  %v1261 = vxor.u32 %v1260, 2147483648
  %v1262 = vmul.f32 %v1261, 1.442695
  %v1263 = vpow.pop %v1262
  %v1264 = vadd.f32 %v1263, 1.0
  %v1265 = vrcp.pop %v1264
  %v1266 = vmul.f32 %v1264, %v1265
  %v1267 = vsub.f32 1.0, %v1266
  %v1268 = vmul.f32 %v1265, %v1267
  %v1269 = vadd.f32 %v1265, %v1268
  %vm1270 = vweird.f32 %v1264
  %vm1271 = vweird.f32 %v1265
  %vm1272 = vmor %vm1270, %vm1271
  %v1273 = vsel %vm1272, %v1265, %v1269
  %v1274 = vand.u32 2147483647, %v1264
  %vm1275 = vcmp.eq.f32.partialorder %v1274, 8.507059e+37
  %v1276 = vand.u32 %v1264, 2147483648
  %v1277 = vor.u32 1.1754944e-38, %v1276
  %v1278 = vsel %vm1275, %v1277, %v1273
  %v1279 = vmul.f32 1.0, %v1278
  %v1280 = vtanh.pop %v1260
  %v1282 = vrot.slane %v1229, 7
  %v1284 = vmul.f32 %v1279, %v1282
  %1286 = vrot.lane.b32.xlu0 %v1280, 64
  %v1287 = vpop.permute.xlu0 %1286
  %v1289 = vmul.f32 %v1279, %v1287
  %1291 = vrot.lane.b32.xlu0 %v1289, 32
  %v1292 = vpop.permute.xlu0 %1291
  %v1294 = vadd.f32 %v1284, %v1292
  %v1295 = vtanh.pop %v1294
  %1297 = vrot.lane.b32.xlu0 %v1295, 64
  %v1298 = vpop.permute.xlu0 %1297
  %v1300 = vmul.f32 %v1279, %v1298
  %v1301 = vpack.c.bf16 %v1300, %v1300
  %v1303 = vshrl.u32 %v1301, 16
  %v1305 = vrot.slane %v1303, 2
  %1306 = vrot.lane.b32.xlu0 %v1305, 32
  %v1307 = vpop.permute.xlu0 %1306
  %v1309 = vsel %vm282, %v1307, 0
  %1311 = vmatpush.bf16.msra.mxu0 0
  %1312 = vmatpush.bf16.msra.mxu0 0
  %1313 = vmatpush.bf16.msra.mxu0 0
  %1314 = vmatpush.bf16.msra.mxu0 0
  %1315 = vmatpush.bf16.msra.mxu0 0
  %1316 = vmatpush.bf16.msra.mxu0 0
  %1317 = vmatpush.bf16.msra.mxu0 %v920
  %1318 = vmatpush.bf16.msra.mxu0 %v919
  %1319 = vmatmul.bf16.gmra.mxu0 %v1309
  %v1320 = vpop.f32.mrf.mxu0
  %v1321 = vadd.f32 0.0, %v1320
  %v1322 = vpop.f32.mrf.mxu0
  %1323 = vdwg.mxu0
  %v1325 = vrot.slane %v1321, 2
  %v1327 = vadd.f32 %v904, %v1325
  %v1328 = vxor.u32 %v1327, 2147483648
  %v1329 = vmul.f32 %v1328, 1.442695
  %v1330 = vpow.pop %v1329
  %v1331 = vadd.f32 %v1330, 1.0
  %v1332 = vrcp.pop %v1331
  %v1333 = vmul.f32 %v1331, %v1332
  %v1334 = vsub.f32 1.0, %v1333
  %v1335 = vmul.f32 %v1332, %v1334
  %v1336 = vadd.f32 %v1332, %v1335
  %vm1337 = vweird.f32 %v1331
  %vm1338 = vweird.f32 %v1332
  %vm1339 = vmor %vm1337, %vm1338
  %v1340 = vsel %vm1339, %v1332, %v1336
  %v1341 = vand.u32 2147483647, %v1331
  %vm1342 = vcmp.eq.f32.partialorder %v1341, 8.507059e+37
  %v1343 = vand.u32 %v1331, 2147483648
  %v1344 = vor.u32 1.1754944e-38, %v1343
  %v1345 = vsel %vm1342, %v1344, %v1340
  %v1346 = vmul.f32 1.0, %v1345
  %v1347 = vtanh.pop %v1327
  %v1349 = vrot.slane %v1294, 7
  %v1351 = vmul.f32 %v1346, %v1349
  %1353 = vrot.lane.b32.xlu0 %v1347, 64
  %v1354 = vpop.permute.xlu0 %1353
  %v1356 = vmul.f32 %v1346, %v1354
  %1358 = vrot.lane.b32.xlu0 %v1356, 32
  %v1359 = vpop.permute.xlu0 %1358
  %v1361 = vadd.f32 %v1351, %v1359
  %v1362 = vtanh.pop %v1361
  %1364 = vrot.lane.b32.xlu0 %v1362, 64
  %v1365 = vpop.permute.xlu0 %1364
  %v1367 = vmul.f32 %v1346, %v1365
  %v1368 = vpack.c.bf16 %v1367, %v1367
  %v1369 = vld [vmem:[%s9] sm:$0xf]
  %v1370 = vld [vmem:[%s9 + $0x4] sm:$0xf]
  %v1371 = vld [vmem:[%s9 + $0x8] sm:$0xf]
  %v1372 = vld [vmem:[%s9 + $0xc] sm:$0xf]
  %v1373 = vld [vmem:[%s10] sm:$0x1]
  %v1375 = vrot.slane %v1368, 3
  %1376 = vrot.lane.b32.xlu0 %v1375, 32
  %v1377 = vpop.permute.xlu0 %1376
  %v1382 = vunpack.c.l.b16 %v1369
  %v1383 = vunpack.c.l.b16 %v1370
  %v1384 = vunpack.c.l.b16 %v1371
  %v1385 = vunpack.c.l.b16 %v1372
  %v1386 = vpack.c.b16 %v1383, %v1382
  %v1387 = vpack.c.b16 %v1385, %v1384
  %v1391 = vsel %vm282, %v1377, 0
  %1393 = vmatpush.bf16.msra.mxu0 0
  %1394 = vmatpush.bf16.msra.mxu0 0
  %1395 = vmatpush.bf16.msra.mxu0 0
  %1396 = vmatpush.bf16.msra.mxu0 0
  %1397 = vmatpush.bf16.msra.mxu0 0
  %1398 = vmatpush.bf16.msra.mxu0 0
  %1399 = vmatpush.bf16.msra.mxu0 %v1387
  %1400 = vmatpush.bf16.msra.mxu0 %v1386
  %1401 = vmatmul.bf16.gmra.mxu0 %v1391
  %v1402 = vpop.f32.mrf.mxu0
  %v1403 = vadd.f32 %v1373, %v1402
  %v1404 = vpop.f32.mrf.mxu0
  %1405 = vdwg.mxu0
  %v1406 = vtanh.pop %v1403
  %v1407 = vpack.c.bf16 %v1406, %v1406
  %v1408 = vld [vmem:[%s11] sm:$0xff]
  %v1409 = vld [vmem:[%s11 + $0x8] sm:$0xff]
  %v1410 = vld [vmem:[%s11 + $0x10] sm:$0xff]
  %v1411 = vld [vmem:[%s11 + $0x18] sm:$0xff]
  %v1412 = vld [vmem:[%s12] sm:$0x3]
  %v1417 = vunpack.c.l.b16 %v1408
  %v1418 = vunpack.c.h.b16 %v1408
  %v1419 = vunpack.c.l.b16 %v1409
  %v1420 = vunpack.c.h.b16 %v1409
  %v1421 = vunpack.c.l.b16 %v1410
  %v1422 = vunpack.c.h.b16 %v1410
  %v1423 = vunpack.c.l.b16 %v1411
  %v1424 = vunpack.c.h.b16 %v1411
  %v1425 = vpack.c.b16 %v1419, %v1417
  %v1426 = vpack.c.b16 %v1420, %v1418
  %v1427 = vpack.c.b16 %v1423, %v1421
  %v1428 = vpack.c.b16 %v1424, %v1422
  %v1434 = vperm.slane %v1412, 0
  %v1435 = vperm.slane %v1412, 1
  %v1439 = vsel %vm282, %v1407, 0
  %1441 = vmatpush.bf16.msra.mxu0 0
  %1442 = vmatpush.bf16.msra.mxu0 0
  %1443 = vmatpush.bf16.msra.mxu0 0
  %1444 = vmatpush.bf16.msra.mxu0 0
  %1445 = vmatpush.bf16.msra.mxu0 0
  %1446 = vmatpush.bf16.msra.mxu0 0
  %1447 = vmatpush.bf16.msra.mxu0 %v1427
  %1448 = vmatpush.bf16.msra.mxu0 %v1425
  %1449 = vmatmul.bf16.gmra.mxu0 %v1439
  %v1450 = vpop.f32.mrf.mxu0
  %v1451 = vadd.f32 %v1434, %v1450
  %v1452 = vpop.f32.mrf.mxu0
  %1453 = vdwg.mxu0
  %1454 = vmatpush.bf16.msra.mxu0 0
  %1455 = vmatpush.bf16.msra.mxu0 0
  %1456 = vmatpush.bf16.msra.mxu0 0
  %1457 = vmatpush.bf16.msra.mxu0 0
  %1458 = vmatpush.bf16.msra.mxu0 0
  %1459 = vmatpush.bf16.msra.mxu0 0
  %1460 = vmatpush.bf16.msra.mxu0 %v1428
  %1461 = vmatpush.bf16.msra.mxu0 %v1426
  %1462 = vmatmul.bf16.gmra.mxu0 %v1439
  %v1463 = vpop.f32.mrf.mxu0
  %v1464 = vadd.f32 %v1435, %v1463
  %v1465 = vpop.f32.mrf.mxu0
  %1466 = vdwg.mxu0
  %v1467 = vmax.f32 %v1451, 0.0
  %v1468 = vmax.f32 %v1464, 0.0
  %v1471 = vrot.slane %v1468, 7
  %vm1472 = vcmask 1040384
  %v1473 = vsel %vm1472, %v1467, %v1471
  %v1475 = vlaneseq
  %vm1476 = vcmp.ge.s32.totalorder %v1475, 0
  %vm1477 = vcmp.lt.s32.totalorder %v1475, 256
  %vm1478 = vmand %vm1476, %vm1477
  %1479 = vst.msk [vmem:[%s13] sm:$0x3] %vm1478, %v1473
  // Predicated region
  $region54: #{encoder_decoder_forward.7} parent=0 // pred_check
    _
  $region55: #{encoder_decoder_forward.7} parent=0 // pred_check_branch
    %1481 = sbr.rel (0) target = $region57
  $region56: #{encoder_decoder_forward.7} parent=0 // pred_region
    _
  $region57: #{encoder_decoder_forward.7} parent=0 // pred_fallthru
    _
  // Predicated region
  $region58: #{encoder_decoder_forward.7} parent=0 // pred_check
    _
  $region59: #{encoder_decoder_forward.7} parent=0 // pred_check_branch
    %1483 = sbr.rel (0) target = $region61
  $region60: #{encoder_decoder_forward.7} parent=0 // pred_region
    _
  $region61: #{encoder_decoder_forward.7} parent=0 // pred_fallthru
    _

// kernel: encoder_decoder_forward.9
$region0: #{encoder_decoder_forward.9}
  #allocation0 [shape = 'u32[]', space=smem, size = 0x4, offset = 0x4, fixed_abs, tag = 'smem constant byte address 0x4 - core index']
  #allocation1 [shape = 'u32[72,128]{1,0:T(1,128)}', space=vmem, size = 0x9000, scoped, tag = 'internal scratch']
  %s0 = inlined_call_operand.vmem [shape: bf16[1,72,256], index: 0, kind: input, shape index: {}]
  %s1 = inlined_call_operand.vmem [shape: bf16[3,72], index: 1, kind: input, shape index: {}]
  %s2 = inlined_call_operand.vmem [shape: f32[3,1], index: 2, kind: input, shape index: {}]
  %s3 = inlined_call_operand.vmem [shape: f32[3,256], index: 3, kind: output, shape index: {}]
  %s4 = sld [smem:[#allocation0]]
  $region22: #{encoder_decoder_forward.9} parent=0
    _
  %s6 = ssub.s32 1, %s4
  %s7 = scalar_select 0, %s6, %s4
  // Predicated region
  $region2: #{encoder_decoder_forward.9} parent=0 // pred_check
    _
  $region3: #{encoder_decoder_forward.9} parent=0 // pred_check_branch
    %9 = sbr.rel (0) target = $region5
  $region4: #{encoder_decoder_forward.9} parent=0 // pred_region
    _
  $region5: #{encoder_decoder_forward.9} parent=0 // pred_fallthru
    _
  // Predicated region
  $region6: #{encoder_decoder_forward.9} parent=0 // pred_check
    _
  $region7: #{encoder_decoder_forward.9} parent=0 // pred_check_branch
    %11 = sbr.rel (0) target = $region9
  $region8: #{encoder_decoder_forward.9} parent=0 // pred_region
    _
  $region9: #{encoder_decoder_forward.9} parent=0 // pred_fallthru
    _
  // Predicated region
  $region10: #{encoder_decoder_forward.9} parent=0 // pred_check
    _
  $region11: #{encoder_decoder_forward.9} parent=0 // pred_check_branch
    %13 = sbr.rel (0) target = $region13
  $region12: #{encoder_decoder_forward.9} parent=0 // pred_region
    _
  $region13: #{encoder_decoder_forward.9} parent=0 // pred_fallthru
    _
  %v15 = vld [vmem:[%s1] sm:$0x3]
  %v16 = vld [vmem:[%s0] sm:$0xff]
  %v17 = vld [vmem:[%s0 + $0x8] sm:$0xff]
  %v18 = vld [vmem:[%s0 + $0x10] sm:$0xff]
  %v19 = vld [vmem:[%s0 + $0x18] sm:$0xff]
  %v20 = vld [vmem:[%s0 + $0x20] sm:$0xff]
  %v21 = vld [vmem:[%s0 + $0x28] sm:$0xff]
  %v22 = vld [vmem:[%s0 + $0x30] sm:$0xff]
  %v23 = vld [vmem:[%s0 + $0x38] sm:$0xff]
  %v24 = vld [vmem:[%s0 + $0x40] sm:$0xff]
  %v25 = vld [vmem:[%s2] sm:$0x7]
  %27 = vset.pattern.permute.xlu0 0
  %28 = vperm.xlu0 %27, %v25
  %v29 = vpop.permute.xlu0 %28
  %v40 = vunpack.c.l.b16 %v16
  %v41 = vunpack.c.h.b16 %v16
  %v42 = vunpack.c.l.b16 %v17
  %v43 = vunpack.c.h.b16 %v17
  %v44 = vunpack.c.l.b16 %v18
  %v45 = vunpack.c.h.b16 %v18
  %v46 = vunpack.c.l.b16 %v19
  %v47 = vunpack.c.h.b16 %v19
  %v48 = vunpack.c.l.b16 %v20
  %v49 = vunpack.c.h.b16 %v20
  %v50 = vunpack.c.l.b16 %v21
  %v51 = vunpack.c.h.b16 %v21
  %v52 = vunpack.c.l.b16 %v22
  %v53 = vunpack.c.h.b16 %v22
  %v54 = vunpack.c.l.b16 %v23
  %v55 = vunpack.c.h.b16 %v23
  %v56 = vunpack.c.l.b16 %v24
  %v57 = vunpack.c.h.b16 %v24
  %v58 = vpack.c.b16 %v42, %v40
  %v59 = vpack.c.b16 %v43, %v41
  %v60 = vpack.c.b16 %v46, %v44
  %v61 = vpack.c.b16 %v47, %v45
  %v62 = vpack.c.b16 %v50, %v48
  %v63 = vpack.c.b16 %v51, %v49
  %v64 = vpack.c.b16 %v54, %v52
  %v65 = vpack.c.b16 %v55, %v53
  %v66 = vpack.c.b16 %v56, %v56
  %v67 = vpack.c.b16 %v57, %v57
  %vm76 = vcmask 588800
  %v78 = vsel %vm76, %v15, 0
  %vm80 = vcmask 1043456
  %v82 = vsel %vm80, %v66, 0
  %v85 = vsel %vm80, %v67, 0
  %87 = vmatpush.bf16.msra.mxu0 0
  %88 = vmatpush.bf16.msra.mxu0 0
  %89 = vmatpush.bf16.msra.mxu0 0
  %90 = vmatpush.bf16.msra.mxu0 %v82
  %91 = vmatpush.bf16.msra.mxu0 %v64
  %92 = vmatpush.bf16.msra.mxu0 %v62
  %93 = vmatpush.bf16.msra.mxu0 %v60
  %94 = vmatpush.bf16.msra.mxu0 %v58
  %95 = vmatmul.bf16.gmra.mxu0 %v78
  %v96 = vpop.f32.mrf.mxu0
  %v97 = vadd.f32 %v29, %v96
  %v98 = vpop.f32.mrf.mxu0
  %99 = vdwg.mxu0
  %100 = vmatpush.bf16.msra.mxu0 0
  %101 = vmatpush.bf16.msra.mxu0 0
  %102 = vmatpush.bf16.msra.mxu0 0
  %103 = vmatpush.bf16.msra.mxu0 %v85
  %104 = vmatpush.bf16.msra.mxu0 %v65
  %105 = vmatpush.bf16.msra.mxu0 %v63
  %106 = vmatpush.bf16.msra.mxu0 %v61
  %107 = vmatpush.bf16.msra.mxu0 %v59
  %108 = vmatmul.bf16.gmra.mxu0 %v78
  %v109 = vpop.f32.mrf.mxu0
  %v110 = vadd.f32 %v29, %v109
  %v111 = vpop.f32.mrf.mxu0
  %112 = vdwg.mxu0
  %v113 = vxor.u32 %v97, 2147483648
  %v114 = vxor.u32 %v110, 2147483648
  %v115 = vmul.f32 %v113, 1.442695
  %v116 = vpow.pop %v115
  %v117 = vmul.f32 %v114, 1.442695
  %v118 = vpow.pop %v117
  %v119 = vadd.f32 %v116, 1.0
  %v120 = vadd.f32 %v118, 1.0
  %v121 = vrcp.pop %v119
  %v122 = vmul.f32 %v119, %v121
  %v123 = vsub.f32 1.0, %v122
  %v124 = vmul.f32 %v121, %v123
  %v125 = vadd.f32 %v121, %v124
  %vm126 = vweird.f32 %v119
  %vm127 = vweird.f32 %v121
  %vm128 = vmor %vm126, %vm127
  %v129 = vsel %vm128, %v121, %v125
  %v130 = vand.u32 2147483647, %v119
  %vm131 = vcmp.eq.f32.partialorder %v130, 8.507059e+37
  %v132 = vand.u32 %v119, 2147483648
  %v133 = vor.u32 1.1754944e-38, %v132
  %v134 = vsel %vm131, %v133, %v129
  %v135 = vmul.f32 1.0, %v134
  %v136 = vrcp.pop %v120
  %v137 = vmul.f32 %v120, %v136
  %v138 = vsub.f32 1.0, %v137
  %v139 = vmul.f32 %v136, %v138
  %v140 = vadd.f32 %v136, %v139
  %vm141 = vweird.f32 %v120
  %vm142 = vweird.f32 %v136
  %vm143 = vmor %vm141, %vm142
  %v144 = vsel %vm143, %v136, %v140
  %v145 = vand.u32 2147483647, %v120
  %vm146 = vcmp.eq.f32.partialorder %v145, 8.507059e+37
  %v147 = vand.u32 %v120, 2147483648
  %v148 = vor.u32 1.1754944e-38, %v147
  %v149 = vsel %vm146, %v148, %v144
  %v150 = vmul.f32 1.0, %v149
  %v153 = vrot.slane %v150, 4
  %v154 = vsel %vm80, %v135, %v153
  %156 = vst [vmem:[%s3] sm:$0x77] %v154
  // Predicated region
  $region14: #{encoder_decoder_forward.9} parent=0 // pred_check
    _
  $region15: #{encoder_decoder_forward.9} parent=0 // pred_check_branch
    %158 = sbr.rel (0) target = $region17
  $region16: #{encoder_decoder_forward.9} parent=0 // pred_region
    _
  $region17: #{encoder_decoder_forward.9} parent=0 // pred_fallthru
    _
  // Predicated region
  $region18: #{encoder_decoder_forward.9} parent=0 // pred_check
    _
  $region19: #{encoder_decoder_forward.9} parent=0 // pred_check_branch
    %160 = sbr.rel (0) target = $region21
  $region20: #{encoder_decoder_forward.9} parent=0 // pred_region
    _
  $region21: #{encoder_decoder_forward.9} parent=0 // pred_fallthru
    _

</llo_original>
